<compile_context>
chip_gen: v6e
topology: v6e:2x2x1
jax: 0.10.0
libtpu: 0.0.40
codegen_flags: <defaults>
</compile_context>

<pallas_src>
import jax
import jax.numpy as jnp
from jax.experimental import pallas as pl
from jax.experimental.pallas import tpu as pltpu

NUM_INPUTS = 28 * 28          # 784
NUM_HIDDEN = 512
NUM_OUTPUTS = 10

K_PAD = 896                   # 784 padded up to 7 * 128 (lane-aligned K)
N_PAD = 128                   # 10 padded up to 128 (lane-dense output store)


def mlp_kernel(x_ref, w1_ref, b1_ref, w2_ref, b2_ref, w3_ref, b3_ref, o_ref):
    # x tile: (TILE_B, 896) bf16; weights bf16; biases f32; accumulate in f32.
    x = x_ref[...]

    # Layer 1: Linear + ReLU  (MXU, f32 accumulation)
    h1 = jnp.dot(x, w1_ref[...], preferred_element_type=jnp.float32)
    h1 = jnp.maximum(h1 + b1_ref[...], 0.0)
    # Dropout(0.2) -> identity in eval mode.
    h1 = h1.astype(jnp.bfloat16)

    # Layer 2: Linear + ReLU
    h2 = jnp.dot(h1, w2_ref[...], preferred_element_type=jnp.float32)
    h2 = jnp.maximum(h2 + b2_ref[...], 0.0)
    # Dropout(0.2) -> identity in eval mode.
    h2 = h2.astype(jnp.bfloat16)

    # Layer 3: Linear (logits, padded to 128 lanes)
    out = jnp.dot(h2, w3_ref[...], preferred_element_type=jnp.float32)
    o_ref[...] = (out + b3_ref[...]).astype(o_ref.dtype)


def mlp_forward(x, w1, b1, w2, b2, w3, b3, *, tile_b=128):
    """x: (B, 784) float. Weights are (in, out). Returns (B, 10) f32 logits."""
    B = x.shape[0]
    b_pad = pl.cdiv(B, tile_b) * tile_b

    # Host-side padding / casts (done once; zero rows/cols don't change math).
    x_p = jnp.zeros((b_pad, K_PAD), jnp.bfloat16)
    x_p = x_p.at[:B, :NUM_INPUTS].set(x.astype(jnp.bfloat16))
    w1_p = jnp.zeros((K_PAD, NUM_HIDDEN), jnp.bfloat16)
    w1_p = w1_p.at[:NUM_INPUTS, :].set(w1.astype(jnp.bfloat16))
    w2_b = w2.astype(jnp.bfloat16)
    w3_p = jnp.zeros((NUM_HIDDEN, N_PAD), jnp.bfloat16)
    w3_p = w3_p.at[:, :NUM_OUTPUTS].set(w3.astype(jnp.bfloat16))
    b1_2 = b1.reshape(1, NUM_HIDDEN).astype(jnp.float32)
    b2_2 = b2.reshape(1, NUM_HIDDEN).astype(jnp.float32)
    b3_p = jnp.zeros((1, N_PAD), jnp.float32)
    b3_p = b3_p.at[0, :NUM_OUTPUTS].set(b3.astype(jnp.float32))

    grid = (b_pad // tile_b,)

    flops = 2 * b_pad * (K_PAD * NUM_HIDDEN
                         + NUM_HIDDEN * NUM_HIDDEN
                         + NUM_HIDDEN * N_PAD)
    bytes_accessed = (x_p.size * 2 + w1_p.size * 2 + w2_b.size * 2
                      + w3_p.size * 2
                      + (b1_2.size + b2_2.size + b3_p.size) * 4
                      + b_pad * N_PAD * 4)

    out = pl.pallas_call(
        mlp_kernel,
        out_shape=jax.ShapeDtypeStruct((b_pad, N_PAD), jnp.float32),
        grid=grid,
        in_specs=[
            # Batch-tiled input: streams through VMEM, double-buffered.
            pl.BlockSpec((tile_b, K_PAD), lambda i: (i, 0)),
            # Weights / biases: constant index_map -> DMA'd once, resident.
            pl.BlockSpec((K_PAD, NUM_HIDDEN), lambda i: (0, 0)),
            pl.BlockSpec((1, NUM_HIDDEN), lambda i: (0, 0)),
            pl.BlockSpec((NUM_HIDDEN, NUM_HIDDEN), lambda i: (0, 0)),
            pl.BlockSpec((1, NUM_HIDDEN), lambda i: (0, 0)),
            pl.BlockSpec((NUM_HIDDEN, N_PAD), lambda i: (0, 0)),
            pl.BlockSpec((1, N_PAD), lambda i: (0, 0)),
        ],
        out_specs=pl.BlockSpec((tile_b, N_PAD), lambda i: (i, 0)),
        compiler_params=pltpu.CompilerParams(
            dimension_semantics=("parallel",),
        ),
        cost_estimate=pl.CostEstimate(
            flops=flops, transcendentals=0, bytes_accessed=bytes_accessed),
    )(x_p, w1_p, b1_2, w2_b, b2_2, w3_p, b3_p)

    return out[:B, :NUM_OUTPUTS]


def ref_forward(x, w1, b1, w2, b2, w3, b3):
    """Pure-JAX reference mirroring the kernel's bf16-in / f32-accumulate path."""
    xb = x.astype(jnp.bfloat16)
    h = jnp.dot(xb, w1.astype(jnp.bfloat16),
                preferred_element_type=jnp.float32)
    h = jnp.maximum(h + b1, 0.0).astype(jnp.bfloat16)
    h = jnp.dot(h, w2.astype(jnp.bfloat16),
                preferred_element_type=jnp.float32)
    h = jnp.maximum(h + b2, 0.0).astype(jnp.bfloat16)
    out = jnp.dot(h, w3.astype(jnp.bfloat16),
                  preferred_element_type=jnp.float32)
    return out + b3


def init_linear_params(key, fan_in, fan_out):
    """PyTorch nn.Linear default init: U(-1/sqrt(fan_in), 1/sqrt(fan_in)).
    Weight returned as (in, out)."""
    kw, kb = jax.random.split(key)
    bound = 1.0 / jnp.sqrt(jnp.float32(fan_in))
    w = jax.random.uniform(kw, (fan_in, fan_out), jnp.float32, -bound, bound)
    b = jax.random.uniform(kb, (fan_out,), jnp.float32, -bound, bound)
    return w, b


if __name__ == "__main__":
    key = jax.random.PRNGKey(0)
    kx, k1, k2, k3 = jax.random.split(key, 4)

    w1, b1 = init_linear_params(k1, NUM_INPUTS, NUM_HIDDEN)
    w2, b2 = init_linear_params(k2, NUM_HIDDEN, NUM_HIDDEN)
    w3, b3 = init_linear_params(k3, NUM_HIDDEN, NUM_OUTPUTS)

    ok = True
    for batch in (8, 300):   # small batch + one that exercises >1 grid step & padding
        x = jax.random.normal(jax.random.fold_in(kx, batch),
                              (batch, NUM_INPUTS), jnp.float32)

        out = mlp_forward(x, w1, b1, w2, b2, w3, b3)
        out = jax.block_until_ready(out)

        ref = ref_forward(x, w1, b1, w2, b2, w3, b3)
        assert out.shape == (batch, NUM_OUTPUTS)
        ok &= bool(jnp.allclose(out, ref, atol=1e-2, rtol=1e-2))

    if ok:
        print("KERNEL_OK")
</pallas_src>

<mosaic_0001>
module attributes {stable_mosaic.version = 11 : i64} {
  func.func @mlp_kernel(%arg0: i32, %arg1: memref<128x896xbf16, #tpu.memory_space<vmem>>, %arg2: memref<896x512xbf16, #tpu.memory_space<vmem>>, %arg3: memref<1x512xf32, #tpu.memory_space<vmem>>, %arg4: memref<512x512xbf16, #tpu.memory_space<vmem>>, %arg5: memref<1x512xf32, #tpu.memory_space<vmem>>, %arg6: memref<512x128xbf16, #tpu.memory_space<vmem>>, %arg7: memref<1x128xf32, #tpu.memory_space<vmem>>, %arg8: memref<128x128xf32, #tpu.memory_space<vmem>>) attributes {dimension_semantics = [#tpu.dimension_semantics<parallel>], iteration_bounds = array<i64: 1>, scalar_prefetch = 0 : i64, scratch_operands = 0 : i64, tpu.core_type = #tpu.core_type<tc>, window_params = [{transform_indices = @transform_0, window_bounds = array<i64: 128, 896>}, {pipeline_mode = #tpu.pipeline_mode<synchronous>, transform_indices = @transform_1, window_bounds = array<i64: 896, 512>}, {pipeline_mode = #tpu.pipeline_mode<synchronous>, transform_indices = @transform_2, window_bounds = array<i64: 1, 512>}, {pipeline_mode = #tpu.pipeline_mode<synchronous>, transform_indices = @transform_3, window_bounds = array<i64: 512, 512>}, {pipeline_mode = #tpu.pipeline_mode<synchronous>, transform_indices = @transform_4, window_bounds = array<i64: 1, 512>}, {pipeline_mode = #tpu.pipeline_mode<synchronous>, transform_indices = @transform_5, window_bounds = array<i64: 512, 128>}, {pipeline_mode = #tpu.pipeline_mode<synchronous>, transform_indices = @transform_6, window_bounds = array<i64: 1, 128>}, {transform_indices = @transform_7, window_bounds = array<i64: 128, 128>}]} {
    %c0 = arith.constant 0 : index
    %c0_0 = arith.constant 0 : index
    %0 = vector.load %arg1[%c0, %c0_0] : memref<128x896xbf16, #tpu.memory_space<vmem>>, vector<128x896xbf16>
    %c0_1 = arith.constant 0 : index
    %c0_2 = arith.constant 0 : index
    %1 = vector.load %arg2[%c0_1, %c0_2] : memref<896x512xbf16, #tpu.memory_space<vmem>>, vector<896x512xbf16>
    %cst = arith.constant dense<0.000000e+00> : vector<128x512xf32>
    %2 = tpu.matmul %0, %1, %cst {dimension_numbers = #tpu.dot_dimension_numbers<[1], [0], [0], [1], [0, 0, 1, 1], [], []>} : vector<128x896xbf16>, vector<896x512xbf16>, vector<128x512xf32> -> vector<128x512xf32>
    %c0_3 = arith.constant 0 : index
    %c0_4 = arith.constant 0 : index
    %3 = vector.load %arg3[%c0_3, %c0_4] : memref<1x512xf32, #tpu.memory_space<vmem>>, vector<1x512xf32>
    %4 = vector.broadcast %3 : vector<1x512xf32> to vector<128x512xf32>
    %5 = arith.addf %2, %4 : vector<128x512xf32>
    %cst_5 = arith.constant 0.000000e+00 : f32
    %6 = vector.broadcast %cst_5 : f32 to vector<128x512xf32>
    %7 = arith.maximumf %5, %6 : vector<128x512xf32>
    %8 = arith.truncf %7 : vector<128x512xf32> to vector<128x512xbf16>
    %c0_6 = arith.constant 0 : index
    %c0_7 = arith.constant 0 : index
    %9 = vector.load %arg4[%c0_6, %c0_7] : memref<512x512xbf16, #tpu.memory_space<vmem>>, vector<512x512xbf16>
    %cst_8 = arith.constant dense<0.000000e+00> : vector<128x512xf32>
    %10 = tpu.matmul %8, %9, %cst_8 {dimension_numbers = #tpu.dot_dimension_numbers<[1], [0], [0], [1], [0, 0, 1, 1], [], []>} : vector<128x512xbf16>, vector<512x512xbf16>, vector<128x512xf32> -> vector<128x512xf32>
    %c0_9 = arith.constant 0 : index
    %c0_10 = arith.constant 0 : index
    %11 = vector.load %arg5[%c0_9, %c0_10] : memref<1x512xf32, #tpu.memory_space<vmem>>, vector<1x512xf32>
    %12 = vector.broadcast %11 : vector<1x512xf32> to vector<128x512xf32>
    %13 = arith.addf %10, %12 : vector<128x512xf32>
    %cst_11 = arith.constant 0.000000e+00 : f32
    %14 = vector.broadcast %cst_11 : f32 to vector<128x512xf32>
    %15 = arith.maximumf %13, %14 : vector<128x512xf32>
    %16 = arith.truncf %15 : vector<128x512xf32> to vector<128x512xbf16>
    %c0_12 = arith.constant 0 : index
    %c0_13 = arith.constant 0 : index
    %17 = vector.load %arg6[%c0_12, %c0_13] : memref<512x128xbf16, #tpu.memory_space<vmem>>, vector<512x128xbf16>
    %cst_14 = arith.constant dense<0.000000e+00> : vector<128x128xf32>
    %18 = tpu.matmul %16, %17, %cst_14 {dimension_numbers = #tpu.dot_dimension_numbers<[1], [0], [0], [1], [0, 0, 1, 1], [], []>} : vector<128x512xbf16>, vector<512x128xbf16>, vector<128x128xf32> -> vector<128x128xf32>
    %c0_15 = arith.constant 0 : index
    %c0_16 = arith.constant 0 : index
    %19 = vector.load %arg7[%c0_15, %c0_16] : memref<1x128xf32, #tpu.memory_space<vmem>>, vector<1x128xf32>
    %20 = vector.broadcast %19 : vector<1x128xf32> to vector<128x128xf32>
    %21 = arith.addf %18, %20 : vector<128x128xf32>
    %c0_17 = arith.constant 0 : index
    %c0_18 = arith.constant 0 : index
    %22 = vector.load %arg8[%c0_17, %c0_18] : memref<128x128xf32, #tpu.memory_space<vmem>>, vector<128x128xf32>
    tpu.vector_store %arg8[%c0_17, %c0_18], %21 {strides = array<i32>} : memref<128x128xf32, #tpu.memory_space<vmem>>, vector<128x128xf32>,
    return
  }
  func.func @transform_0(%arg0: i32) -> (i32, i32) {
    %c0_i32 = arith.constant 0 : i32
    %c0_i32_0 = arith.constant 0 : i32
    return %arg0, %c0_i32 : i32, i32
  }
  func.func @transform_1(%arg0: i32) -> (i32, i32) {
    %c0_i32 = arith.constant 0 : i32
    %c0_i32_0 = arith.constant 0 : i32
    %c0_i32_1 = arith.constant 0 : i32
    return %c0_i32, %c0_i32_0 : i32, i32
  }
  func.func @transform_2(%arg0: i32) -> (i32, i32) {
    %c0_i32 = arith.constant 0 : i32
    %c0_i32_0 = arith.constant 0 : i32
    %c0_i32_1 = arith.constant 0 : i32
    return %c0_i32, %c0_i32_0 : i32, i32
  }
  func.func @transform_3(%arg0: i32) -> (i32, i32) {
    %c0_i32 = arith.constant 0 : i32
    %c0_i32_0 = arith.constant 0 : i32
    %c0_i32_1 = arith.constant 0 : i32
    return %c0_i32, %c0_i32_0 : i32, i32
  }
  func.func @transform_4(%arg0: i32) -> (i32, i32) {
    %c0_i32 = arith.constant 0 : i32
    %c0_i32_0 = arith.constant 0 : i32
    %c0_i32_1 = arith.constant 0 : i32
    return %c0_i32, %c0_i32_0 : i32, i32
  }
  func.func @transform_5(%arg0: i32) -> (i32, i32) {
    %c0_i32 = arith.constant 0 : i32
    %c0_i32_0 = arith.constant 0 : i32
    %c0_i32_1 = arith.constant 0 : i32
    return %c0_i32, %c0_i32_0 : i32, i32
  }
  func.func @transform_6(%arg0: i32) -> (i32, i32) {
    %c0_i32 = arith.constant 0 : i32
    %c0_i32_0 = arith.constant 0 : i32
    %c0_i32_1 = arith.constant 0 : i32
    return %c0_i32, %c0_i32_0 : i32, i32
  }
  func.func @transform_7(%arg0: i32) -> (i32, i32) {
    %c0_i32 = arith.constant 0 : i32
    %c0_i32_0 = arith.constant 0 : i32
    return %arg0, %c0_i32 : i32, i32
  }
}

</mosaic_0001>

<llo_original>
// kernel: tpu_custom_call.1
$region0: #{tpu_custom_call.1}
  #allocation0 [shape = 'u32[]', space=smem, size = 0x4, offset = 0x4, fixed_abs, tag = 'smem constant byte address 0x4 - core index']
  #allocation1 [shape = 'u32[144,128]{1,0:T(1,128)}', space=vmem, size = 0x12000, scoped, tag = 'internal scratch']
  %s0 = inlined_call_operand.hbm [shape: bf16[128,896], index: 0, kind: input, shape index: {}]
  %s1 = inlined_call_operand.hbm [shape: bf16[896,512], index: 1, kind: input, shape index: {}]
  %s2 = inlined_call_operand.hbm [shape: f32[1,512], index: 2, kind: input, shape index: {}]
  %s3 = inlined_call_operand.hbm [shape: bf16[512,512], index: 3, kind: input, shape index: {}]
  %s4 = inlined_call_operand.vmem [shape: f32[1,512], index: 4, kind: input, shape index: {}]
  %s5 = inlined_call_operand.hbm [shape: bf16[512,128], index: 5, kind: input, shape index: {}]
  %s6 = inlined_call_operand.vmem [shape: f32[1,128], index: 6, kind: input, shape index: {}]
  %s7 = inlined_call_operand.hbm [shape: f32[128,128], index: 7, kind: output, shape index: {}]
  %s8 = sld [smem:[#allocation0]]
  $region58: #{tpu_custom_call.1} parent=0
    _
  %s10 = ssub.s32 1, %s8
  %s11 = scalar_select 0, %s10, %s8
  $region1: #{tpu_custom_call.1} parent=0
    #allocation2 [shape = 'u8[229376]{0}', space=vmem, size = 0x38000, scoped, tag = 'input window, operand 0, single buffered']
    #allocation3 [shape = 's32[1]{0}', space=sflag, size = 0x4, scoped, tag = 'scoped memory for tpu_custom_call.1']
    #allocation4 [shape = 's32[1]{0}', space=sflag, size = 0x4, scoped, tag = 'scoped memory for tpu_custom_call.1']
    #allocation5 [shape = 'u8[917504]{0}', space=vmem, size = 0xe0000, scoped, tag = 'input window, operand 1, single buffered']
    #allocation6 [shape = 's32[1]{0}', space=sflag, size = 0x4, scoped, tag = 'scoped memory for tpu_custom_call.1']
    #allocation7 [shape = 'u8[2048]{0}', space=vmem, size = 0x800, scoped, tag = 'input window, operand 2, single buffered']
    #allocation8 [shape = 'u8[524288]{0}', space=vmem, size = 0x80000, scoped, tag = 'input window, operand 3, single buffered']
    #allocation9 [shape = 's32[1]{0}', space=sflag, size = 0x4, scoped, tag = 'scoped memory for tpu_custom_call.1']
    #allocation10 [shape = 'u8[131072]{0}', space=vmem, size = 0x20000, scoped, tag = 'input window, operand 5, single buffered']
    #allocation11 [shape = 'u8[65536]{0}', space=vmem, size = 0x10000, scoped, tag = 'output window, operand 0, single buffered']
    %12 = vsyncpa [#allocation3], 0
    %13 = vsyncpa [#allocation6], 0
    %14 = vsyncpa [#allocation9], 0
    %15 = vsyncpa [#allocation4], 0
    // Predicated region
    $region2: #{tpu_custom_call.1} parent=1 // pred_check
      _
    $region3: #{tpu_custom_call.1} parent=1 // pred_check_branch
      %17 = sbr.rel (0) target = $region5
    $region4: #{tpu_custom_call.1} parent=1 // pred_region
      %s19 = ssub.s32 7168, 7168
      %20 = vsyncadd [#allocation3], %s19
      %s21 = sshll.u32 [#allocation2], 4
      %s22 = int_to_ptr.vmem [resolvable:$true] %s21
      %27 = dma.hbm_to_vmem [thread:$0]  %s0, 7168, %s22, [#allocation3], 448, 448, 28
    $region5: #{tpu_custom_call.1} parent=1 // pred_fallthru
      _
    // Predicated region
    $region6: #{tpu_custom_call.1} parent=1 // pred_check
      _
    $region7: #{tpu_custom_call.1} parent=1 // pred_check_branch
      %29 = sbr.rel (0) target = $region9
    $region8: #{tpu_custom_call.1} parent=1 // pred_region
      %s31 = ssub.s32 28672, 28672
      %32 = vsyncadd [#allocation6], %s31
      %s33 = sshll.u32 [#allocation5], 4
      %s34 = int_to_ptr.vmem [resolvable:$true] %s33
      %39 = dma.hbm_to_vmem [thread:$0]  %s1, 28672, %s34, [#allocation6], 256, 256, 16
    $region9: #{tpu_custom_call.1} parent=1 // pred_fallthru
      _
    // Predicated region
    $region10: #{tpu_custom_call.1} parent=1 // pred_check
      _
    $region11: #{tpu_custom_call.1} parent=1 // pred_check_branch
      %41 = sbr.rel (0) target = $region13
    $region12: #{tpu_custom_call.1} parent=1 // pred_region
      %s43 = ssub.s32 64, 64
      %44 = vsyncadd [#allocation6], %s43
      %s46 = sshll.u32 [#allocation7], 4
      %s47 = int_to_ptr.vmem [resolvable:$true] %s46
      %49 = dma.hbm_to_vmem [thread:$0]  %s2, 64, %s47, [#allocation6]
    $region13: #{tpu_custom_call.1} parent=1 // pred_fallthru
      _
    // Predicated region
    $region14: #{tpu_custom_call.1} parent=1 // pred_check
      _
    $region15: #{tpu_custom_call.1} parent=1 // pred_check_branch
      %51 = sbr.rel (0) target = $region17
    $region16: #{tpu_custom_call.1} parent=1 // pred_region
      %s53 = ssub.s32 16384, 16384
      %54 = vsyncadd [#allocation9], %s53
      %s55 = sshll.u32 [#allocation8], 4
      %s56 = int_to_ptr.vmem [resolvable:$true] %s55
      %61 = dma.hbm_to_vmem [thread:$0]  %s3, 16384, %s56, [#allocation9], 256, 256, 16
    $region17: #{tpu_custom_call.1} parent=1 // pred_fallthru
      _
    // Predicated region
    $region18: #{tpu_custom_call.1} parent=1 // pred_check
      _
    $region19: #{tpu_custom_call.1} parent=1 // pred_check_branch
      %63 = sbr.rel (0) target = $region21
    $region20: #{tpu_custom_call.1} parent=1 // pred_region
      _
    $region21: #{tpu_custom_call.1} parent=1 // pred_fallthru
      _
    // Predicated region
    $region22: #{tpu_custom_call.1} parent=1 // pred_check
      _
    $region23: #{tpu_custom_call.1} parent=1 // pred_check_branch
      %65 = sbr.rel (0) target = $region25
    $region24: #{tpu_custom_call.1} parent=1 // pred_region
      %s67 = ssub.s32 4096, 4096
      %68 = vsyncadd [#allocation9], %s67
      %s69 = sshll.u32 [#allocation10], 4
      %s70 = int_to_ptr.vmem [resolvable:$true] %s69
      %75 = dma.hbm_to_vmem [thread:$0]  %s5, 4096, %s70, [#allocation9], 64, 64, 4
    $region25: #{tpu_custom_call.1} parent=1 // pred_fallthru
      _
    // Predicated region
    $region26: #{tpu_custom_call.1} parent=1 // pred_check
      _
    $region27: #{tpu_custom_call.1} parent=1 // pred_check_branch
      %77 = sbr.rel (0) target = $region29
    $region28: #{tpu_custom_call.1} parent=1 // pred_region
      _
    $region29: #{tpu_custom_call.1} parent=1 // pred_fallthru
      _
    // Predicated region
    $region30: #{tpu_custom_call.1} parent=1 // pred_check
      _
    $region31: #{tpu_custom_call.1} parent=1 // pred_check_branch
      %79 = sbr.rel (0) target = $region33
    $region32: #{tpu_custom_call.1} parent=1 // pred_region
      %80 = dma.done [#allocation3], 7168
    $region33: #{tpu_custom_call.1} parent=1 // pred_fallthru
      _
    // Predicated region
    $region34: #{tpu_custom_call.1} parent=1 // pred_check
      _
    $region35: #{tpu_custom_call.1} parent=1 // pred_check_branch
      %82 = sbr.rel (0) target = $region37
    $region36: #{tpu_custom_call.1} parent=1 // pred_region
      %83 = dma.done [#allocation6], 28672
    $region37: #{tpu_custom_call.1} parent=1 // pred_fallthru
      _
    // Predicated region
    $region38: #{tpu_custom_call.1} parent=1 // pred_check
      _
    $region39: #{tpu_custom_call.1} parent=1 // pred_check_branch
      %85 = sbr.rel (0) target = $region41
    $region40: #{tpu_custom_call.1} parent=1 // pred_region
      %86 = dma.done [#allocation6], 64
    $region41: #{tpu_custom_call.1} parent=1 // pred_fallthru
      _
    // Predicated region
    $region42: #{tpu_custom_call.1} parent=1 // pred_check
      _
    $region43: #{tpu_custom_call.1} parent=1 // pred_check_branch
      %88 = sbr.rel (0) target = $region45
    $region44: #{tpu_custom_call.1} parent=1 // pred_region
      %89 = dma.done [#allocation9], 16384
    $region45: #{tpu_custom_call.1} parent=1 // pred_fallthru
      _
    // Predicated region
    $region46: #{tpu_custom_call.1} parent=1 // pred_check
      _
    $region47: #{tpu_custom_call.1} parent=1 // pred_check_branch
      %91 = sbr.rel (0) target = $region49
    $region48: #{tpu_custom_call.1} parent=1 // pred_region
      %92 = dma.done [#allocation9], 4096
    $region49: #{tpu_custom_call.1} parent=1 // pred_fallthru
      _
    %v94 = vld [vmem:[#allocation2] sm:$0xff]
    %v95 = vld [vmem:[#allocation2 + $0x8] sm:$0xff]
    %v96 = vld [vmem:[#allocation2 + $0x10] sm:$0xff]
    %v97 = vld [vmem:[#allocation2 + $0x18] sm:$0xf]
    %v98 = vld [vmem:[#allocation2 + $0x1c] sm:$0xff]
    %v99 = vld [vmem:[#allocation2 + $0x24] sm:$0xff]
    %v100 = vld [vmem:[#allocation2 + $0x2c] sm:$0xff]
    %v101 = vld [vmem:[#allocation2 + $0x34] sm:$0xf]
    %v102 = vld [vmem:[#allocation2 + $0x38] sm:$0xff]
    %v103 = vld [vmem:[#allocation2 + $0x40] sm:$0xff]
    %v104 = vld [vmem:[#allocation2 + $0x48] sm:$0xff]
    %v105 = vld [vmem:[#allocation2 + $0x50] sm:$0xf]
    %v106 = vld [vmem:[#allocation2 + $0x54] sm:$0xff]
    %v107 = vld [vmem:[#allocation2 + $0x5c] sm:$0xff]
    %v108 = vld [vmem:[#allocation2 + $0x64] sm:$0xff]
    %v109 = vld [vmem:[#allocation2 + $0x6c] sm:$0xf]
    %v110 = vld [vmem:[#allocation2 + $0x70] sm:$0xff]
    %v111 = vld [vmem:[#allocation2 + $0x78] sm:$0xff]
    %v112 = vld [vmem:[#allocation2 + $0x80] sm:$0xff]
    %v113 = vld [vmem:[#allocation2 + $0x88] sm:$0xf]
    %v114 = vld [vmem:[#allocation2 + $0x8c] sm:$0xff]
    %v115 = vld [vmem:[#allocation2 + $0x94] sm:$0xff]
    %v116 = vld [vmem:[#allocation2 + $0x9c] sm:$0xff]
    %v117 = vld [vmem:[#allocation2 + $0xa4] sm:$0xf]
    %v118 = vld [vmem:[#allocation2 + $0xa8] sm:$0xff]
    %v119 = vld [vmem:[#allocation2 + $0xb0] sm:$0xff]
    %v120 = vld [vmem:[#allocation2 + $0xb8] sm:$0xff]
    %v121 = vld [vmem:[#allocation2 + $0xc0] sm:$0xf]
    %v122 = vld [vmem:[#allocation2 + $0xc4] sm:$0xff]
    %v123 = vld [vmem:[#allocation2 + $0xcc] sm:$0xff]
    %v124 = vld [vmem:[#allocation2 + $0xd4] sm:$0xff]
    %v125 = vld [vmem:[#allocation2 + $0xdc] sm:$0xf]
    %v126 = vld [vmem:[#allocation2 + $0xe0] sm:$0xff]
    %v127 = vld [vmem:[#allocation2 + $0xe8] sm:$0xff]
    %v128 = vld [vmem:[#allocation2 + $0xf0] sm:$0xff]
    %v129 = vld [vmem:[#allocation2 + $0xf8] sm:$0xf]
    %v130 = vld [vmem:[#allocation2 + $0xfc] sm:$0xff]
    %v131 = vld [vmem:[#allocation2 + $0x104] sm:$0xff]
    %v132 = vld [vmem:[#allocation2 + $0x10c] sm:$0xff]
    %v133 = vld [vmem:[#allocation2 + $0x114] sm:$0xf]
    %v134 = vld [vmem:[#allocation2 + $0x118] sm:$0xff]
    %v135 = vld [vmem:[#allocation2 + $0x120] sm:$0xff]
    %v136 = vld [vmem:[#allocation2 + $0x128] sm:$0xff]
    %v137 = vld [vmem:[#allocation2 + $0x130] sm:$0xf]
    %v138 = vld [vmem:[#allocation2 + $0x134] sm:$0xff]
    %v139 = vld [vmem:[#allocation2 + $0x13c] sm:$0xff]
    %v140 = vld [vmem:[#allocation2 + $0x144] sm:$0xff]
    %v141 = vld [vmem:[#allocation2 + $0x14c] sm:$0xf]
    %v142 = vld [vmem:[#allocation2 + $0x150] sm:$0xff]
    %v143 = vld [vmem:[#allocation2 + $0x158] sm:$0xff]
    %v144 = vld [vmem:[#allocation2 + $0x160] sm:$0xff]
    %v145 = vld [vmem:[#allocation2 + $0x168] sm:$0xf]
    %v146 = vld [vmem:[#allocation2 + $0x16c] sm:$0xff]
    %v147 = vld [vmem:[#allocation2 + $0x174] sm:$0xff]
    %v148 = vld [vmem:[#allocation2 + $0x17c] sm:$0xff]
    %v149 = vld [vmem:[#allocation2 + $0x184] sm:$0xf]
    %v150 = vld [vmem:[#allocation2 + $0x188] sm:$0xff]
    %v151 = vld [vmem:[#allocation2 + $0x190] sm:$0xff]
    %v152 = vld [vmem:[#allocation2 + $0x198] sm:$0xff]
    %v153 = vld [vmem:[#allocation2 + $0x1a0] sm:$0xf]
    %v154 = vld [vmem:[#allocation2 + $0x1a4] sm:$0xff]
    %v155 = vld [vmem:[#allocation2 + $0x1ac] sm:$0xff]
    %v156 = vld [vmem:[#allocation2 + $0x1b4] sm:$0xff]
    %v157 = vld [vmem:[#allocation2 + $0x1bc] sm:$0xf]
    %v158 = vld [vmem:[#allocation5] sm:$0xff]
    %v159 = vld [vmem:[#allocation5 + $0x8] sm:$0xff]
    %v160 = vld [vmem:[#allocation5 + $0x10] sm:$0xff]
    %v161 = vld [vmem:[#allocation5 + $0x18] sm:$0xff]
    %v162 = vld [vmem:[#allocation5 + $0x20] sm:$0xff]
    %v163 = vld [vmem:[#allocation5 + $0x28] sm:$0xff]
    %v164 = vld [vmem:[#allocation5 + $0x30] sm:$0xff]
    %v165 = vld [vmem:[#allocation5 + $0x38] sm:$0xff]
    %v166 = vld [vmem:[#allocation5 + $0x40] sm:$0xff]
    %v167 = vld [vmem:[#allocation5 + $0x48] sm:$0xff]
    %v168 = vld [vmem:[#allocation5 + $0x50] sm:$0xff]
    %v169 = vld [vmem:[#allocation5 + $0x58] sm:$0xff]
    %v170 = vld [vmem:[#allocation5 + $0x60] sm:$0xff]
    %v171 = vld [vmem:[#allocation5 + $0x68] sm:$0xff]
    %v172 = vld [vmem:[#allocation5 + $0x70] sm:$0xff]
    %v173 = vld [vmem:[#allocation5 + $0x78] sm:$0xff]
    %v174 = vld [vmem:[#allocation5 + $0x80] sm:$0xff]
    %v175 = vld [vmem:[#allocation5 + $0x88] sm:$0xff]
    %v176 = vld [vmem:[#allocation5 + $0x90] sm:$0xff]
    %v177 = vld [vmem:[#allocation5 + $0x98] sm:$0xff]
    %v178 = vld [vmem:[#allocation5 + $0xa0] sm:$0xff]
    %v179 = vld [vmem:[#allocation5 + $0xa8] sm:$0xff]
    %v180 = vld [vmem:[#allocation5 + $0xb0] sm:$0xff]
    %v181 = vld [vmem:[#allocation5 + $0xb8] sm:$0xff]
    %v182 = vld [vmem:[#allocation5 + $0xc0] sm:$0xff]
    %v183 = vld [vmem:[#allocation5 + $0xc8] sm:$0xff]
    %v184 = vld [vmem:[#allocation5 + $0xd0] sm:$0xff]
    %v185 = vld [vmem:[#allocation5 + $0xd8] sm:$0xff]
    %v186 = vld [vmem:[#allocation5 + $0xe0] sm:$0xff]
    %v187 = vld [vmem:[#allocation5 + $0xe8] sm:$0xff]
    %v188 = vld [vmem:[#allocation5 + $0xf0] sm:$0xff]
    %v189 = vld [vmem:[#allocation5 + $0xf8] sm:$0xff]
    %v190 = vld [vmem:[#allocation5 + $0x100] sm:$0xff]
    %v191 = vld [vmem:[#allocation5 + $0x108] sm:$0xff]
    %v192 = vld [vmem:[#allocation5 + $0x110] sm:$0xff]
    %v193 = vld [vmem:[#allocation5 + $0x118] sm:$0xff]
    %v194 = vld [vmem:[#allocation5 + $0x120] sm:$0xff]
    %v195 = vld [vmem:[#allocation5 + $0x128] sm:$0xff]
    %v196 = vld [vmem:[#allocation5 + $0x130] sm:$0xff]
    %v197 = vld [vmem:[#allocation5 + $0x138] sm:$0xff]
    %v198 = vld [vmem:[#allocation5 + $0x140] sm:$0xff]
    %v199 = vld [vmem:[#allocation5 + $0x148] sm:$0xff]
    %v200 = vld [vmem:[#allocation5 + $0x150] sm:$0xff]
    %v201 = vld [vmem:[#allocation5 + $0x158] sm:$0xff]
    %v202 = vld [vmem:[#allocation5 + $0x160] sm:$0xff]
    %v203 = vld [vmem:[#allocation5 + $0x168] sm:$0xff]
    %v204 = vld [vmem:[#allocation5 + $0x170] sm:$0xff]
    %v205 = vld [vmem:[#allocation5 + $0x178] sm:$0xff]
    %v206 = vld [vmem:[#allocation5 + $0x180] sm:$0xff]
    %v207 = vld [vmem:[#allocation5 + $0x188] sm:$0xff]
    %v208 = vld [vmem:[#allocation5 + $0x190] sm:$0xff]
    %v209 = vld [vmem:[#allocation5 + $0x198] sm:$0xff]
    %v210 = vld [vmem:[#allocation5 + $0x1a0] sm:$0xff]
    %v211 = vld [vmem:[#allocation5 + $0x1a8] sm:$0xff]
    %v212 = vld [vmem:[#allocation5 + $0x1b0] sm:$0xff]
    %v213 = vld [vmem:[#allocation5 + $0x1b8] sm:$0xff]
    %v214 = vld [vmem:[#allocation5 + $0x1c0] sm:$0xff]
    %v215 = vld [vmem:[#allocation5 + $0x1c8] sm:$0xff]
    %v216 = vld [vmem:[#allocation5 + $0x1d0] sm:$0xff]
    %v217 = vld [vmem:[#allocation5 + $0x1d8] sm:$0xff]
    %v218 = vld [vmem:[#allocation5 + $0x1e0] sm:$0xff]
    %v219 = vld [vmem:[#allocation5 + $0x1e8] sm:$0xff]
    %v220 = vld [vmem:[#allocation5 + $0x1f0] sm:$0xff]
    %v221 = vld [vmem:[#allocation5 + $0x1f8] sm:$0xff]
    %v222 = vld [vmem:[#allocation5 + $0x200] sm:$0xff]
    %v223 = vld [vmem:[#allocation5 + $0x208] sm:$0xff]
    %v224 = vld [vmem:[#allocation5 + $0x210] sm:$0xff]
    %v225 = vld [vmem:[#allocation5 + $0x218] sm:$0xff]
    %v226 = vld [vmem:[#allocation5 + $0x220] sm:$0xff]
    %v227 = vld [vmem:[#allocation5 + $0x228] sm:$0xff]
    %v228 = vld [vmem:[#allocation5 + $0x230] sm:$0xff]
    %v229 = vld [vmem:[#allocation5 + $0x238] sm:$0xff]
    %v230 = vld [vmem:[#allocation5 + $0x240] sm:$0xff]
    %v231 = vld [vmem:[#allocation5 + $0x248] sm:$0xff]
    %v232 = vld [vmem:[#allocation5 + $0x250] sm:$0xff]
    %v233 = vld [vmem:[#allocation5 + $0x258] sm:$0xff]
    %v234 = vld [vmem:[#allocation5 + $0x260] sm:$0xff]
    %v235 = vld [vmem:[#allocation5 + $0x268] sm:$0xff]
    %v236 = vld [vmem:[#allocation5 + $0x270] sm:$0xff]
    %v237 = vld [vmem:[#allocation5 + $0x278] sm:$0xff]
    %v238 = vld [vmem:[#allocation5 + $0x280] sm:$0xff]
    %v239 = vld [vmem:[#allocation5 + $0x288] sm:$0xff]
    %v240 = vld [vmem:[#allocation5 + $0x290] sm:$0xff]
    %v241 = vld [vmem:[#allocation5 + $0x298] sm:$0xff]
    %v242 = vld [vmem:[#allocation5 + $0x2a0] sm:$0xff]
    %v243 = vld [vmem:[#allocation5 + $0x2a8] sm:$0xff]
    %v244 = vld [vmem:[#allocation5 + $0x2b0] sm:$0xff]
    %v245 = vld [vmem:[#allocation5 + $0x2b8] sm:$0xff]
    %v246 = vld [vmem:[#allocation5 + $0x2c0] sm:$0xff]
    %v247 = vld [vmem:[#allocation5 + $0x2c8] sm:$0xff]
    %v248 = vld [vmem:[#allocation5 + $0x2d0] sm:$0xff]
    %v249 = vld [vmem:[#allocation5 + $0x2d8] sm:$0xff]
    %v250 = vld [vmem:[#allocation5 + $0x2e0] sm:$0xff]
    %v251 = vld [vmem:[#allocation5 + $0x2e8] sm:$0xff]
    %v252 = vld [vmem:[#allocation5 + $0x2f0] sm:$0xff]
    %v253 = vld [vmem:[#allocation5 + $0x2f8] sm:$0xff]
    %v254 = vld [vmem:[#allocation5 + $0x300] sm:$0xff]
    %v255 = vld [vmem:[#allocation5 + $0x308] sm:$0xff]
    %v256 = vld [vmem:[#allocation5 + $0x310] sm:$0xff]
    %v257 = vld [vmem:[#allocation5 + $0x318] sm:$0xff]
    %v258 = vld [vmem:[#allocation5 + $0x320] sm:$0xff]
    %v259 = vld [vmem:[#allocation5 + $0x328] sm:$0xff]
    %v260 = vld [vmem:[#allocation5 + $0x330] sm:$0xff]
    %v261 = vld [vmem:[#allocation5 + $0x338] sm:$0xff]
    %v262 = vld [vmem:[#allocation5 + $0x340] sm:$0xff]
    %v263 = vld [vmem:[#allocation5 + $0x348] sm:$0xff]
    %v264 = vld [vmem:[#allocation5 + $0x350] sm:$0xff]
    %v265 = vld [vmem:[#allocation5 + $0x358] sm:$0xff]
    %v266 = vld [vmem:[#allocation5 + $0x360] sm:$0xff]
    %v267 = vld [vmem:[#allocation5 + $0x368] sm:$0xff]
    %v268 = vld [vmem:[#allocation5 + $0x370] sm:$0xff]
    %v269 = vld [vmem:[#allocation5 + $0x378] sm:$0xff]
    %v270 = vld [vmem:[#allocation5 + $0x380] sm:$0xff]
    %v271 = vld [vmem:[#allocation5 + $0x388] sm:$0xff]
    %v272 = vld [vmem:[#allocation5 + $0x390] sm:$0xff]
    %v273 = vld [vmem:[#allocation5 + $0x398] sm:$0xff]
    %v274 = vld [vmem:[#allocation5 + $0x3a0] sm:$0xff]
    %v275 = vld [vmem:[#allocation5 + $0x3a8] sm:$0xff]
    %v276 = vld [vmem:[#allocation5 + $0x3b0] sm:$0xff]
    %v277 = vld [vmem:[#allocation5 + $0x3b8] sm:$0xff]
    %v278 = vld [vmem:[#allocation5 + $0x3c0] sm:$0xff]
    %v279 = vld [vmem:[#allocation5 + $0x3c8] sm:$0xff]
    %v280 = vld [vmem:[#allocation5 + $0x3d0] sm:$0xff]
    %v281 = vld [vmem:[#allocation5 + $0x3d8] sm:$0xff]
    %v282 = vld [vmem:[#allocation5 + $0x3e0] sm:$0xff]
    %v283 = vld [vmem:[#allocation5 + $0x3e8] sm:$0xff]
    %v284 = vld [vmem:[#allocation5 + $0x3f0] sm:$0xff]
    %v285 = vld [vmem:[#allocation5 + $0x3f8] sm:$0xff]
    %v286 = vld [vmem:[#allocation5 + $0x400] sm:$0xff]
    %v287 = vld [vmem:[#allocation5 + $0x408] sm:$0xff]
    %v288 = vld [vmem:[#allocation5 + $0x410] sm:$0xff]
    %v289 = vld [vmem:[#allocation5 + $0x418] sm:$0xff]
    %v290 = vld [vmem:[#allocation5 + $0x420] sm:$0xff]
    %v291 = vld [vmem:[#allocation5 + $0x428] sm:$0xff]
    %v292 = vld [vmem:[#allocation5 + $0x430] sm:$0xff]
    %v293 = vld [vmem:[#allocation5 + $0x438] sm:$0xff]
    %v294 = vld [vmem:[#allocation5 + $0x440] sm:$0xff]
    %v295 = vld [vmem:[#allocation5 + $0x448] sm:$0xff]
    %v296 = vld [vmem:[#allocation5 + $0x450] sm:$0xff]
    %v297 = vld [vmem:[#allocation5 + $0x458] sm:$0xff]
    %v298 = vld [vmem:[#allocation5 + $0x460] sm:$0xff]
    %v299 = vld [vmem:[#allocation5 + $0x468] sm:$0xff]
    %v300 = vld [vmem:[#allocation5 + $0x470] sm:$0xff]
    %v301 = vld [vmem:[#allocation5 + $0x478] sm:$0xff]
    %v302 = vld [vmem:[#allocation5 + $0x480] sm:$0xff]
    %v303 = vld [vmem:[#allocation5 + $0x488] sm:$0xff]
    %v304 = vld [vmem:[#allocation5 + $0x490] sm:$0xff]
    %v305 = vld [vmem:[#allocation5 + $0x498] sm:$0xff]
    %v306 = vld [vmem:[#allocation5 + $0x4a0] sm:$0xff]
    %v307 = vld [vmem:[#allocation5 + $0x4a8] sm:$0xff]
    %v308 = vld [vmem:[#allocation5 + $0x4b0] sm:$0xff]
    %v309 = vld [vmem:[#allocation5 + $0x4b8] sm:$0xff]
    %v310 = vld [vmem:[#allocation5 + $0x4c0] sm:$0xff]
    %v311 = vld [vmem:[#allocation5 + $0x4c8] sm:$0xff]
    %v312 = vld [vmem:[#allocation5 + $0x4d0] sm:$0xff]
    %v313 = vld [vmem:[#allocation5 + $0x4d8] sm:$0xff]
    %v314 = vld [vmem:[#allocation5 + $0x4e0] sm:$0xff]
    %v315 = vld [vmem:[#allocation5 + $0x4e8] sm:$0xff]
    %v316 = vld [vmem:[#allocation5 + $0x4f0] sm:$0xff]
    %v317 = vld [vmem:[#allocation5 + $0x4f8] sm:$0xff]
    %v318 = vld [vmem:[#allocation5 + $0x500] sm:$0xff]
    %v319 = vld [vmem:[#allocation5 + $0x508] sm:$0xff]
    %v320 = vld [vmem:[#allocation5 + $0x510] sm:$0xff]
    %v321 = vld [vmem:[#allocation5 + $0x518] sm:$0xff]
    %v322 = vld [vmem:[#allocation5 + $0x520] sm:$0xff]
    %v323 = vld [vmem:[#allocation5 + $0x528] sm:$0xff]
    %v324 = vld [vmem:[#allocation5 + $0x530] sm:$0xff]
    %v325 = vld [vmem:[#allocation5 + $0x538] sm:$0xff]
    %v326 = vld [vmem:[#allocation5 + $0x540] sm:$0xff]
    %v327 = vld [vmem:[#allocation5 + $0x548] sm:$0xff]
    %v328 = vld [vmem:[#allocation5 + $0x550] sm:$0xff]
    %v329 = vld [vmem:[#allocation5 + $0x558] sm:$0xff]
    %v330 = vld [vmem:[#allocation5 + $0x560] sm:$0xff]
    %v331 = vld [vmem:[#allocation5 + $0x568] sm:$0xff]
    %v332 = vld [vmem:[#allocation5 + $0x570] sm:$0xff]
    %v333 = vld [vmem:[#allocation5 + $0x578] sm:$0xff]
    %v334 = vld [vmem:[#allocation5 + $0x580] sm:$0xff]
    %v335 = vld [vmem:[#allocation5 + $0x588] sm:$0xff]
    %v336 = vld [vmem:[#allocation5 + $0x590] sm:$0xff]
    %v337 = vld [vmem:[#allocation5 + $0x598] sm:$0xff]
    %v338 = vld [vmem:[#allocation5 + $0x5a0] sm:$0xff]
    %v339 = vld [vmem:[#allocation5 + $0x5a8] sm:$0xff]
    %v340 = vld [vmem:[#allocation5 + $0x5b0] sm:$0xff]
    %v341 = vld [vmem:[#allocation5 + $0x5b8] sm:$0xff]
    %v342 = vld [vmem:[#allocation5 + $0x5c0] sm:$0xff]
    %v343 = vld [vmem:[#allocation5 + $0x5c8] sm:$0xff]
    %v344 = vld [vmem:[#allocation5 + $0x5d0] sm:$0xff]
    %v345 = vld [vmem:[#allocation5 + $0x5d8] sm:$0xff]
    %v346 = vld [vmem:[#allocation5 + $0x5e0] sm:$0xff]
    %v347 = vld [vmem:[#allocation5 + $0x5e8] sm:$0xff]
    %v348 = vld [vmem:[#allocation5 + $0x5f0] sm:$0xff]
    %v349 = vld [vmem:[#allocation5 + $0x5f8] sm:$0xff]
    %v350 = vld [vmem:[#allocation5 + $0x600] sm:$0xff]
    %v351 = vld [vmem:[#allocation5 + $0x608] sm:$0xff]
    %v352 = vld [vmem:[#allocation5 + $0x610] sm:$0xff]
    %v353 = vld [vmem:[#allocation5 + $0x618] sm:$0xff]
    %v354 = vld [vmem:[#allocation5 + $0x620] sm:$0xff]
    %v355 = vld [vmem:[#allocation5 + $0x628] sm:$0xff]
    %v356 = vld [vmem:[#allocation5 + $0x630] sm:$0xff]
    %v357 = vld [vmem:[#allocation5 + $0x638] sm:$0xff]
    %v358 = vld [vmem:[#allocation5 + $0x640] sm:$0xff]
    %v359 = vld [vmem:[#allocation5 + $0x648] sm:$0xff]
    %v360 = vld [vmem:[#allocation5 + $0x650] sm:$0xff]
    %v361 = vld [vmem:[#allocation5 + $0x658] sm:$0xff]
    %v362 = vld [vmem:[#allocation5 + $0x660] sm:$0xff]
    %v363 = vld [vmem:[#allocation5 + $0x668] sm:$0xff]
    %v364 = vld [vmem:[#allocation5 + $0x670] sm:$0xff]
    %v365 = vld [vmem:[#allocation5 + $0x678] sm:$0xff]
    %v366 = vld [vmem:[#allocation5 + $0x680] sm:$0xff]
    %v367 = vld [vmem:[#allocation5 + $0x688] sm:$0xff]
    %v368 = vld [vmem:[#allocation5 + $0x690] sm:$0xff]
    %v369 = vld [vmem:[#allocation5 + $0x698] sm:$0xff]
    %v370 = vld [vmem:[#allocation5 + $0x6a0] sm:$0xff]
    %v371 = vld [vmem:[#allocation5 + $0x6a8] sm:$0xff]
    %v372 = vld [vmem:[#allocation5 + $0x6b0] sm:$0xff]
    %v373 = vld [vmem:[#allocation5 + $0x6b8] sm:$0xff]
    %v374 = vld [vmem:[#allocation5 + $0x6c0] sm:$0xff]
    %v375 = vld [vmem:[#allocation5 + $0x6c8] sm:$0xff]
    %v376 = vld [vmem:[#allocation5 + $0x6d0] sm:$0xff]
    %v377 = vld [vmem:[#allocation5 + $0x6d8] sm:$0xff]
    %v378 = vld [vmem:[#allocation5 + $0x6e0] sm:$0xff]
    %v379 = vld [vmem:[#allocation5 + $0x6e8] sm:$0xff]
    %v380 = vld [vmem:[#allocation5 + $0x6f0] sm:$0xff]
    %v381 = vld [vmem:[#allocation5 + $0x6f8] sm:$0xff]
    %v382 = vld [vmem:[#allocation7] sm:$0xf]
    %v384 = vlaneseq
    %v385 = vshrl.u32 %v384, 7
    %v386 = vsub.s32 0, %v385
    %v387 = vrot.slane %v382, %v386
    %v388 = vlaneseq
    %v389 = vshrl.u32 %v388, 7
    %v390 = vsub.s32 1, %v389
    %v391 = vrot.slane %v382, %v390
    %v392 = vlaneseq
    %v393 = vshrl.u32 %v392, 7
    %v394 = vsub.s32 2, %v393
    %v395 = vrot.slane %v382, %v394
    %v396 = vlaneseq
    %v397 = vshrl.u32 %v396, 7
    %v398 = vsub.s32 3, %v397
    %v399 = vrot.slane %v382, %v398
    %v468 = vunpack.c.l.b16 %v94
    %v469 = vunpack.c.h.b16 %v94
    %v470 = vunpack.c.l.b16 %v95
    %v471 = vunpack.c.h.b16 %v95
    %v472 = vunpack.c.l.b16 %v96
    %v473 = vunpack.c.h.b16 %v96
    %v474 = vunpack.c.l.b16 %v97
    %v475 = vunpack.c.l.b16 %v98
    %v476 = vunpack.c.h.b16 %v98
    %v477 = vunpack.c.l.b16 %v99
    %v478 = vunpack.c.h.b16 %v99
    %v479 = vunpack.c.l.b16 %v100
    %v480 = vunpack.c.h.b16 %v100
    %v481 = vunpack.c.l.b16 %v101
    %v482 = vunpack.c.l.b16 %v102
    %v483 = vunpack.c.h.b16 %v102
    %v484 = vunpack.c.l.b16 %v103
    %v485 = vunpack.c.h.b16 %v103
    %v486 = vunpack.c.l.b16 %v104
    %v487 = vunpack.c.h.b16 %v104
    %v488 = vunpack.c.l.b16 %v105
    %v489 = vunpack.c.l.b16 %v106
    %v490 = vunpack.c.h.b16 %v106
    %v491 = vunpack.c.l.b16 %v107
    %v492 = vunpack.c.h.b16 %v107
    %v493 = vunpack.c.l.b16 %v108
    %v494 = vunpack.c.h.b16 %v108
    %v495 = vunpack.c.l.b16 %v109
    %v496 = vunpack.c.l.b16 %v110
    %v497 = vunpack.c.h.b16 %v110
    %v498 = vunpack.c.l.b16 %v111
    %v499 = vunpack.c.h.b16 %v111
    %v500 = vunpack.c.l.b16 %v112
    %v501 = vunpack.c.h.b16 %v112
    %v502 = vunpack.c.l.b16 %v113
    %v503 = vunpack.c.l.b16 %v114
    %v504 = vunpack.c.h.b16 %v114
    %v505 = vunpack.c.l.b16 %v115
    %v506 = vunpack.c.h.b16 %v115
    %v507 = vunpack.c.l.b16 %v116
    %v508 = vunpack.c.h.b16 %v116
    %v509 = vunpack.c.l.b16 %v117
    %v510 = vunpack.c.l.b16 %v118
    %v511 = vunpack.c.h.b16 %v118
    %v512 = vunpack.c.l.b16 %v119
    %v513 = vunpack.c.h.b16 %v119
    %v514 = vunpack.c.l.b16 %v120
    %v515 = vunpack.c.h.b16 %v120
    %v516 = vunpack.c.l.b16 %v121
    %v517 = vunpack.c.l.b16 %v122
    %v518 = vunpack.c.h.b16 %v122
    %v519 = vunpack.c.l.b16 %v123
    %v520 = vunpack.c.h.b16 %v123
    %v521 = vunpack.c.l.b16 %v124
    %v522 = vunpack.c.h.b16 %v124
    %v523 = vunpack.c.l.b16 %v125
    %v524 = vunpack.c.l.b16 %v126
    %v525 = vunpack.c.h.b16 %v126
    %v526 = vunpack.c.l.b16 %v127
    %v527 = vunpack.c.h.b16 %v127
    %v528 = vunpack.c.l.b16 %v128
    %v529 = vunpack.c.h.b16 %v128
    %v530 = vunpack.c.l.b16 %v129
    %v531 = vunpack.c.l.b16 %v130
    %v532 = vunpack.c.h.b16 %v130
    %v533 = vunpack.c.l.b16 %v131
    %v534 = vunpack.c.h.b16 %v131
    %v535 = vunpack.c.l.b16 %v132
    %v536 = vunpack.c.h.b16 %v132
    %v537 = vunpack.c.l.b16 %v133
    %v538 = vunpack.c.l.b16 %v134
    %v539 = vunpack.c.h.b16 %v134
    %v540 = vunpack.c.l.b16 %v135
    %v541 = vunpack.c.h.b16 %v135
    %v542 = vunpack.c.l.b16 %v136
    %v543 = vunpack.c.h.b16 %v136
    %v544 = vunpack.c.l.b16 %v137
    %v545 = vunpack.c.l.b16 %v138
    %v546 = vunpack.c.h.b16 %v138
    %v547 = vunpack.c.l.b16 %v139
    %v548 = vunpack.c.h.b16 %v139
    %v549 = vunpack.c.l.b16 %v140
    %v550 = vunpack.c.h.b16 %v140
    %v551 = vunpack.c.l.b16 %v141
    %v552 = vunpack.c.l.b16 %v142
    %v553 = vunpack.c.h.b16 %v142
    %v554 = vunpack.c.l.b16 %v143
    %v555 = vunpack.c.h.b16 %v143
    %v556 = vunpack.c.l.b16 %v144
    %v557 = vunpack.c.h.b16 %v144
    %v558 = vunpack.c.l.b16 %v145
    %v559 = vunpack.c.l.b16 %v146
    %v560 = vunpack.c.h.b16 %v146
    %v561 = vunpack.c.l.b16 %v147
    %v562 = vunpack.c.h.b16 %v147
    %v563 = vunpack.c.l.b16 %v148
    %v564 = vunpack.c.h.b16 %v148
    %v565 = vunpack.c.l.b16 %v149
    %v566 = vunpack.c.l.b16 %v150
    %v567 = vunpack.c.h.b16 %v150
    %v568 = vunpack.c.l.b16 %v151
    %v569 = vunpack.c.h.b16 %v151
    %v570 = vunpack.c.l.b16 %v152
    %v571 = vunpack.c.h.b16 %v152
    %v572 = vunpack.c.l.b16 %v153
    %v573 = vunpack.c.l.b16 %v154
    %v574 = vunpack.c.h.b16 %v154
    %v575 = vunpack.c.l.b16 %v155
    %v576 = vunpack.c.h.b16 %v155
    %v577 = vunpack.c.l.b16 %v156
    %v578 = vunpack.c.h.b16 %v156
    %v579 = vunpack.c.l.b16 %v157
    %v580 = vpack.c.b16 %v475, %v468
    %v581 = vpack.c.b16 %v476, %v469
    %v582 = vpack.c.b16 %v477, %v470
    %v583 = vpack.c.b16 %v478, %v471
    %v584 = vpack.c.b16 %v479, %v472
    %v585 = vpack.c.b16 %v480, %v473
    %v586 = vpack.c.b16 %v481, %v474
    %v587 = vpack.c.b16 %v489, %v482
    %v588 = vpack.c.b16 %v490, %v483
    %v589 = vpack.c.b16 %v491, %v484
    %v590 = vpack.c.b16 %v492, %v485
    %v591 = vpack.c.b16 %v493, %v486
    %v592 = vpack.c.b16 %v494, %v487
    %v593 = vpack.c.b16 %v495, %v488
    %v594 = vpack.c.b16 %v503, %v496
    %v595 = vpack.c.b16 %v504, %v497
    %v596 = vpack.c.b16 %v505, %v498
    %v597 = vpack.c.b16 %v506, %v499
    %v598 = vpack.c.b16 %v507, %v500
    %v599 = vpack.c.b16 %v508, %v501
    %v600 = vpack.c.b16 %v509, %v502
    %v601 = vpack.c.b16 %v517, %v510
    %v602 = vpack.c.b16 %v518, %v511
    %v603 = vpack.c.b16 %v519, %v512
    %v604 = vpack.c.b16 %v520, %v513
    %v605 = vpack.c.b16 %v521, %v514
    %v606 = vpack.c.b16 %v522, %v515
    %v607 = vpack.c.b16 %v523, %v516
    %v608 = vpack.c.b16 %v531, %v524
    %v609 = vpack.c.b16 %v532, %v525
    %v610 = vpack.c.b16 %v533, %v526
    %v611 = vpack.c.b16 %v534, %v527
    %v612 = vpack.c.b16 %v535, %v528
    %v613 = vpack.c.b16 %v536, %v529
    %v614 = vpack.c.b16 %v537, %v530
    %v615 = vpack.c.b16 %v545, %v538
    %v616 = vpack.c.b16 %v546, %v539
    %v617 = vpack.c.b16 %v547, %v540
    %v618 = vpack.c.b16 %v548, %v541
    %v619 = vpack.c.b16 %v549, %v542
    %v620 = vpack.c.b16 %v550, %v543
    %v621 = vpack.c.b16 %v551, %v544
    %v622 = vpack.c.b16 %v559, %v552
    %v623 = vpack.c.b16 %v560, %v553
    %v624 = vpack.c.b16 %v561, %v554
    %v625 = vpack.c.b16 %v562, %v555
    %v626 = vpack.c.b16 %v563, %v556
    %v627 = vpack.c.b16 %v564, %v557
    %v628 = vpack.c.b16 %v565, %v558
    %v629 = vpack.c.b16 %v573, %v566
    %v630 = vpack.c.b16 %v574, %v567
    %v631 = vpack.c.b16 %v575, %v568
    %v632 = vpack.c.b16 %v576, %v569
    %v633 = vpack.c.b16 %v577, %v570
    %v634 = vpack.c.b16 %v578, %v571
    %v635 = vpack.c.b16 %v579, %v572
    %v916 = vunpack.c.l.b16 %v158
    %v917 = vunpack.c.h.b16 %v158
    %v918 = vunpack.c.l.b16 %v159
    %v919 = vunpack.c.h.b16 %v159
    %v920 = vunpack.c.l.b16 %v160
    %v921 = vunpack.c.h.b16 %v160
    %v922 = vunpack.c.l.b16 %v161
    %v923 = vunpack.c.h.b16 %v161
    %v924 = vunpack.c.l.b16 %v162
    %v925 = vunpack.c.h.b16 %v162
    %v926 = vunpack.c.l.b16 %v163
    %v927 = vunpack.c.h.b16 %v163
    %v928 = vunpack.c.l.b16 %v164
    %v929 = vunpack.c.h.b16 %v164
    %v930 = vunpack.c.l.b16 %v165
    %v931 = vunpack.c.h.b16 %v165
    %v932 = vunpack.c.l.b16 %v166
    %v933 = vunpack.c.h.b16 %v166
    %v934 = vunpack.c.l.b16 %v167
    %v935 = vunpack.c.h.b16 %v167
    %v936 = vunpack.c.l.b16 %v168
    %v937 = vunpack.c.h.b16 %v168
    %v938 = vunpack.c.l.b16 %v169
    %v939 = vunpack.c.h.b16 %v169
    %v940 = vunpack.c.l.b16 %v170
    %v941 = vunpack.c.h.b16 %v170
    %v942 = vunpack.c.l.b16 %v171
    %v943 = vunpack.c.h.b16 %v171
    %v944 = vunpack.c.l.b16 %v172
    %v945 = vunpack.c.h.b16 %v172
    %v946 = vunpack.c.l.b16 %v173
    %v947 = vunpack.c.h.b16 %v173
    %v948 = vunpack.c.l.b16 %v174
    %v949 = vunpack.c.h.b16 %v174
    %v950 = vunpack.c.l.b16 %v175
    %v951 = vunpack.c.h.b16 %v175
    %v952 = vunpack.c.l.b16 %v176
    %v953 = vunpack.c.h.b16 %v176
    %v954 = vunpack.c.l.b16 %v177
    %v955 = vunpack.c.h.b16 %v177
    %v956 = vunpack.c.l.b16 %v178
    %v957 = vunpack.c.h.b16 %v178
    %v958 = vunpack.c.l.b16 %v179
    %v959 = vunpack.c.h.b16 %v179
    %v960 = vunpack.c.l.b16 %v180
    %v961 = vunpack.c.h.b16 %v180
    %v962 = vunpack.c.l.b16 %v181
    %v963 = vunpack.c.h.b16 %v181
    %v964 = vunpack.c.l.b16 %v182
    %v965 = vunpack.c.h.b16 %v182
    %v966 = vunpack.c.l.b16 %v183
    %v967 = vunpack.c.h.b16 %v183
    %v968 = vunpack.c.l.b16 %v184
    %v969 = vunpack.c.h.b16 %v184
    %v970 = vunpack.c.l.b16 %v185
    %v971 = vunpack.c.h.b16 %v185
    %v972 = vunpack.c.l.b16 %v186
    %v973 = vunpack.c.h.b16 %v186
    %v974 = vunpack.c.l.b16 %v187
    %v975 = vunpack.c.h.b16 %v187
    %v976 = vunpack.c.l.b16 %v188
    %v977 = vunpack.c.h.b16 %v188
    %v978 = vunpack.c.l.b16 %v189
    %v979 = vunpack.c.h.b16 %v189
    %v980 = vunpack.c.l.b16 %v190
    %v981 = vunpack.c.h.b16 %v190
    %v982 = vunpack.c.l.b16 %v191
    %v983 = vunpack.c.h.b16 %v191
    %v984 = vunpack.c.l.b16 %v192
    %v985 = vunpack.c.h.b16 %v192
    %v986 = vunpack.c.l.b16 %v193
    %v987 = vunpack.c.h.b16 %v193
    %v988 = vunpack.c.l.b16 %v194
    %v989 = vunpack.c.h.b16 %v194
    %v990 = vunpack.c.l.b16 %v195
    %v991 = vunpack.c.h.b16 %v195
    %v992 = vunpack.c.l.b16 %v196
    %v993 = vunpack.c.h.b16 %v196
    %v994 = vunpack.c.l.b16 %v197
    %v995 = vunpack.c.h.b16 %v197
    %v996 = vunpack.c.l.b16 %v198
    %v997 = vunpack.c.h.b16 %v198
    %v998 = vunpack.c.l.b16 %v199
    %v999 = vunpack.c.h.b16 %v199
    %v1000 = vunpack.c.l.b16 %v200
    %v1001 = vunpack.c.h.b16 %v200
    %v1002 = vunpack.c.l.b16 %v201
    %v1003 = vunpack.c.h.b16 %v201
    %v1004 = vunpack.c.l.b16 %v202
    %v1005 = vunpack.c.h.b16 %v202
    %v1006 = vunpack.c.l.b16 %v203
    %v1007 = vunpack.c.h.b16 %v203
    %v1008 = vunpack.c.l.b16 %v204
    %v1009 = vunpack.c.h.b16 %v204
    %v1010 = vunpack.c.l.b16 %v205
    %v1011 = vunpack.c.h.b16 %v205
    %v1012 = vunpack.c.l.b16 %v206
    %v1013 = vunpack.c.h.b16 %v206
    %v1014 = vunpack.c.l.b16 %v207
    %v1015 = vunpack.c.h.b16 %v207
    %v1016 = vunpack.c.l.b16 %v208
    %v1017 = vunpack.c.h.b16 %v208
    %v1018 = vunpack.c.l.b16 %v209
    %v1019 = vunpack.c.h.b16 %v209
    %v1020 = vunpack.c.l.b16 %v210
    %v1021 = vunpack.c.h.b16 %v210
    %v1022 = vunpack.c.l.b16 %v211
    %v1023 = vunpack.c.h.b16 %v211
    %v1024 = vunpack.c.l.b16 %v212
    %v1025 = vunpack.c.h.b16 %v212
    %v1026 = vunpack.c.l.b16 %v213
    %v1027 = vunpack.c.h.b16 %v213
    %v1028 = vunpack.c.l.b16 %v214
    %v1029 = vunpack.c.h.b16 %v214
    %v1030 = vunpack.c.l.b16 %v215
    %v1031 = vunpack.c.h.b16 %v215
    %v1032 = vunpack.c.l.b16 %v216
    %v1033 = vunpack.c.h.b16 %v216
    %v1034 = vunpack.c.l.b16 %v217
    %v1035 = vunpack.c.h.b16 %v217
    %v1036 = vunpack.c.l.b16 %v218
    %v1037 = vunpack.c.h.b16 %v218
    %v1038 = vunpack.c.l.b16 %v219
    %v1039 = vunpack.c.h.b16 %v219
    %v1040 = vunpack.c.l.b16 %v220
    %v1041 = vunpack.c.h.b16 %v220
    %v1042 = vunpack.c.l.b16 %v221
    %v1043 = vunpack.c.h.b16 %v221
    %v1044 = vunpack.c.l.b16 %v222
    %v1045 = vunpack.c.h.b16 %v222
    %v1046 = vunpack.c.l.b16 %v223
    %v1047 = vunpack.c.h.b16 %v223
    %v1048 = vunpack.c.l.b16 %v224
    %v1049 = vunpack.c.h.b16 %v224
    %v1050 = vunpack.c.l.b16 %v225
    %v1051 = vunpack.c.h.b16 %v225
    %v1052 = vunpack.c.l.b16 %v226
    %v1053 = vunpack.c.h.b16 %v226
    %v1054 = vunpack.c.l.b16 %v227
    %v1055 = vunpack.c.h.b16 %v227
    %v1056 = vunpack.c.l.b16 %v228
    %v1057 = vunpack.c.h.b16 %v228
    %v1058 = vunpack.c.l.b16 %v229
    %v1059 = vunpack.c.h.b16 %v229
    %v1060 = vunpack.c.l.b16 %v230
    %v1061 = vunpack.c.h.b16 %v230
    %v1062 = vunpack.c.l.b16 %v231
    %v1063 = vunpack.c.h.b16 %v231
    %v1064 = vunpack.c.l.b16 %v232
    %v1065 = vunpack.c.h.b16 %v232
    %v1066 = vunpack.c.l.b16 %v233
    %v1067 = vunpack.c.h.b16 %v233
    %v1068 = vunpack.c.l.b16 %v234
    %v1069 = vunpack.c.h.b16 %v234
    %v1070 = vunpack.c.l.b16 %v235
    %v1071 = vunpack.c.h.b16 %v235
    %v1072 = vunpack.c.l.b16 %v236
    %v1073 = vunpack.c.h.b16 %v236
    %v1074 = vunpack.c.l.b16 %v237
    %v1075 = vunpack.c.h.b16 %v237
    %v1076 = vunpack.c.l.b16 %v238
    %v1077 = vunpack.c.h.b16 %v238
    %v1078 = vunpack.c.l.b16 %v239
    %v1079 = vunpack.c.h.b16 %v239
    %v1080 = vunpack.c.l.b16 %v240
    %v1081 = vunpack.c.h.b16 %v240
    %v1082 = vunpack.c.l.b16 %v241
    %v1083 = vunpack.c.h.b16 %v241
    %v1084 = vunpack.c.l.b16 %v242
    %v1085 = vunpack.c.h.b16 %v242
    %v1086 = vunpack.c.l.b16 %v243
    %v1087 = vunpack.c.h.b16 %v243
    %v1088 = vunpack.c.l.b16 %v244
    %v1089 = vunpack.c.h.b16 %v244
    %v1090 = vunpack.c.l.b16 %v245
    %v1091 = vunpack.c.h.b16 %v245
    %v1092 = vunpack.c.l.b16 %v246
    %v1093 = vunpack.c.h.b16 %v246
    %v1094 = vunpack.c.l.b16 %v247
    %v1095 = vunpack.c.h.b16 %v247
    %v1096 = vunpack.c.l.b16 %v248
    %v1097 = vunpack.c.h.b16 %v248
    %v1098 = vunpack.c.l.b16 %v249
    %v1099 = vunpack.c.h.b16 %v249
    %v1100 = vunpack.c.l.b16 %v250
    %v1101 = vunpack.c.h.b16 %v250
    %v1102 = vunpack.c.l.b16 %v251
    %v1103 = vunpack.c.h.b16 %v251
    %v1104 = vunpack.c.l.b16 %v252
    %v1105 = vunpack.c.h.b16 %v252
    %v1106 = vunpack.c.l.b16 %v253
    %v1107 = vunpack.c.h.b16 %v253
    %v1108 = vunpack.c.l.b16 %v254
    %v1109 = vunpack.c.h.b16 %v254
    %v1110 = vunpack.c.l.b16 %v255
    %v1111 = vunpack.c.h.b16 %v255
    %v1112 = vunpack.c.l.b16 %v256
    %v1113 = vunpack.c.h.b16 %v256
    %v1114 = vunpack.c.l.b16 %v257
    %v1115 = vunpack.c.h.b16 %v257
    %v1116 = vunpack.c.l.b16 %v258
    %v1117 = vunpack.c.h.b16 %v258
    %v1118 = vunpack.c.l.b16 %v259
    %v1119 = vunpack.c.h.b16 %v259
    %v1120 = vunpack.c.l.b16 %v260
    %v1121 = vunpack.c.h.b16 %v260
    %v1122 = vunpack.c.l.b16 %v261
    %v1123 = vunpack.c.h.b16 %v261
    %v1124 = vunpack.c.l.b16 %v262
    %v1125 = vunpack.c.h.b16 %v262
    %v1126 = vunpack.c.l.b16 %v263
    %v1127 = vunpack.c.h.b16 %v263
    %v1128 = vunpack.c.l.b16 %v264
    %v1129 = vunpack.c.h.b16 %v264
    %v1130 = vunpack.c.l.b16 %v265
    %v1131 = vunpack.c.h.b16 %v265
    %v1132 = vunpack.c.l.b16 %v266
    %v1133 = vunpack.c.h.b16 %v266
    %v1134 = vunpack.c.l.b16 %v267
    %v1135 = vunpack.c.h.b16 %v267
    %v1136 = vunpack.c.l.b16 %v268
    %v1137 = vunpack.c.h.b16 %v268
    %v1138 = vunpack.c.l.b16 %v269
    %v1139 = vunpack.c.h.b16 %v269
    %v1140 = vunpack.c.l.b16 %v270
    %v1141 = vunpack.c.h.b16 %v270
    %v1142 = vunpack.c.l.b16 %v271
    %v1143 = vunpack.c.h.b16 %v271
    %v1144 = vunpack.c.l.b16 %v272
    %v1145 = vunpack.c.h.b16 %v272
    %v1146 = vunpack.c.l.b16 %v273
    %v1147 = vunpack.c.h.b16 %v273
    %v1148 = vunpack.c.l.b16 %v274
    %v1149 = vunpack.c.h.b16 %v274
    %v1150 = vunpack.c.l.b16 %v275
    %v1151 = vunpack.c.h.b16 %v275
    %v1152 = vunpack.c.l.b16 %v276
    %v1153 = vunpack.c.h.b16 %v276
    %v1154 = vunpack.c.l.b16 %v277
    %v1155 = vunpack.c.h.b16 %v277
    %v1156 = vunpack.c.l.b16 %v278
    %v1157 = vunpack.c.h.b16 %v278
    %v1158 = vunpack.c.l.b16 %v279
    %v1159 = vunpack.c.h.b16 %v279
    %v1160 = vunpack.c.l.b16 %v280
    %v1161 = vunpack.c.h.b16 %v280
    %v1162 = vunpack.c.l.b16 %v281
    %v1163 = vunpack.c.h.b16 %v281
    %v1164 = vunpack.c.l.b16 %v282
    %v1165 = vunpack.c.h.b16 %v282
    %v1166 = vunpack.c.l.b16 %v283
    %v1167 = vunpack.c.h.b16 %v283
    %v1168 = vunpack.c.l.b16 %v284
    %v1169 = vunpack.c.h.b16 %v284
    %v1170 = vunpack.c.l.b16 %v285
    %v1171 = vunpack.c.h.b16 %v285
    %v1172 = vunpack.c.l.b16 %v286
    %v1173 = vunpack.c.h.b16 %v286
    %v1174 = vunpack.c.l.b16 %v287
    %v1175 = vunpack.c.h.b16 %v287
    %v1176 = vunpack.c.l.b16 %v288
    %v1177 = vunpack.c.h.b16 %v288
    %v1178 = vunpack.c.l.b16 %v289
    %v1179 = vunpack.c.h.b16 %v289
    %v1180 = vunpack.c.l.b16 %v290
    %v1181 = vunpack.c.h.b16 %v290
    %v1182 = vunpack.c.l.b16 %v291
    %v1183 = vunpack.c.h.b16 %v291
    %v1184 = vunpack.c.l.b16 %v292
    %v1185 = vunpack.c.h.b16 %v292
    %v1186 = vunpack.c.l.b16 %v293
    %v1187 = vunpack.c.h.b16 %v293
    %v1188 = vunpack.c.l.b16 %v294
    %v1189 = vunpack.c.h.b16 %v294
    %v1190 = vunpack.c.l.b16 %v295
    %v1191 = vunpack.c.h.b16 %v295
    %v1192 = vunpack.c.l.b16 %v296
    %v1193 = vunpack.c.h.b16 %v296
    %v1194 = vunpack.c.l.b16 %v297
    %v1195 = vunpack.c.h.b16 %v297
    %v1196 = vunpack.c.l.b16 %v298
    %v1197 = vunpack.c.h.b16 %v298
    %v1198 = vunpack.c.l.b16 %v299
    %v1199 = vunpack.c.h.b16 %v299
    %v1200 = vunpack.c.l.b16 %v300
    %v1201 = vunpack.c.h.b16 %v300
    %v1202 = vunpack.c.l.b16 %v301
    %v1203 = vunpack.c.h.b16 %v301
    %v1204 = vunpack.c.l.b16 %v302
    %v1205 = vunpack.c.h.b16 %v302
    %v1206 = vunpack.c.l.b16 %v303
    %v1207 = vunpack.c.h.b16 %v303
    %v1208 = vunpack.c.l.b16 %v304
    %v1209 = vunpack.c.h.b16 %v304
    %v1210 = vunpack.c.l.b16 %v305
    %v1211 = vunpack.c.h.b16 %v305
    %v1212 = vunpack.c.l.b16 %v306
    %v1213 = vunpack.c.h.b16 %v306
    %v1214 = vunpack.c.l.b16 %v307
    %v1215 = vunpack.c.h.b16 %v307
    %v1216 = vunpack.c.l.b16 %v308
    %v1217 = vunpack.c.h.b16 %v308
    %v1218 = vunpack.c.l.b16 %v309
    %v1219 = vunpack.c.h.b16 %v309
    %v1220 = vunpack.c.l.b16 %v310
    %v1221 = vunpack.c.h.b16 %v310
    %v1222 = vunpack.c.l.b16 %v311
    %v1223 = vunpack.c.h.b16 %v311
    %v1224 = vunpack.c.l.b16 %v312
    %v1225 = vunpack.c.h.b16 %v312
    %v1226 = vunpack.c.l.b16 %v313
    %v1227 = vunpack.c.h.b16 %v313
    %v1228 = vunpack.c.l.b16 %v314
    %v1229 = vunpack.c.h.b16 %v314
    %v1230 = vunpack.c.l.b16 %v315
    %v1231 = vunpack.c.h.b16 %v315
    %v1232 = vunpack.c.l.b16 %v316
    %v1233 = vunpack.c.h.b16 %v316
    %v1234 = vunpack.c.l.b16 %v317
    %v1235 = vunpack.c.h.b16 %v317
    %v1236 = vunpack.c.l.b16 %v318
    %v1237 = vunpack.c.h.b16 %v318
    %v1238 = vunpack.c.l.b16 %v319
    %v1239 = vunpack.c.h.b16 %v319
    %v1240 = vunpack.c.l.b16 %v320
    %v1241 = vunpack.c.h.b16 %v320
    %v1242 = vunpack.c.l.b16 %v321
    %v1243 = vunpack.c.h.b16 %v321
    %v1244 = vunpack.c.l.b16 %v322
    %v1245 = vunpack.c.h.b16 %v322
    %v1246 = vunpack.c.l.b16 %v323
    %v1247 = vunpack.c.h.b16 %v323
    %v1248 = vunpack.c.l.b16 %v324
    %v1249 = vunpack.c.h.b16 %v324
    %v1250 = vunpack.c.l.b16 %v325
    %v1251 = vunpack.c.h.b16 %v325
    %v1252 = vunpack.c.l.b16 %v326
    %v1253 = vunpack.c.h.b16 %v326
    %v1254 = vunpack.c.l.b16 %v327
    %v1255 = vunpack.c.h.b16 %v327
    %v1256 = vunpack.c.l.b16 %v328
    %v1257 = vunpack.c.h.b16 %v328
    %v1258 = vunpack.c.l.b16 %v329
    %v1259 = vunpack.c.h.b16 %v329
    %v1260 = vunpack.c.l.b16 %v330
    %v1261 = vunpack.c.h.b16 %v330
    %v1262 = vunpack.c.l.b16 %v331
    %v1263 = vunpack.c.h.b16 %v331
    %v1264 = vunpack.c.l.b16 %v332
    %v1265 = vunpack.c.h.b16 %v332
    %v1266 = vunpack.c.l.b16 %v333
    %v1267 = vunpack.c.h.b16 %v333
    %v1268 = vunpack.c.l.b16 %v334
    %v1269 = vunpack.c.h.b16 %v334
    %v1270 = vunpack.c.l.b16 %v335
    %v1271 = vunpack.c.h.b16 %v335
    %v1272 = vunpack.c.l.b16 %v336
    %v1273 = vunpack.c.h.b16 %v336
    %v1274 = vunpack.c.l.b16 %v337
    %v1275 = vunpack.c.h.b16 %v337
    %v1276 = vunpack.c.l.b16 %v338
    %v1277 = vunpack.c.h.b16 %v338
    %v1278 = vunpack.c.l.b16 %v339
    %v1279 = vunpack.c.h.b16 %v339
    %v1280 = vunpack.c.l.b16 %v340
    %v1281 = vunpack.c.h.b16 %v340
    %v1282 = vunpack.c.l.b16 %v341
    %v1283 = vunpack.c.h.b16 %v341
    %v1284 = vunpack.c.l.b16 %v342
    %v1285 = vunpack.c.h.b16 %v342
    %v1286 = vunpack.c.l.b16 %v343
    %v1287 = vunpack.c.h.b16 %v343
    %v1288 = vunpack.c.l.b16 %v344
    %v1289 = vunpack.c.h.b16 %v344
    %v1290 = vunpack.c.l.b16 %v345
    %v1291 = vunpack.c.h.b16 %v345
    %v1292 = vunpack.c.l.b16 %v346
    %v1293 = vunpack.c.h.b16 %v346
    %v1294 = vunpack.c.l.b16 %v347
    %v1295 = vunpack.c.h.b16 %v347
    %v1296 = vunpack.c.l.b16 %v348
    %v1297 = vunpack.c.h.b16 %v348
    %v1298 = vunpack.c.l.b16 %v349
    %v1299 = vunpack.c.h.b16 %v349
    %v1300 = vunpack.c.l.b16 %v350
    %v1301 = vunpack.c.h.b16 %v350
    %v1302 = vunpack.c.l.b16 %v351
    %v1303 = vunpack.c.h.b16 %v351
    %v1304 = vunpack.c.l.b16 %v352
    %v1305 = vunpack.c.h.b16 %v352
    %v1306 = vunpack.c.l.b16 %v353
    %v1307 = vunpack.c.h.b16 %v353
    %v1308 = vunpack.c.l.b16 %v354
    %v1309 = vunpack.c.h.b16 %v354
    %v1310 = vunpack.c.l.b16 %v355
    %v1311 = vunpack.c.h.b16 %v355
    %v1312 = vunpack.c.l.b16 %v356
    %v1313 = vunpack.c.h.b16 %v356
    %v1314 = vunpack.c.l.b16 %v357
    %v1315 = vunpack.c.h.b16 %v357
    %v1316 = vunpack.c.l.b16 %v358
    %v1317 = vunpack.c.h.b16 %v358
    %v1318 = vunpack.c.l.b16 %v359
    %v1319 = vunpack.c.h.b16 %v359
    %v1320 = vunpack.c.l.b16 %v360
    %v1321 = vunpack.c.h.b16 %v360
    %v1322 = vunpack.c.l.b16 %v361
    %v1323 = vunpack.c.h.b16 %v361
    %v1324 = vunpack.c.l.b16 %v362
    %v1325 = vunpack.c.h.b16 %v362
    %v1326 = vunpack.c.l.b16 %v363
    %v1327 = vunpack.c.h.b16 %v363
    %v1328 = vunpack.c.l.b16 %v364
    %v1329 = vunpack.c.h.b16 %v364
    %v1330 = vunpack.c.l.b16 %v365
    %v1331 = vunpack.c.h.b16 %v365
    %v1332 = vunpack.c.l.b16 %v366
    %v1333 = vunpack.c.h.b16 %v366
    %v1334 = vunpack.c.l.b16 %v367
    %v1335 = vunpack.c.h.b16 %v367
    %v1336 = vunpack.c.l.b16 %v368
    %v1337 = vunpack.c.h.b16 %v368
    %v1338 = vunpack.c.l.b16 %v369
    %v1339 = vunpack.c.h.b16 %v369
    %v1340 = vunpack.c.l.b16 %v370
    %v1341 = vunpack.c.h.b16 %v370
    %v1342 = vunpack.c.l.b16 %v371
    %v1343 = vunpack.c.h.b16 %v371
    %v1344 = vunpack.c.l.b16 %v372
    %v1345 = vunpack.c.h.b16 %v372
    %v1346 = vunpack.c.l.b16 %v373
    %v1347 = vunpack.c.h.b16 %v373
    %v1348 = vunpack.c.l.b16 %v374
    %v1349 = vunpack.c.h.b16 %v374
    %v1350 = vunpack.c.l.b16 %v375
    %v1351 = vunpack.c.h.b16 %v375
    %v1352 = vunpack.c.l.b16 %v376
    %v1353 = vunpack.c.h.b16 %v376
    %v1354 = vunpack.c.l.b16 %v377
    %v1355 = vunpack.c.h.b16 %v377
    %v1356 = vunpack.c.l.b16 %v378
    %v1357 = vunpack.c.h.b16 %v378
    %v1358 = vunpack.c.l.b16 %v379
    %v1359 = vunpack.c.h.b16 %v379
    %v1360 = vunpack.c.l.b16 %v380
    %v1361 = vunpack.c.h.b16 %v380
    %v1362 = vunpack.c.l.b16 %v381
    %v1363 = vunpack.c.h.b16 %v381
    %v1364 = vpack.c.b16 %v920, %v916
    %v1365 = vpack.c.b16 %v921, %v917
    %v1366 = vpack.c.b16 %v922, %v918
    %v1367 = vpack.c.b16 %v923, %v919
    %v1368 = vpack.c.b16 %v928, %v924
    %v1369 = vpack.c.b16 %v929, %v925
    %v1370 = vpack.c.b16 %v930, %v926
    %v1371 = vpack.c.b16 %v931, %v927
    %v1372 = vpack.c.b16 %v936, %v932
    %v1373 = vpack.c.b16 %v937, %v933
    %v1374 = vpack.c.b16 %v938, %v934
    %v1375 = vpack.c.b16 %v939, %v935
    %v1376 = vpack.c.b16 %v944, %v940
    %v1377 = vpack.c.b16 %v945, %v941
    %v1378 = vpack.c.b16 %v946, %v942
    %v1379 = vpack.c.b16 %v947, %v943
    %v1380 = vpack.c.b16 %v952, %v948
    %v1381 = vpack.c.b16 %v953, %v949
    %v1382 = vpack.c.b16 %v954, %v950
    %v1383 = vpack.c.b16 %v955, %v951
    %v1384 = vpack.c.b16 %v960, %v956
    %v1385 = vpack.c.b16 %v961, %v957
    %v1386 = vpack.c.b16 %v962, %v958
    %v1387 = vpack.c.b16 %v963, %v959
    %v1388 = vpack.c.b16 %v968, %v964
    %v1389 = vpack.c.b16 %v969, %v965
    %v1390 = vpack.c.b16 %v970, %v966
    %v1391 = vpack.c.b16 %v971, %v967
    %v1392 = vpack.c.b16 %v976, %v972
    %v1393 = vpack.c.b16 %v977, %v973
    %v1394 = vpack.c.b16 %v978, %v974
    %v1395 = vpack.c.b16 %v979, %v975
    %v1396 = vpack.c.b16 %v984, %v980
    %v1397 = vpack.c.b16 %v985, %v981
    %v1398 = vpack.c.b16 %v986, %v982
    %v1399 = vpack.c.b16 %v987, %v983
    %v1400 = vpack.c.b16 %v992, %v988
    %v1401 = vpack.c.b16 %v993, %v989
    %v1402 = vpack.c.b16 %v994, %v990
    %v1403 = vpack.c.b16 %v995, %v991
    %v1404 = vpack.c.b16 %v1000, %v996
    %v1405 = vpack.c.b16 %v1001, %v997
    %v1406 = vpack.c.b16 %v1002, %v998
    %v1407 = vpack.c.b16 %v1003, %v999
    %v1408 = vpack.c.b16 %v1008, %v1004
    %v1409 = vpack.c.b16 %v1009, %v1005
    %v1410 = vpack.c.b16 %v1010, %v1006
    %v1411 = vpack.c.b16 %v1011, %v1007
    %v1412 = vpack.c.b16 %v1016, %v1012
    %v1413 = vpack.c.b16 %v1017, %v1013
    %v1414 = vpack.c.b16 %v1018, %v1014
    %v1415 = vpack.c.b16 %v1019, %v1015
    %v1416 = vpack.c.b16 %v1024, %v1020
    %v1417 = vpack.c.b16 %v1025, %v1021
    %v1418 = vpack.c.b16 %v1026, %v1022
    %v1419 = vpack.c.b16 %v1027, %v1023
    %v1420 = vpack.c.b16 %v1032, %v1028
    %v1421 = vpack.c.b16 %v1033, %v1029
    %v1422 = vpack.c.b16 %v1034, %v1030
    %v1423 = vpack.c.b16 %v1035, %v1031
    %v1424 = vpack.c.b16 %v1040, %v1036
    %v1425 = vpack.c.b16 %v1041, %v1037
    %v1426 = vpack.c.b16 %v1042, %v1038
    %v1427 = vpack.c.b16 %v1043, %v1039
    %v1428 = vpack.c.b16 %v1048, %v1044
    %v1429 = vpack.c.b16 %v1049, %v1045
    %v1430 = vpack.c.b16 %v1050, %v1046
    %v1431 = vpack.c.b16 %v1051, %v1047
    %v1432 = vpack.c.b16 %v1056, %v1052
    %v1433 = vpack.c.b16 %v1057, %v1053
    %v1434 = vpack.c.b16 %v1058, %v1054
    %v1435 = vpack.c.b16 %v1059, %v1055
    %v1436 = vpack.c.b16 %v1064, %v1060
    %v1437 = vpack.c.b16 %v1065, %v1061
    %v1438 = vpack.c.b16 %v1066, %v1062
    %v1439 = vpack.c.b16 %v1067, %v1063
    %v1440 = vpack.c.b16 %v1072, %v1068
    %v1441 = vpack.c.b16 %v1073, %v1069
    %v1442 = vpack.c.b16 %v1074, %v1070
    %v1443 = vpack.c.b16 %v1075, %v1071
    %v1444 = vpack.c.b16 %v1080, %v1076
    %v1445 = vpack.c.b16 %v1081, %v1077
    %v1446 = vpack.c.b16 %v1082, %v1078
    %v1447 = vpack.c.b16 %v1083, %v1079
    %v1448 = vpack.c.b16 %v1088, %v1084
    %v1449 = vpack.c.b16 %v1089, %v1085
    %v1450 = vpack.c.b16 %v1090, %v1086
    %v1451 = vpack.c.b16 %v1091, %v1087
    %v1452 = vpack.c.b16 %v1096, %v1092
    %v1453 = vpack.c.b16 %v1097, %v1093
    %v1454 = vpack.c.b16 %v1098, %v1094
    %v1455 = vpack.c.b16 %v1099, %v1095
    %v1456 = vpack.c.b16 %v1104, %v1100
    %v1457 = vpack.c.b16 %v1105, %v1101
    %v1458 = vpack.c.b16 %v1106, %v1102
    %v1459 = vpack.c.b16 %v1107, %v1103
    %v1460 = vpack.c.b16 %v1112, %v1108
    %v1461 = vpack.c.b16 %v1113, %v1109
    %v1462 = vpack.c.b16 %v1114, %v1110
    %v1463 = vpack.c.b16 %v1115, %v1111
    %v1464 = vpack.c.b16 %v1120, %v1116
    %v1465 = vpack.c.b16 %v1121, %v1117
    %v1466 = vpack.c.b16 %v1122, %v1118
    %v1467 = vpack.c.b16 %v1123, %v1119
    %v1468 = vpack.c.b16 %v1128, %v1124
    %v1469 = vpack.c.b16 %v1129, %v1125
    %v1470 = vpack.c.b16 %v1130, %v1126
    %v1471 = vpack.c.b16 %v1131, %v1127
    %v1472 = vpack.c.b16 %v1136, %v1132
    %v1473 = vpack.c.b16 %v1137, %v1133
    %v1474 = vpack.c.b16 %v1138, %v1134
    %v1475 = vpack.c.b16 %v1139, %v1135
    %v1476 = vpack.c.b16 %v1144, %v1140
    %v1477 = vpack.c.b16 %v1145, %v1141
    %v1478 = vpack.c.b16 %v1146, %v1142
    %v1479 = vpack.c.b16 %v1147, %v1143
    %v1480 = vpack.c.b16 %v1152, %v1148
    %v1481 = vpack.c.b16 %v1153, %v1149
    %v1482 = vpack.c.b16 %v1154, %v1150
    %v1483 = vpack.c.b16 %v1155, %v1151
    %v1484 = vpack.c.b16 %v1160, %v1156
    %v1485 = vpack.c.b16 %v1161, %v1157
    %v1486 = vpack.c.b16 %v1162, %v1158
    %v1487 = vpack.c.b16 %v1163, %v1159
    %v1488 = vpack.c.b16 %v1168, %v1164
    %v1489 = vpack.c.b16 %v1169, %v1165
    %v1490 = vpack.c.b16 %v1170, %v1166
    %v1491 = vpack.c.b16 %v1171, %v1167
    %v1492 = vpack.c.b16 %v1176, %v1172
    %v1493 = vpack.c.b16 %v1177, %v1173
    %v1494 = vpack.c.b16 %v1178, %v1174
    %v1495 = vpack.c.b16 %v1179, %v1175
    %v1496 = vpack.c.b16 %v1184, %v1180
    %v1497 = vpack.c.b16 %v1185, %v1181
    %v1498 = vpack.c.b16 %v1186, %v1182
    %v1499 = vpack.c.b16 %v1187, %v1183
    %v1500 = vpack.c.b16 %v1192, %v1188
    %v1501 = vpack.c.b16 %v1193, %v1189
    %v1502 = vpack.c.b16 %v1194, %v1190
    %v1503 = vpack.c.b16 %v1195, %v1191
    %v1504 = vpack.c.b16 %v1200, %v1196
    %v1505 = vpack.c.b16 %v1201, %v1197
    %v1506 = vpack.c.b16 %v1202, %v1198
    %v1507 = vpack.c.b16 %v1203, %v1199
    %v1508 = vpack.c.b16 %v1208, %v1204
    %v1509 = vpack.c.b16 %v1209, %v1205
    %v1510 = vpack.c.b16 %v1210, %v1206
    %v1511 = vpack.c.b16 %v1211, %v1207
    %v1512 = vpack.c.b16 %v1216, %v1212
    %v1513 = vpack.c.b16 %v1217, %v1213
    %v1514 = vpack.c.b16 %v1218, %v1214
    %v1515 = vpack.c.b16 %v1219, %v1215
    %v1516 = vpack.c.b16 %v1224, %v1220
    %v1517 = vpack.c.b16 %v1225, %v1221
    %v1518 = vpack.c.b16 %v1226, %v1222
    %v1519 = vpack.c.b16 %v1227, %v1223
    %v1520 = vpack.c.b16 %v1232, %v1228
    %v1521 = vpack.c.b16 %v1233, %v1229
    %v1522 = vpack.c.b16 %v1234, %v1230
    %v1523 = vpack.c.b16 %v1235, %v1231
    %v1524 = vpack.c.b16 %v1240, %v1236
    %v1525 = vpack.c.b16 %v1241, %v1237
    %v1526 = vpack.c.b16 %v1242, %v1238
    %v1527 = vpack.c.b16 %v1243, %v1239
    %v1528 = vpack.c.b16 %v1248, %v1244
    %v1529 = vpack.c.b16 %v1249, %v1245
    %v1530 = vpack.c.b16 %v1250, %v1246
    %v1531 = vpack.c.b16 %v1251, %v1247
    %v1532 = vpack.c.b16 %v1256, %v1252
    %v1533 = vpack.c.b16 %v1257, %v1253
    %v1534 = vpack.c.b16 %v1258, %v1254
    %v1535 = vpack.c.b16 %v1259, %v1255
    %v1536 = vpack.c.b16 %v1264, %v1260
    %v1537 = vpack.c.b16 %v1265, %v1261
    %v1538 = vpack.c.b16 %v1266, %v1262
    %v1539 = vpack.c.b16 %v1267, %v1263
    %v1540 = vpack.c.b16 %v1272, %v1268
    %v1541 = vpack.c.b16 %v1273, %v1269
    %v1542 = vpack.c.b16 %v1274, %v1270
    %v1543 = vpack.c.b16 %v1275, %v1271
    %v1544 = vpack.c.b16 %v1280, %v1276
    %v1545 = vpack.c.b16 %v1281, %v1277
    %v1546 = vpack.c.b16 %v1282, %v1278
    %v1547 = vpack.c.b16 %v1283, %v1279
    %v1548 = vpack.c.b16 %v1288, %v1284
    %v1549 = vpack.c.b16 %v1289, %v1285
    %v1550 = vpack.c.b16 %v1290, %v1286
    %v1551 = vpack.c.b16 %v1291, %v1287
    %v1552 = vpack.c.b16 %v1296, %v1292
    %v1553 = vpack.c.b16 %v1297, %v1293
    %v1554 = vpack.c.b16 %v1298, %v1294
    %v1555 = vpack.c.b16 %v1299, %v1295
    %v1556 = vpack.c.b16 %v1304, %v1300
    %v1557 = vpack.c.b16 %v1305, %v1301
    %v1558 = vpack.c.b16 %v1306, %v1302
    %v1559 = vpack.c.b16 %v1307, %v1303
    %v1560 = vpack.c.b16 %v1312, %v1308
    %v1561 = vpack.c.b16 %v1313, %v1309
    %v1562 = vpack.c.b16 %v1314, %v1310
    %v1563 = vpack.c.b16 %v1315, %v1311
    %v1564 = vpack.c.b16 %v1320, %v1316
    %v1565 = vpack.c.b16 %v1321, %v1317
    %v1566 = vpack.c.b16 %v1322, %v1318
    %v1567 = vpack.c.b16 %v1323, %v1319
    %v1568 = vpack.c.b16 %v1328, %v1324
    %v1569 = vpack.c.b16 %v1329, %v1325
    %v1570 = vpack.c.b16 %v1330, %v1326
    %v1571 = vpack.c.b16 %v1331, %v1327
    %v1572 = vpack.c.b16 %v1336, %v1332
    %v1573 = vpack.c.b16 %v1337, %v1333
    %v1574 = vpack.c.b16 %v1338, %v1334
    %v1575 = vpack.c.b16 %v1339, %v1335
    %v1576 = vpack.c.b16 %v1344, %v1340
    %v1577 = vpack.c.b16 %v1345, %v1341
    %v1578 = vpack.c.b16 %v1346, %v1342
    %v1579 = vpack.c.b16 %v1347, %v1343
    %v1580 = vpack.c.b16 %v1352, %v1348
    %v1581 = vpack.c.b16 %v1353, %v1349
    %v1582 = vpack.c.b16 %v1354, %v1350
    %v1583 = vpack.c.b16 %v1355, %v1351
    %v1584 = vpack.c.b16 %v1360, %v1356
    %v1585 = vpack.c.b16 %v1361, %v1357
    %v1586 = vpack.c.b16 %v1362, %v1358
    %v1587 = vpack.c.b16 %v1363, %v1359
    %1812 = vmatprep.subr.bf16.mxu0 %v1393
    %1813 = vmatpush1.bf16.msra.mxu0 %v1392
    %1814 = vmatprep.subr.bf16.mxu0 %v1389
    %1815 = vmatpush1.bf16.msra.mxu0 %v1388
    %1816 = vmatprep.subr.bf16.mxu0 %v1385
    %1817 = vmatpush1.bf16.msra.mxu0 %v1384
    %1818 = vmatprep.subr.bf16.mxu0 %v1381
    %1819 = vmatpush1.bf16.msra.mxu0 %v1380
    %1820 = vmatprep.subr.bf16.mxu0 %v1377
    %1821 = vmatpush1.bf16.msra.mxu0 %v1376
    %1822 = vmatprep.subr.bf16.mxu0 %v1373
    %1823 = vmatpush1.bf16.msra.mxu0 %v1372
    %1824 = vmatprep.subr.bf16.mxu0 %v1369
    %1825 = vmatpush1.bf16.msra.mxu0 %v1368
    %1826 = vmatprep.subr.bf16.mxu0 %v1365
    %1827 = vmatpush1.bf16.msra.mxu0 %v1364
    %1828 = vmatprep.subr.bf16.mxu0 %v1425
    %1829 = vmatpush2.bf16.msra.mxu0 %v1424
    %1830 = vmatprep.subr.bf16.mxu0 %v1421
    %1831 = vmatpush2.bf16.msra.mxu0 %v1420
    %1832 = vmatprep.subr.bf16.mxu0 %v1417
    %1833 = vmatpush2.bf16.msra.mxu0 %v1416
    %1834 = vmatprep.subr.bf16.mxu0 %v1413
    %1835 = vmatpush2.bf16.msra.mxu0 %v1412
    %1836 = vmatprep.subr.bf16.mxu0 %v1409
    %1837 = vmatpush2.bf16.msra.mxu0 %v1408
    %1838 = vmatprep.subr.bf16.mxu0 %v1405
    %1839 = vmatpush2.bf16.msra.mxu0 %v1404
    %1840 = vmatprep.subr.bf16.mxu0 %v1401
    %1841 = vmatpush2.bf16.msra.mxu0 %v1400
    %1842 = vmatprep.subr.bf16.mxu0 %v1397
    %1843 = vmatpush2.bf16.msra.mxu0 %v1396
    %1844 = vmatprep.mubr.bf16.mxu0 %v581
    %1845 = vmatmul.mubr.bf16.gmra.mxu0 %v580
    %v1846 = vpop.f32.mrf.mxu0
    %v1847 = vadd.f32 %v387, %v1846
    %v1848 = vpop.f32.mrf.mxu0
    %v1849 = vadd.f32 %v391, %v1848
    %v1850 = vpop.f32.mrf.mxu0
    %v1851 = vadd.f32 %v387, %v1850
    %v1852 = vpop.f32.mrf.mxu0
    %v1853 = vadd.f32 %v391, %v1852
    %1854 = vmatprep.mubr.bf16.mxu0 %v588
    %1855 = vmatmul.mubr.bf16.gmra.mxu0 %v587
    %v1856 = vpop.f32.mrf.mxu0
    %v1857 = vadd.f32 %v387, %v1856
    %v1858 = vpop.f32.mrf.mxu0
    %v1859 = vadd.f32 %v391, %v1858
    %v1860 = vpop.f32.mrf.mxu0
    %v1861 = vadd.f32 %v387, %v1860
    %v1862 = vpop.f32.mrf.mxu0
    %v1863 = vadd.f32 %v391, %v1862
    %1864 = vmatprep.mubr.bf16.mxu0 %v595
    %1865 = vmatmul.mubr.bf16.gmra.mxu0 %v594
    %v1866 = vpop.f32.mrf.mxu0
    %v1867 = vadd.f32 %v387, %v1866
    %v1868 = vpop.f32.mrf.mxu0
    %v1869 = vadd.f32 %v391, %v1868
    %v1870 = vpop.f32.mrf.mxu0
    %v1871 = vadd.f32 %v387, %v1870
    %v1872 = vpop.f32.mrf.mxu0
    %v1873 = vadd.f32 %v391, %v1872
    %1874 = vmatprep.mubr.bf16.mxu0 %v602
    %1875 = vmatmul.mubr.bf16.gmra.mxu0 %v601
    %v1876 = vpop.f32.mrf.mxu0
    %v1877 = vadd.f32 %v387, %v1876
    %v1878 = vpop.f32.mrf.mxu0
    %v1879 = vadd.f32 %v391, %v1878
    %v1880 = vpop.f32.mrf.mxu0
    %v1881 = vadd.f32 %v387, %v1880
    %v1882 = vpop.f32.mrf.mxu0
    %v1883 = vadd.f32 %v391, %v1882
    %1884 = vmatprep.mubr.bf16.mxu0 %v609
    %1885 = vmatmul.mubr.bf16.gmra.mxu0 %v608
    %v1886 = vpop.f32.mrf.mxu0
    %v1887 = vadd.f32 %v387, %v1886
    %v1888 = vpop.f32.mrf.mxu0
    %v1889 = vadd.f32 %v391, %v1888
    %v1890 = vpop.f32.mrf.mxu0
    %v1891 = vadd.f32 %v387, %v1890
    %v1892 = vpop.f32.mrf.mxu0
    %v1893 = vadd.f32 %v391, %v1892
    %1894 = vmatprep.mubr.bf16.mxu0 %v616
    %1895 = vmatmul.mubr.bf16.gmra.mxu0 %v615
    %v1896 = vpop.f32.mrf.mxu0
    %v1897 = vadd.f32 %v387, %v1896
    %v1898 = vpop.f32.mrf.mxu0
    %v1899 = vadd.f32 %v391, %v1898
    %v1900 = vpop.f32.mrf.mxu0
    %v1901 = vadd.f32 %v387, %v1900
    %v1902 = vpop.f32.mrf.mxu0
    %v1903 = vadd.f32 %v391, %v1902
    %1904 = vmatprep.mubr.bf16.mxu0 %v623
    %1905 = vmatmul.mubr.bf16.gmra.mxu0 %v622
    %v1906 = vpop.f32.mrf.mxu0
    %v1907 = vadd.f32 %v387, %v1906
    %v1908 = vpop.f32.mrf.mxu0
    %v1909 = vadd.f32 %v391, %v1908
    %v1910 = vpop.f32.mrf.mxu0
    %v1911 = vadd.f32 %v387, %v1910
    %v1912 = vpop.f32.mrf.mxu0
    %v1913 = vadd.f32 %v391, %v1912
    %1914 = vmatprep.mubr.bf16.mxu0 %v630
    %1915 = vmatmul.mubr.bf16.gmra.mxu0 %v629
    %v1916 = vpop.f32.mrf.mxu0
    %v1917 = vadd.f32 %v387, %v1916
    %v1918 = vpop.f32.mrf.mxu0
    %v1919 = vadd.f32 %v391, %v1918
    %v1920 = vpop.f32.mrf.mxu0
    %v1921 = vadd.f32 %v387, %v1920
    %v1922 = vpop.f32.mrf.mxu0
    %v1923 = vadd.f32 %v391, %v1922
    %1924 = vdwg.mxu0
    %1925 = vmatprep.subr.bf16.mxu0 %v1457
    %1926 = vmatpush1.bf16.msra.mxu0 %v1456
    %1927 = vmatprep.subr.bf16.mxu0 %v1453
    %1928 = vmatpush1.bf16.msra.mxu0 %v1452
    %1929 = vmatprep.subr.bf16.mxu0 %v1449
    %1930 = vmatpush1.bf16.msra.mxu0 %v1448
    %1931 = vmatprep.subr.bf16.mxu0 %v1445
    %1932 = vmatpush1.bf16.msra.mxu0 %v1444
    %1933 = vmatprep.subr.bf16.mxu0 %v1441
    %1934 = vmatpush1.bf16.msra.mxu0 %v1440
    %1935 = vmatprep.subr.bf16.mxu0 %v1437
    %1936 = vmatpush1.bf16.msra.mxu0 %v1436
    %1937 = vmatprep.subr.bf16.mxu0 %v1433
    %1938 = vmatpush1.bf16.msra.mxu0 %v1432
    %1939 = vmatprep.subr.bf16.mxu0 %v1429
    %1940 = vmatpush1.bf16.msra.mxu0 %v1428
    %1941 = vmatprep.subr.bf16.mxu0 %v1489
    %1942 = vmatpush2.bf16.msra.mxu0 %v1488
    %1943 = vmatprep.subr.bf16.mxu0 %v1485
    %1944 = vmatpush2.bf16.msra.mxu0 %v1484
    %1945 = vmatprep.subr.bf16.mxu0 %v1481
    %1946 = vmatpush2.bf16.msra.mxu0 %v1480
    %1947 = vmatprep.subr.bf16.mxu0 %v1477
    %1948 = vmatpush2.bf16.msra.mxu0 %v1476
    %1949 = vmatprep.subr.bf16.mxu0 %v1473
    %1950 = vmatpush2.bf16.msra.mxu0 %v1472
    %1951 = vmatprep.subr.bf16.mxu0 %v1469
    %1952 = vmatpush2.bf16.msra.mxu0 %v1468
    %1953 = vmatprep.subr.bf16.mxu0 %v1465
    %1954 = vmatpush2.bf16.msra.mxu0 %v1464
    %1955 = vmatprep.subr.bf16.mxu0 %v1461
    %1956 = vmatpush2.bf16.msra.mxu0 %v1460
    %1957 = vmatprep.mubr.bf16.mxu0 %v583
    %1958 = vmatmul.mubr.bf16.gmra.mxu0 %v582
    %v1959 = vpop.f32.mrf.mxu0
    %v1960 = vadd.f32 %v1847, %v1959
    %v1961 = vpop.f32.mrf.mxu0
    %v1962 = vadd.f32 %v1849, %v1961
    %v1963 = vpop.f32.mrf.mxu0
    %v1964 = vadd.f32 %v1851, %v1963
    %v1965 = vpop.f32.mrf.mxu0
    %v1966 = vadd.f32 %v1853, %v1965
    %1967 = vmatprep.mubr.bf16.mxu0 %v590
    %1968 = vmatmul.mubr.bf16.gmra.mxu0 %v589
    %v1969 = vpop.f32.mrf.mxu0
    %v1970 = vadd.f32 %v1857, %v1969
    %v1971 = vpop.f32.mrf.mxu0
    %v1972 = vadd.f32 %v1859, %v1971
    %v1973 = vpop.f32.mrf.mxu0
    %v1974 = vadd.f32 %v1861, %v1973
    %v1975 = vpop.f32.mrf.mxu0
    %v1976 = vadd.f32 %v1863, %v1975
    %1977 = vmatprep.mubr.bf16.mxu0 %v597
    %1978 = vmatmul.mubr.bf16.gmra.mxu0 %v596
    %v1979 = vpop.f32.mrf.mxu0
    %v1980 = vadd.f32 %v1867, %v1979
    %v1981 = vpop.f32.mrf.mxu0
    %v1982 = vadd.f32 %v1869, %v1981
    %v1983 = vpop.f32.mrf.mxu0
    %v1984 = vadd.f32 %v1871, %v1983
    %v1985 = vpop.f32.mrf.mxu0
    %v1986 = vadd.f32 %v1873, %v1985
    %1987 = vmatprep.mubr.bf16.mxu0 %v604
    %1988 = vmatmul.mubr.bf16.gmra.mxu0 %v603
    %v1989 = vpop.f32.mrf.mxu0
    %v1990 = vadd.f32 %v1877, %v1989
    %v1991 = vpop.f32.mrf.mxu0
    %v1992 = vadd.f32 %v1879, %v1991
    %v1993 = vpop.f32.mrf.mxu0
    %v1994 = vadd.f32 %v1881, %v1993
    %v1995 = vpop.f32.mrf.mxu0
    %v1996 = vadd.f32 %v1883, %v1995
    %1997 = vmatprep.mubr.bf16.mxu0 %v611
    %1998 = vmatmul.mubr.bf16.gmra.mxu0 %v610
    %v1999 = vpop.f32.mrf.mxu0
    %v2000 = vadd.f32 %v1887, %v1999
    %v2001 = vpop.f32.mrf.mxu0
    %v2002 = vadd.f32 %v1889, %v2001
    %v2003 = vpop.f32.mrf.mxu0
    %v2004 = vadd.f32 %v1891, %v2003
    %v2005 = vpop.f32.mrf.mxu0
    %v2006 = vadd.f32 %v1893, %v2005
    %2007 = vmatprep.mubr.bf16.mxu0 %v618
    %2008 = vmatmul.mubr.bf16.gmra.mxu0 %v617
    %v2009 = vpop.f32.mrf.mxu0
    %v2010 = vadd.f32 %v1897, %v2009
    %v2011 = vpop.f32.mrf.mxu0
    %v2012 = vadd.f32 %v1899, %v2011
    %v2013 = vpop.f32.mrf.mxu0
    %v2014 = vadd.f32 %v1901, %v2013
    %v2015 = vpop.f32.mrf.mxu0
    %v2016 = vadd.f32 %v1903, %v2015
    %2017 = vmatprep.mubr.bf16.mxu0 %v625
    %2018 = vmatmul.mubr.bf16.gmra.mxu0 %v624
    %v2019 = vpop.f32.mrf.mxu0
    %v2020 = vadd.f32 %v1907, %v2019
    %v2021 = vpop.f32.mrf.mxu0
    %v2022 = vadd.f32 %v1909, %v2021
    %v2023 = vpop.f32.mrf.mxu0
    %v2024 = vadd.f32 %v1911, %v2023
    %v2025 = vpop.f32.mrf.mxu0
    %v2026 = vadd.f32 %v1913, %v2025
    %2027 = vmatprep.mubr.bf16.mxu0 %v632
    %2028 = vmatmul.mubr.bf16.gmra.mxu0 %v631
    %v2029 = vpop.f32.mrf.mxu0
    %v2030 = vadd.f32 %v1917, %v2029
    %v2031 = vpop.f32.mrf.mxu0
    %v2032 = vadd.f32 %v1919, %v2031
    %v2033 = vpop.f32.mrf.mxu0
    %v2034 = vadd.f32 %v1921, %v2033
    %v2035 = vpop.f32.mrf.mxu0
    %v2036 = vadd.f32 %v1923, %v2035
    %2037 = vdwg.mxu0
    %2038 = vmatprep.subr.bf16.mxu0 %v1521
    %2039 = vmatpush1.bf16.msra.mxu0 %v1520
    %2040 = vmatprep.subr.bf16.mxu0 %v1517
    %2041 = vmatpush1.bf16.msra.mxu0 %v1516
    %2042 = vmatprep.subr.bf16.mxu0 %v1513
    %2043 = vmatpush1.bf16.msra.mxu0 %v1512
    %2044 = vmatprep.subr.bf16.mxu0 %v1509
    %2045 = vmatpush1.bf16.msra.mxu0 %v1508
    %2046 = vmatprep.subr.bf16.mxu0 %v1505
    %2047 = vmatpush1.bf16.msra.mxu0 %v1504
    %2048 = vmatprep.subr.bf16.mxu0 %v1501
    %2049 = vmatpush1.bf16.msra.mxu0 %v1500
    %2050 = vmatprep.subr.bf16.mxu0 %v1497
    %2051 = vmatpush1.bf16.msra.mxu0 %v1496
    %2052 = vmatprep.subr.bf16.mxu0 %v1493
    %2053 = vmatpush1.bf16.msra.mxu0 %v1492
    %2054 = vmatprep.subr.bf16.mxu0 %v1553
    %2055 = vmatpush2.bf16.msra.mxu0 %v1552
    %2056 = vmatprep.subr.bf16.mxu0 %v1549
    %2057 = vmatpush2.bf16.msra.mxu0 %v1548
    %2058 = vmatprep.subr.bf16.mxu0 %v1545
    %2059 = vmatpush2.bf16.msra.mxu0 %v1544
    %2060 = vmatprep.subr.bf16.mxu0 %v1541
    %2061 = vmatpush2.bf16.msra.mxu0 %v1540
    %2062 = vmatprep.subr.bf16.mxu0 %v1537
    %2063 = vmatpush2.bf16.msra.mxu0 %v1536
    %2064 = vmatprep.subr.bf16.mxu0 %v1533
    %2065 = vmatpush2.bf16.msra.mxu0 %v1532
    %2066 = vmatprep.subr.bf16.mxu0 %v1529
    %2067 = vmatpush2.bf16.msra.mxu0 %v1528
    %2068 = vmatprep.subr.bf16.mxu0 %v1525
    %2069 = vmatpush2.bf16.msra.mxu0 %v1524
    %2070 = vmatprep.mubr.bf16.mxu0 %v585
    %2071 = vmatmul.mubr.bf16.gmra.mxu0 %v584
    %v2072 = vpop.f32.mrf.mxu0
    %v2073 = vadd.f32 %v1960, %v2072
    %v2074 = vpop.f32.mrf.mxu0
    %v2075 = vadd.f32 %v1962, %v2074
    %v2076 = vpop.f32.mrf.mxu0
    %v2077 = vadd.f32 %v1964, %v2076
    %v2078 = vpop.f32.mrf.mxu0
    %v2079 = vadd.f32 %v1966, %v2078
    %2080 = vmatprep.mubr.bf16.mxu0 %v592
    %2081 = vmatmul.mubr.bf16.gmra.mxu0 %v591
    %v2082 = vpop.f32.mrf.mxu0
    %v2083 = vadd.f32 %v1970, %v2082
    %v2084 = vpop.f32.mrf.mxu0
    %v2085 = vadd.f32 %v1972, %v2084
    %v2086 = vpop.f32.mrf.mxu0
    %v2087 = vadd.f32 %v1974, %v2086
    %v2088 = vpop.f32.mrf.mxu0
    %v2089 = vadd.f32 %v1976, %v2088
    %2090 = vmatprep.mubr.bf16.mxu0 %v599
    %2091 = vmatmul.mubr.bf16.gmra.mxu0 %v598
    %v2092 = vpop.f32.mrf.mxu0
    %v2093 = vadd.f32 %v1980, %v2092
    %v2094 = vpop.f32.mrf.mxu0
    %v2095 = vadd.f32 %v1982, %v2094
    %v2096 = vpop.f32.mrf.mxu0
    %v2097 = vadd.f32 %v1984, %v2096
    %v2098 = vpop.f32.mrf.mxu0
    %v2099 = vadd.f32 %v1986, %v2098
    %2100 = vmatprep.mubr.bf16.mxu0 %v606
    %2101 = vmatmul.mubr.bf16.gmra.mxu0 %v605
    %v2102 = vpop.f32.mrf.mxu0
    %v2103 = vadd.f32 %v1990, %v2102
    %v2104 = vpop.f32.mrf.mxu0
    %v2105 = vadd.f32 %v1992, %v2104
    %v2106 = vpop.f32.mrf.mxu0
    %v2107 = vadd.f32 %v1994, %v2106
    %v2108 = vpop.f32.mrf.mxu0
    %v2109 = vadd.f32 %v1996, %v2108
    %2110 = vmatprep.mubr.bf16.mxu0 %v613
    %2111 = vmatmul.mubr.bf16.gmra.mxu0 %v612
    %v2112 = vpop.f32.mrf.mxu0
    %v2113 = vadd.f32 %v2000, %v2112
    %v2114 = vpop.f32.mrf.mxu0
    %v2115 = vadd.f32 %v2002, %v2114
    %v2116 = vpop.f32.mrf.mxu0
    %v2117 = vadd.f32 %v2004, %v2116
    %v2118 = vpop.f32.mrf.mxu0
    %v2119 = vadd.f32 %v2006, %v2118
    %2120 = vmatprep.mubr.bf16.mxu0 %v620
    %2121 = vmatmul.mubr.bf16.gmra.mxu0 %v619
    %v2122 = vpop.f32.mrf.mxu0
    %v2123 = vadd.f32 %v2010, %v2122
    %v2124 = vpop.f32.mrf.mxu0
    %v2125 = vadd.f32 %v2012, %v2124
    %v2126 = vpop.f32.mrf.mxu0
    %v2127 = vadd.f32 %v2014, %v2126
    %v2128 = vpop.f32.mrf.mxu0
    %v2129 = vadd.f32 %v2016, %v2128
    %2130 = vmatprep.mubr.bf16.mxu0 %v627
    %2131 = vmatmul.mubr.bf16.gmra.mxu0 %v626
    %v2132 = vpop.f32.mrf.mxu0
    %v2133 = vadd.f32 %v2020, %v2132
    %v2134 = vpop.f32.mrf.mxu0
    %v2135 = vadd.f32 %v2022, %v2134
    %v2136 = vpop.f32.mrf.mxu0
    %v2137 = vadd.f32 %v2024, %v2136
    %v2138 = vpop.f32.mrf.mxu0
    %v2139 = vadd.f32 %v2026, %v2138
    %2140 = vmatprep.mubr.bf16.mxu0 %v634
    %2141 = vmatmul.mubr.bf16.gmra.mxu0 %v633
    %v2142 = vpop.f32.mrf.mxu0
    %v2143 = vadd.f32 %v2030, %v2142
    %v2144 = vpop.f32.mrf.mxu0
    %v2145 = vadd.f32 %v2032, %v2144
    %v2146 = vpop.f32.mrf.mxu0
    %v2147 = vadd.f32 %v2034, %v2146
    %v2148 = vpop.f32.mrf.mxu0
    %v2149 = vadd.f32 %v2036, %v2148
    %2150 = vdwg.mxu0
    %2151 = vmatprep.subr.bf16.mxu0 %v1585
    %2152 = vmatpush1.bf16.msra.mxu0 %v1584
    %2153 = vmatprep.subr.bf16.mxu0 %v1581
    %2154 = vmatpush1.bf16.msra.mxu0 %v1580
    %2155 = vmatprep.subr.bf16.mxu0 %v1577
    %2156 = vmatpush1.bf16.msra.mxu0 %v1576
    %2157 = vmatprep.subr.bf16.mxu0 %v1573
    %2158 = vmatpush1.bf16.msra.mxu0 %v1572
    %2159 = vmatprep.subr.bf16.mxu0 %v1569
    %2160 = vmatpush1.bf16.msra.mxu0 %v1568
    %2161 = vmatprep.subr.bf16.mxu0 %v1565
    %2162 = vmatpush1.bf16.msra.mxu0 %v1564
    %2163 = vmatprep.subr.bf16.mxu0 %v1561
    %2164 = vmatpush1.bf16.msra.mxu0 %v1560
    %2165 = vmatprep.subr.bf16.mxu0 %v1557
    %2166 = vmatpush1.bf16.msra.mxu0 %v1556
    %2167 = vmatprep.subr.bf16.mxu0 0
    %2168 = vmatpush2.bf16.msra.mxu0 0
    %2169 = vmatprep.subr.bf16.mxu0 0
    %2170 = vmatpush2.bf16.msra.mxu0 0
    %2171 = vmatprep.subr.bf16.mxu0 0
    %2172 = vmatpush2.bf16.msra.mxu0 0
    %2173 = vmatprep.subr.bf16.mxu0 0
    %2174 = vmatpush2.bf16.msra.mxu0 0
    %2175 = vmatprep.subr.bf16.mxu0 0
    %2176 = vmatpush2.bf16.msra.mxu0 0
    %2177 = vmatprep.subr.bf16.mxu0 0
    %2178 = vmatpush2.bf16.msra.mxu0 0
    %2179 = vmatprep.subr.bf16.mxu0 0
    %2180 = vmatpush2.bf16.msra.mxu0 0
    %2181 = vmatprep.subr.bf16.mxu0 0
    %2182 = vmatpush2.bf16.msra.mxu0 0
    %2183 = vmatprep.mubr.bf16.mxu0 0
    %2184 = vmatmul.mubr.bf16.gmra.mxu0 %v586
    %v2185 = vpop.f32.mrf.mxu0
    %v2186 = vadd.f32 %v2073, %v2185
    %v2187 = vpop.f32.mrf.mxu0
    %v2188 = vadd.f32 %v2075, %v2187
    %v2189 = vpop.f32.mrf.mxu0
    %v2190 = vadd.f32 %v2077, %v2189
    %v2191 = vpop.f32.mrf.mxu0
    %v2192 = vadd.f32 %v2079, %v2191
    %2193 = vmatprep.mubr.bf16.mxu0 0
    %2194 = vmatmul.mubr.bf16.gmra.mxu0 %v593
    %v2195 = vpop.f32.mrf.mxu0
    %v2196 = vadd.f32 %v2083, %v2195
    %v2197 = vpop.f32.mrf.mxu0
    %v2198 = vadd.f32 %v2085, %v2197
    %v2199 = vpop.f32.mrf.mxu0
    %v2200 = vadd.f32 %v2087, %v2199
    %v2201 = vpop.f32.mrf.mxu0
    %v2202 = vadd.f32 %v2089, %v2201
    %2203 = vmatprep.mubr.bf16.mxu0 0
    %2204 = vmatmul.mubr.bf16.gmra.mxu0 %v600
    %v2205 = vpop.f32.mrf.mxu0
    %v2206 = vadd.f32 %v2093, %v2205
    %v2207 = vpop.f32.mrf.mxu0
    %v2208 = vadd.f32 %v2095, %v2207
    %v2209 = vpop.f32.mrf.mxu0
    %v2210 = vadd.f32 %v2097, %v2209
    %v2211 = vpop.f32.mrf.mxu0
    %v2212 = vadd.f32 %v2099, %v2211
    %2213 = vmatprep.mubr.bf16.mxu0 0
    %2214 = vmatmul.mubr.bf16.gmra.mxu0 %v607
    %v2215 = vpop.f32.mrf.mxu0
    %v2216 = vadd.f32 %v2103, %v2215
    %v2217 = vpop.f32.mrf.mxu0
    %v2218 = vadd.f32 %v2105, %v2217
    %v2219 = vpop.f32.mrf.mxu0
    %v2220 = vadd.f32 %v2107, %v2219
    %v2221 = vpop.f32.mrf.mxu0
    %v2222 = vadd.f32 %v2109, %v2221
    %2223 = vmatprep.mubr.bf16.mxu0 0
    %2224 = vmatmul.mubr.bf16.gmra.mxu0 %v614
    %v2225 = vpop.f32.mrf.mxu0
    %v2226 = vadd.f32 %v2113, %v2225
    %v2227 = vpop.f32.mrf.mxu0
    %v2228 = vadd.f32 %v2115, %v2227
    %v2229 = vpop.f32.mrf.mxu0
    %v2230 = vadd.f32 %v2117, %v2229
    %v2231 = vpop.f32.mrf.mxu0
    %v2232 = vadd.f32 %v2119, %v2231
    %2233 = vmatprep.mubr.bf16.mxu0 0
    %2234 = vmatmul.mubr.bf16.gmra.mxu0 %v621
    %v2235 = vpop.f32.mrf.mxu0
    %v2236 = vadd.f32 %v2123, %v2235
    %v2237 = vpop.f32.mrf.mxu0
    %v2238 = vadd.f32 %v2125, %v2237
    %v2239 = vpop.f32.mrf.mxu0
    %v2240 = vadd.f32 %v2127, %v2239
    %v2241 = vpop.f32.mrf.mxu0
    %v2242 = vadd.f32 %v2129, %v2241
    %2243 = vmatprep.mubr.bf16.mxu0 0
    %2244 = vmatmul.mubr.bf16.gmra.mxu0 %v628
    %v2245 = vpop.f32.mrf.mxu0
    %v2246 = vadd.f32 %v2133, %v2245
    %v2247 = vpop.f32.mrf.mxu0
    %v2248 = vadd.f32 %v2135, %v2247
    %v2249 = vpop.f32.mrf.mxu0
    %v2250 = vadd.f32 %v2137, %v2249
    %v2251 = vpop.f32.mrf.mxu0
    %v2252 = vadd.f32 %v2139, %v2251
    %2253 = vmatprep.mubr.bf16.mxu0 0
    %2254 = vmatmul.mubr.bf16.gmra.mxu0 %v635
    %v2255 = vpop.f32.mrf.mxu0
    %v2256 = vadd.f32 %v2143, %v2255
    %v2257 = vpop.f32.mrf.mxu0
    %v2258 = vadd.f32 %v2145, %v2257
    %v2259 = vpop.f32.mrf.mxu0
    %v2260 = vadd.f32 %v2147, %v2259
    %v2261 = vpop.f32.mrf.mxu0
    %v2262 = vadd.f32 %v2149, %v2261
    %2263 = vdwg.mxu0
    %2264 = vmatprep.subr.bf16.mxu0 %v1395
    %2265 = vmatpush1.bf16.msra.mxu0 %v1394
    %2266 = vmatprep.subr.bf16.mxu0 %v1391
    %2267 = vmatpush1.bf16.msra.mxu0 %v1390
    %2268 = vmatprep.subr.bf16.mxu0 %v1387
    %2269 = vmatpush1.bf16.msra.mxu0 %v1386
    %2270 = vmatprep.subr.bf16.mxu0 %v1383
    %2271 = vmatpush1.bf16.msra.mxu0 %v1382
    %2272 = vmatprep.subr.bf16.mxu0 %v1379
    %2273 = vmatpush1.bf16.msra.mxu0 %v1378
    %2274 = vmatprep.subr.bf16.mxu0 %v1375
    %2275 = vmatpush1.bf16.msra.mxu0 %v1374
    %2276 = vmatprep.subr.bf16.mxu0 %v1371
    %2277 = vmatpush1.bf16.msra.mxu0 %v1370
    %2278 = vmatprep.subr.bf16.mxu0 %v1367
    %2279 = vmatpush1.bf16.msra.mxu0 %v1366
    %2280 = vmatprep.subr.bf16.mxu0 %v1427
    %2281 = vmatpush2.bf16.msra.mxu0 %v1426
    %2282 = vmatprep.subr.bf16.mxu0 %v1423
    %2283 = vmatpush2.bf16.msra.mxu0 %v1422
    %2284 = vmatprep.subr.bf16.mxu0 %v1419
    %2285 = vmatpush2.bf16.msra.mxu0 %v1418
    %2286 = vmatprep.subr.bf16.mxu0 %v1415
    %2287 = vmatpush2.bf16.msra.mxu0 %v1414
    %2288 = vmatprep.subr.bf16.mxu0 %v1411
    %2289 = vmatpush2.bf16.msra.mxu0 %v1410
    %2290 = vmatprep.subr.bf16.mxu0 %v1407
    %2291 = vmatpush2.bf16.msra.mxu0 %v1406
    %2292 = vmatprep.subr.bf16.mxu0 %v1403
    %2293 = vmatpush2.bf16.msra.mxu0 %v1402
    %2294 = vmatprep.subr.bf16.mxu0 %v1399
    %2295 = vmatpush2.bf16.msra.mxu0 %v1398
    %2296 = vmatprep.mubr.bf16.mxu0 %v581
    %2297 = vmatmul.mubr.bf16.gmra.mxu0 %v580
    %v2298 = vpop.f32.mrf.mxu0
    %v2299 = vadd.f32 %v395, %v2298
    %v2300 = vpop.f32.mrf.mxu0
    %v2301 = vadd.f32 %v399, %v2300
    %v2302 = vpop.f32.mrf.mxu0
    %v2303 = vadd.f32 %v395, %v2302
    %v2304 = vpop.f32.mrf.mxu0
    %v2305 = vadd.f32 %v399, %v2304
    %2306 = vmatprep.mubr.bf16.mxu0 %v588
    %2307 = vmatmul.mubr.bf16.gmra.mxu0 %v587
    %v2308 = vpop.f32.mrf.mxu0
    %v2309 = vadd.f32 %v395, %v2308
    %v2310 = vpop.f32.mrf.mxu0
    %v2311 = vadd.f32 %v399, %v2310
    %v2312 = vpop.f32.mrf.mxu0
    %v2313 = vadd.f32 %v395, %v2312
    %v2314 = vpop.f32.mrf.mxu0
    %v2315 = vadd.f32 %v399, %v2314
    %2316 = vmatprep.mubr.bf16.mxu0 %v595
    %2317 = vmatmul.mubr.bf16.gmra.mxu0 %v594
    %v2318 = vpop.f32.mrf.mxu0
    %v2319 = vadd.f32 %v395, %v2318
    %v2320 = vpop.f32.mrf.mxu0
    %v2321 = vadd.f32 %v399, %v2320
    %v2322 = vpop.f32.mrf.mxu0
    %v2323 = vadd.f32 %v395, %v2322
    %v2324 = vpop.f32.mrf.mxu0
    %v2325 = vadd.f32 %v399, %v2324
    %2326 = vmatprep.mubr.bf16.mxu0 %v602
    %2327 = vmatmul.mubr.bf16.gmra.mxu0 %v601
    %v2328 = vpop.f32.mrf.mxu0
    %v2329 = vadd.f32 %v395, %v2328
    %v2330 = vpop.f32.mrf.mxu0
    %v2331 = vadd.f32 %v399, %v2330
    %v2332 = vpop.f32.mrf.mxu0
    %v2333 = vadd.f32 %v395, %v2332
    %v2334 = vpop.f32.mrf.mxu0
    %v2335 = vadd.f32 %v399, %v2334
    %2336 = vmatprep.mubr.bf16.mxu0 %v609
    %2337 = vmatmul.mubr.bf16.gmra.mxu0 %v608
    %v2338 = vpop.f32.mrf.mxu0
    %v2339 = vadd.f32 %v395, %v2338
    %v2340 = vpop.f32.mrf.mxu0
    %v2341 = vadd.f32 %v399, %v2340
    %v2342 = vpop.f32.mrf.mxu0
    %v2343 = vadd.f32 %v395, %v2342
    %v2344 = vpop.f32.mrf.mxu0
    %v2345 = vadd.f32 %v399, %v2344
    %2346 = vmatprep.mubr.bf16.mxu0 %v616
    %2347 = vmatmul.mubr.bf16.gmra.mxu0 %v615
    %v2348 = vpop.f32.mrf.mxu0
    %v2349 = vadd.f32 %v395, %v2348
    %v2350 = vpop.f32.mrf.mxu0
    %v2351 = vadd.f32 %v399, %v2350
    %v2352 = vpop.f32.mrf.mxu0
    %v2353 = vadd.f32 %v395, %v2352
    %v2354 = vpop.f32.mrf.mxu0
    %v2355 = vadd.f32 %v399, %v2354
    %2356 = vmatprep.mubr.bf16.mxu0 %v623
    %2357 = vmatmul.mubr.bf16.gmra.mxu0 %v622
    %v2358 = vpop.f32.mrf.mxu0
    %v2359 = vadd.f32 %v395, %v2358
    %v2360 = vpop.f32.mrf.mxu0
    %v2361 = vadd.f32 %v399, %v2360
    %v2362 = vpop.f32.mrf.mxu0
    %v2363 = vadd.f32 %v395, %v2362
    %v2364 = vpop.f32.mrf.mxu0
    %v2365 = vadd.f32 %v399, %v2364
    %2366 = vmatprep.mubr.bf16.mxu0 %v630
    %2367 = vmatmul.mubr.bf16.gmra.mxu0 %v629
    %v2368 = vpop.f32.mrf.mxu0
    %v2369 = vadd.f32 %v395, %v2368
    %v2370 = vpop.f32.mrf.mxu0
    %v2371 = vadd.f32 %v399, %v2370
    %v2372 = vpop.f32.mrf.mxu0
    %v2373 = vadd.f32 %v395, %v2372
    %v2374 = vpop.f32.mrf.mxu0
    %v2375 = vadd.f32 %v399, %v2374
    %2376 = vdwg.mxu0
    %2377 = vmatprep.subr.bf16.mxu0 %v1459
    %2378 = vmatpush1.bf16.msra.mxu0 %v1458
    %2379 = vmatprep.subr.bf16.mxu0 %v1455
    %2380 = vmatpush1.bf16.msra.mxu0 %v1454
    %2381 = vmatprep.subr.bf16.mxu0 %v1451
    %2382 = vmatpush1.bf16.msra.mxu0 %v1450
    %2383 = vmatprep.subr.bf16.mxu0 %v1447
    %2384 = vmatpush1.bf16.msra.mxu0 %v1446
    %2385 = vmatprep.subr.bf16.mxu0 %v1443
    %2386 = vmatpush1.bf16.msra.mxu0 %v1442
    %2387 = vmatprep.subr.bf16.mxu0 %v1439
    %2388 = vmatpush1.bf16.msra.mxu0 %v1438
    %2389 = vmatprep.subr.bf16.mxu0 %v1435
    %2390 = vmatpush1.bf16.msra.mxu0 %v1434
    %2391 = vmatprep.subr.bf16.mxu0 %v1431
    %2392 = vmatpush1.bf16.msra.mxu0 %v1430
    %2393 = vmatprep.subr.bf16.mxu0 %v1491
    %2394 = vmatpush2.bf16.msra.mxu0 %v1490
    %2395 = vmatprep.subr.bf16.mxu0 %v1487
    %2396 = vmatpush2.bf16.msra.mxu0 %v1486
    %2397 = vmatprep.subr.bf16.mxu0 %v1483
    %2398 = vmatpush2.bf16.msra.mxu0 %v1482
    %2399 = vmatprep.subr.bf16.mxu0 %v1479
    %2400 = vmatpush2.bf16.msra.mxu0 %v1478
    %2401 = vmatprep.subr.bf16.mxu0 %v1475
    %2402 = vmatpush2.bf16.msra.mxu0 %v1474
    %2403 = vmatprep.subr.bf16.mxu0 %v1471
    %2404 = vmatpush2.bf16.msra.mxu0 %v1470
    %2405 = vmatprep.subr.bf16.mxu0 %v1467
    %2406 = vmatpush2.bf16.msra.mxu0 %v1466
    %2407 = vmatprep.subr.bf16.mxu0 %v1463
    %2408 = vmatpush2.bf16.msra.mxu0 %v1462
    %2409 = vmatprep.mubr.bf16.mxu0 %v583
    %2410 = vmatmul.mubr.bf16.gmra.mxu0 %v582
    %v2411 = vpop.f32.mrf.mxu0
    %v2412 = vadd.f32 %v2299, %v2411
    %v2413 = vpop.f32.mrf.mxu0
    %v2414 = vadd.f32 %v2301, %v2413
    %v2415 = vpop.f32.mrf.mxu0
    %v2416 = vadd.f32 %v2303, %v2415
    %v2417 = vpop.f32.mrf.mxu0
    %v2418 = vadd.f32 %v2305, %v2417
    %2419 = vmatprep.mubr.bf16.mxu0 %v590
    %2420 = vmatmul.mubr.bf16.gmra.mxu0 %v589
    %v2421 = vpop.f32.mrf.mxu0
    %v2422 = vadd.f32 %v2309, %v2421
    %v2423 = vpop.f32.mrf.mxu0
    %v2424 = vadd.f32 %v2311, %v2423
    %v2425 = vpop.f32.mrf.mxu0
    %v2426 = vadd.f32 %v2313, %v2425
    %v2427 = vpop.f32.mrf.mxu0
    %v2428 = vadd.f32 %v2315, %v2427
    %2429 = vmatprep.mubr.bf16.mxu0 %v597
    %2430 = vmatmul.mubr.bf16.gmra.mxu0 %v596
    %v2431 = vpop.f32.mrf.mxu0
    %v2432 = vadd.f32 %v2319, %v2431
    %v2433 = vpop.f32.mrf.mxu0
    %v2434 = vadd.f32 %v2321, %v2433
    %v2435 = vpop.f32.mrf.mxu0
    %v2436 = vadd.f32 %v2323, %v2435
    %v2437 = vpop.f32.mrf.mxu0
    %v2438 = vadd.f32 %v2325, %v2437
    %2439 = vmatprep.mubr.bf16.mxu0 %v604
    %2440 = vmatmul.mubr.bf16.gmra.mxu0 %v603
    %v2441 = vpop.f32.mrf.mxu0
    %v2442 = vadd.f32 %v2329, %v2441
    %v2443 = vpop.f32.mrf.mxu0
    %v2444 = vadd.f32 %v2331, %v2443
    %v2445 = vpop.f32.mrf.mxu0
    %v2446 = vadd.f32 %v2333, %v2445
    %v2447 = vpop.f32.mrf.mxu0
    %v2448 = vadd.f32 %v2335, %v2447
    %2449 = vmatprep.mubr.bf16.mxu0 %v611
    %2450 = vmatmul.mubr.bf16.gmra.mxu0 %v610
    %v2451 = vpop.f32.mrf.mxu0
    %v2452 = vadd.f32 %v2339, %v2451
    %v2453 = vpop.f32.mrf.mxu0
    %v2454 = vadd.f32 %v2341, %v2453
    %v2455 = vpop.f32.mrf.mxu0
    %v2456 = vadd.f32 %v2343, %v2455
    %v2457 = vpop.f32.mrf.mxu0
    %v2458 = vadd.f32 %v2345, %v2457
    %2459 = vmatprep.mubr.bf16.mxu0 %v618
    %2460 = vmatmul.mubr.bf16.gmra.mxu0 %v617
    %v2461 = vpop.f32.mrf.mxu0
    %v2462 = vadd.f32 %v2349, %v2461
    %v2463 = vpop.f32.mrf.mxu0
    %v2464 = vadd.f32 %v2351, %v2463
    %v2465 = vpop.f32.mrf.mxu0
    %v2466 = vadd.f32 %v2353, %v2465
    %v2467 = vpop.f32.mrf.mxu0
    %v2468 = vadd.f32 %v2355, %v2467
    %2469 = vmatprep.mubr.bf16.mxu0 %v625
    %2470 = vmatmul.mubr.bf16.gmra.mxu0 %v624
    %v2471 = vpop.f32.mrf.mxu0
    %v2472 = vadd.f32 %v2359, %v2471
    %v2473 = vpop.f32.mrf.mxu0
    %v2474 = vadd.f32 %v2361, %v2473
    %v2475 = vpop.f32.mrf.mxu0
    %v2476 = vadd.f32 %v2363, %v2475
    %v2477 = vpop.f32.mrf.mxu0
    %v2478 = vadd.f32 %v2365, %v2477
    %2479 = vmatprep.mubr.bf16.mxu0 %v632
    %2480 = vmatmul.mubr.bf16.gmra.mxu0 %v631
    %v2481 = vpop.f32.mrf.mxu0
    %v2482 = vadd.f32 %v2369, %v2481
    %v2483 = vpop.f32.mrf.mxu0
    %v2484 = vadd.f32 %v2371, %v2483
    %v2485 = vpop.f32.mrf.mxu0
    %v2486 = vadd.f32 %v2373, %v2485
    %v2487 = vpop.f32.mrf.mxu0
    %v2488 = vadd.f32 %v2375, %v2487
    %2489 = vdwg.mxu0
    %2490 = vmatprep.subr.bf16.mxu0 %v1523
    %2491 = vmatpush1.bf16.msra.mxu0 %v1522
    %2492 = vmatprep.subr.bf16.mxu0 %v1519
    %2493 = vmatpush1.bf16.msra.mxu0 %v1518
    %2494 = vmatprep.subr.bf16.mxu0 %v1515
    %2495 = vmatpush1.bf16.msra.mxu0 %v1514
    %2496 = vmatprep.subr.bf16.mxu0 %v1511
    %2497 = vmatpush1.bf16.msra.mxu0 %v1510
    %2498 = vmatprep.subr.bf16.mxu0 %v1507
    %2499 = vmatpush1.bf16.msra.mxu0 %v1506
    %2500 = vmatprep.subr.bf16.mxu0 %v1503
    %2501 = vmatpush1.bf16.msra.mxu0 %v1502
    %2502 = vmatprep.subr.bf16.mxu0 %v1499
    %2503 = vmatpush1.bf16.msra.mxu0 %v1498
    %2504 = vmatprep.subr.bf16.mxu0 %v1495
    %2505 = vmatpush1.bf16.msra.mxu0 %v1494
    %2506 = vmatprep.subr.bf16.mxu0 %v1555
    %2507 = vmatpush2.bf16.msra.mxu0 %v1554
    %2508 = vmatprep.subr.bf16.mxu0 %v1551
    %2509 = vmatpush2.bf16.msra.mxu0 %v1550
    %2510 = vmatprep.subr.bf16.mxu0 %v1547
    %2511 = vmatpush2.bf16.msra.mxu0 %v1546
    %2512 = vmatprep.subr.bf16.mxu0 %v1543
    %2513 = vmatpush2.bf16.msra.mxu0 %v1542
    %2514 = vmatprep.subr.bf16.mxu0 %v1539
    %2515 = vmatpush2.bf16.msra.mxu0 %v1538
    %2516 = vmatprep.subr.bf16.mxu0 %v1535
    %2517 = vmatpush2.bf16.msra.mxu0 %v1534
    %2518 = vmatprep.subr.bf16.mxu0 %v1531
    %2519 = vmatpush2.bf16.msra.mxu0 %v1530
    %2520 = vmatprep.subr.bf16.mxu0 %v1527
    %2521 = vmatpush2.bf16.msra.mxu0 %v1526
    %2522 = vmatprep.mubr.bf16.mxu0 %v585
    %2523 = vmatmul.mubr.bf16.gmra.mxu0 %v584
    %v2524 = vpop.f32.mrf.mxu0
    %v2525 = vadd.f32 %v2412, %v2524
    %v2526 = vpop.f32.mrf.mxu0
    %v2527 = vadd.f32 %v2414, %v2526
    %v2528 = vpop.f32.mrf.mxu0
    %v2529 = vadd.f32 %v2416, %v2528
    %v2530 = vpop.f32.mrf.mxu0
    %v2531 = vadd.f32 %v2418, %v2530
    %2532 = vmatprep.mubr.bf16.mxu0 %v592
    %2533 = vmatmul.mubr.bf16.gmra.mxu0 %v591
    %v2534 = vpop.f32.mrf.mxu0
    %v2535 = vadd.f32 %v2422, %v2534
    %v2536 = vpop.f32.mrf.mxu0
    %v2537 = vadd.f32 %v2424, %v2536
    %v2538 = vpop.f32.mrf.mxu0
    %v2539 = vadd.f32 %v2426, %v2538
    %v2540 = vpop.f32.mrf.mxu0
    %v2541 = vadd.f32 %v2428, %v2540
    %2542 = vmatprep.mubr.bf16.mxu0 %v599
    %2543 = vmatmul.mubr.bf16.gmra.mxu0 %v598
    %v2544 = vpop.f32.mrf.mxu0
    %v2545 = vadd.f32 %v2432, %v2544
    %v2546 = vpop.f32.mrf.mxu0
    %v2547 = vadd.f32 %v2434, %v2546
    %v2548 = vpop.f32.mrf.mxu0
    %v2549 = vadd.f32 %v2436, %v2548
    %v2550 = vpop.f32.mrf.mxu0
    %v2551 = vadd.f32 %v2438, %v2550
    %2552 = vmatprep.mubr.bf16.mxu0 %v606
    %2553 = vmatmul.mubr.bf16.gmra.mxu0 %v605
    %v2554 = vpop.f32.mrf.mxu0
    %v2555 = vadd.f32 %v2442, %v2554
    %v2556 = vpop.f32.mrf.mxu0
    %v2557 = vadd.f32 %v2444, %v2556
    %v2558 = vpop.f32.mrf.mxu0
    %v2559 = vadd.f32 %v2446, %v2558
    %v2560 = vpop.f32.mrf.mxu0
    %v2561 = vadd.f32 %v2448, %v2560
    %2562 = vmatprep.mubr.bf16.mxu0 %v613
    %2563 = vmatmul.mubr.bf16.gmra.mxu0 %v612
    %v2564 = vpop.f32.mrf.mxu0
    %v2565 = vadd.f32 %v2452, %v2564
    %v2566 = vpop.f32.mrf.mxu0
    %v2567 = vadd.f32 %v2454, %v2566
    %v2568 = vpop.f32.mrf.mxu0
    %v2569 = vadd.f32 %v2456, %v2568
    %v2570 = vpop.f32.mrf.mxu0
    %v2571 = vadd.f32 %v2458, %v2570
    %2572 = vmatprep.mubr.bf16.mxu0 %v620
    %2573 = vmatmul.mubr.bf16.gmra.mxu0 %v619
    %v2574 = vpop.f32.mrf.mxu0
    %v2575 = vadd.f32 %v2462, %v2574
    %v2576 = vpop.f32.mrf.mxu0
    %v2577 = vadd.f32 %v2464, %v2576
    %v2578 = vpop.f32.mrf.mxu0
    %v2579 = vadd.f32 %v2466, %v2578
    %v2580 = vpop.f32.mrf.mxu0
    %v2581 = vadd.f32 %v2468, %v2580
    %2582 = vmatprep.mubr.bf16.mxu0 %v627
    %2583 = vmatmul.mubr.bf16.gmra.mxu0 %v626
    %v2584 = vpop.f32.mrf.mxu0
    %v2585 = vadd.f32 %v2472, %v2584
    %v2586 = vpop.f32.mrf.mxu0
    %v2587 = vadd.f32 %v2474, %v2586
    %v2588 = vpop.f32.mrf.mxu0
    %v2589 = vadd.f32 %v2476, %v2588
    %v2590 = vpop.f32.mrf.mxu0
    %v2591 = vadd.f32 %v2478, %v2590
    %2592 = vmatprep.mubr.bf16.mxu0 %v634
    %2593 = vmatmul.mubr.bf16.gmra.mxu0 %v633
    %v2594 = vpop.f32.mrf.mxu0
    %v2595 = vadd.f32 %v2482, %v2594
    %v2596 = vpop.f32.mrf.mxu0
    %v2597 = vadd.f32 %v2484, %v2596
    %v2598 = vpop.f32.mrf.mxu0
    %v2599 = vadd.f32 %v2486, %v2598
    %v2600 = vpop.f32.mrf.mxu0
    %v2601 = vadd.f32 %v2488, %v2600
    %2602 = vdwg.mxu0
    %2603 = vmatprep.subr.bf16.mxu0 %v1587
    %2604 = vmatpush1.bf16.msra.mxu0 %v1586
    %2605 = vmatprep.subr.bf16.mxu0 %v1583
    %2606 = vmatpush1.bf16.msra.mxu0 %v1582
    %2607 = vmatprep.subr.bf16.mxu0 %v1579
    %2608 = vmatpush1.bf16.msra.mxu0 %v1578
    %2609 = vmatprep.subr.bf16.mxu0 %v1575
    %2610 = vmatpush1.bf16.msra.mxu0 %v1574
    %2611 = vmatprep.subr.bf16.mxu0 %v1571
    %2612 = vmatpush1.bf16.msra.mxu0 %v1570
    %2613 = vmatprep.subr.bf16.mxu0 %v1567
    %2614 = vmatpush1.bf16.msra.mxu0 %v1566
    %2615 = vmatprep.subr.bf16.mxu0 %v1563
    %2616 = vmatpush1.bf16.msra.mxu0 %v1562
    %2617 = vmatprep.subr.bf16.mxu0 %v1559
    %2618 = vmatpush1.bf16.msra.mxu0 %v1558
    %2619 = vmatprep.subr.bf16.mxu0 0
    %2620 = vmatpush2.bf16.msra.mxu0 0
    %2621 = vmatprep.subr.bf16.mxu0 0
    %2622 = vmatpush2.bf16.msra.mxu0 0
    %2623 = vmatprep.subr.bf16.mxu0 0
    %2624 = vmatpush2.bf16.msra.mxu0 0
    %2625 = vmatprep.subr.bf16.mxu0 0
    %2626 = vmatpush2.bf16.msra.mxu0 0
    %2627 = vmatprep.subr.bf16.mxu0 0
    %2628 = vmatpush2.bf16.msra.mxu0 0
    %2629 = vmatprep.subr.bf16.mxu0 0
    %2630 = vmatpush2.bf16.msra.mxu0 0
    %2631 = vmatprep.subr.bf16.mxu0 0
    %2632 = vmatpush2.bf16.msra.mxu0 0
    %2633 = vmatprep.subr.bf16.mxu0 0
    %2634 = vmatpush2.bf16.msra.mxu0 0
    %2635 = vmatprep.mubr.bf16.mxu0 0
    %2636 = vmatmul.mubr.bf16.gmra.mxu0 %v586
    %v2637 = vpop.f32.mrf.mxu0
    %v2638 = vadd.f32 %v2525, %v2637
    %v2639 = vpop.f32.mrf.mxu0
    %v2640 = vadd.f32 %v2527, %v2639
    %v2641 = vpop.f32.mrf.mxu0
    %v2642 = vadd.f32 %v2529, %v2641
    %v2643 = vpop.f32.mrf.mxu0
    %v2644 = vadd.f32 %v2531, %v2643
    %2645 = vmatprep.mubr.bf16.mxu0 0
    %2646 = vmatmul.mubr.bf16.gmra.mxu0 %v593
    %v2647 = vpop.f32.mrf.mxu0
    %v2648 = vadd.f32 %v2535, %v2647
    %v2649 = vpop.f32.mrf.mxu0
    %v2650 = vadd.f32 %v2537, %v2649
    %v2651 = vpop.f32.mrf.mxu0
    %v2652 = vadd.f32 %v2539, %v2651
    %v2653 = vpop.f32.mrf.mxu0
    %v2654 = vadd.f32 %v2541, %v2653
    %2655 = vmatprep.mubr.bf16.mxu0 0
    %2656 = vmatmul.mubr.bf16.gmra.mxu0 %v600
    %v2657 = vpop.f32.mrf.mxu0
    %v2658 = vadd.f32 %v2545, %v2657
    %v2659 = vpop.f32.mrf.mxu0
    %v2660 = vadd.f32 %v2547, %v2659
    %v2661 = vpop.f32.mrf.mxu0
    %v2662 = vadd.f32 %v2549, %v2661
    %v2663 = vpop.f32.mrf.mxu0
    %v2664 = vadd.f32 %v2551, %v2663
    %2665 = vmatprep.mubr.bf16.mxu0 0
    %2666 = vmatmul.mubr.bf16.gmra.mxu0 %v607
    %v2667 = vpop.f32.mrf.mxu0
    %v2668 = vadd.f32 %v2555, %v2667
    %v2669 = vpop.f32.mrf.mxu0
    %v2670 = vadd.f32 %v2557, %v2669
    %v2671 = vpop.f32.mrf.mxu0
    %v2672 = vadd.f32 %v2559, %v2671
    %v2673 = vpop.f32.mrf.mxu0
    %v2674 = vadd.f32 %v2561, %v2673
    %2675 = vmatprep.mubr.bf16.mxu0 0
    %2676 = vmatmul.mubr.bf16.gmra.mxu0 %v614
    %v2677 = vpop.f32.mrf.mxu0
    %v2678 = vadd.f32 %v2565, %v2677
    %v2679 = vpop.f32.mrf.mxu0
    %v2680 = vadd.f32 %v2567, %v2679
    %v2681 = vpop.f32.mrf.mxu0
    %v2682 = vadd.f32 %v2569, %v2681
    %v2683 = vpop.f32.mrf.mxu0
    %v2684 = vadd.f32 %v2571, %v2683
    %2685 = vmatprep.mubr.bf16.mxu0 0
    %2686 = vmatmul.mubr.bf16.gmra.mxu0 %v621
    %v2687 = vpop.f32.mrf.mxu0
    %v2688 = vadd.f32 %v2575, %v2687
    %v2689 = vpop.f32.mrf.mxu0
    %v2690 = vadd.f32 %v2577, %v2689
    %v2691 = vpop.f32.mrf.mxu0
    %v2692 = vadd.f32 %v2579, %v2691
    %v2693 = vpop.f32.mrf.mxu0
    %v2694 = vadd.f32 %v2581, %v2693
    %2695 = vmatprep.mubr.bf16.mxu0 0
    %2696 = vmatmul.mubr.bf16.gmra.mxu0 %v628
    %v2697 = vpop.f32.mrf.mxu0
    %v2698 = vadd.f32 %v2585, %v2697
    %v2699 = vpop.f32.mrf.mxu0
    %v2700 = vadd.f32 %v2587, %v2699
    %v2701 = vpop.f32.mrf.mxu0
    %v2702 = vadd.f32 %v2589, %v2701
    %v2703 = vpop.f32.mrf.mxu0
    %v2704 = vadd.f32 %v2591, %v2703
    %2705 = vmatprep.mubr.bf16.mxu0 0
    %2706 = vmatmul.mubr.bf16.gmra.mxu0 %v635
    %v2707 = vpop.f32.mrf.mxu0
    %v2708 = vadd.f32 %v2595, %v2707
    %v2709 = vpop.f32.mrf.mxu0
    %v2710 = vadd.f32 %v2597, %v2709
    %v2711 = vpop.f32.mrf.mxu0
    %v2712 = vadd.f32 %v2599, %v2711
    %v2713 = vpop.f32.mrf.mxu0
    %v2714 = vadd.f32 %v2601, %v2713
    %2715 = vdwg.mxu0
    %v2716 = vmax.f32 %v2186, 0.0
    %v2717 = vmax.f32 %v2188, 0.0
    %v2718 = vmax.f32 %v2638, 0.0
    %v2719 = vmax.f32 %v2640, 0.0
    %v2720 = vmax.f32 %v2190, 0.0
    %v2721 = vmax.f32 %v2192, 0.0
    %v2722 = vmax.f32 %v2642, 0.0
    %v2723 = vmax.f32 %v2644, 0.0
    %v2724 = vmax.f32 %v2196, 0.0
    %v2725 = vmax.f32 %v2198, 0.0
    %v2726 = vmax.f32 %v2648, 0.0
    %v2727 = vmax.f32 %v2650, 0.0
    %v2728 = vmax.f32 %v2200, 0.0
    %v2729 = vmax.f32 %v2202, 0.0
    %v2730 = vmax.f32 %v2652, 0.0
    %v2731 = vmax.f32 %v2654, 0.0
    %v2732 = vmax.f32 %v2206, 0.0
    %v2733 = vmax.f32 %v2208, 0.0
    %v2734 = vmax.f32 %v2658, 0.0
    %v2735 = vmax.f32 %v2660, 0.0
    %v2736 = vmax.f32 %v2210, 0.0
    %v2737 = vmax.f32 %v2212, 0.0
    %v2738 = vmax.f32 %v2662, 0.0
    %v2739 = vmax.f32 %v2664, 0.0
    %v2740 = vmax.f32 %v2216, 0.0
    %v2741 = vmax.f32 %v2218, 0.0
    %v2742 = vmax.f32 %v2668, 0.0
    %v2743 = vmax.f32 %v2670, 0.0
    %v2744 = vmax.f32 %v2220, 0.0
    %v2745 = vmax.f32 %v2222, 0.0
    %v2746 = vmax.f32 %v2672, 0.0
    %v2747 = vmax.f32 %v2674, 0.0
    %v2748 = vmax.f32 %v2226, 0.0
    %v2749 = vmax.f32 %v2228, 0.0
    %v2750 = vmax.f32 %v2678, 0.0
    %v2751 = vmax.f32 %v2680, 0.0
    %v2752 = vmax.f32 %v2230, 0.0
    %v2753 = vmax.f32 %v2232, 0.0
    %v2754 = vmax.f32 %v2682, 0.0
    %v2755 = vmax.f32 %v2684, 0.0
    %v2756 = vmax.f32 %v2236, 0.0
    %v2757 = vmax.f32 %v2238, 0.0
    %v2758 = vmax.f32 %v2688, 0.0
    %v2759 = vmax.f32 %v2690, 0.0
    %v2760 = vmax.f32 %v2240, 0.0
    %v2761 = vmax.f32 %v2242, 0.0
    %v2762 = vmax.f32 %v2692, 0.0
    %v2763 = vmax.f32 %v2694, 0.0
    %v2764 = vmax.f32 %v2246, 0.0
    %v2765 = vmax.f32 %v2248, 0.0
    %v2766 = vmax.f32 %v2698, 0.0
    %v2767 = vmax.f32 %v2700, 0.0
    %v2768 = vmax.f32 %v2250, 0.0
    %v2769 = vmax.f32 %v2252, 0.0
    %v2770 = vmax.f32 %v2702, 0.0
    %v2771 = vmax.f32 %v2704, 0.0
    %v2772 = vmax.f32 %v2256, 0.0
    %v2773 = vmax.f32 %v2258, 0.0
    %v2774 = vmax.f32 %v2708, 0.0
    %v2775 = vmax.f32 %v2710, 0.0
    %v2776 = vmax.f32 %v2260, 0.0
    %v2777 = vmax.f32 %v2262, 0.0
    %v2778 = vmax.f32 %v2712, 0.0
    %v2779 = vmax.f32 %v2714, 0.0
    %v2780 = vpack.c.bf16 %v2720, %v2716
    %v2781 = vpack.c.bf16 %v2721, %v2717
    %v2782 = vpack.c.bf16 %v2722, %v2718
    %v2783 = vpack.c.bf16 %v2723, %v2719
    %v2784 = vpack.c.bf16 %v2728, %v2724
    %v2785 = vpack.c.bf16 %v2729, %v2725
    %v2786 = vpack.c.bf16 %v2730, %v2726
    %v2787 = vpack.c.bf16 %v2731, %v2727
    %v2788 = vpack.c.bf16 %v2736, %v2732
    %v2789 = vpack.c.bf16 %v2737, %v2733
    %v2790 = vpack.c.bf16 %v2738, %v2734
    %v2791 = vpack.c.bf16 %v2739, %v2735
    %v2792 = vpack.c.bf16 %v2744, %v2740
    %v2793 = vpack.c.bf16 %v2745, %v2741
    %v2794 = vpack.c.bf16 %v2746, %v2742
    %v2795 = vpack.c.bf16 %v2747, %v2743
    %v2796 = vpack.c.bf16 %v2752, %v2748
    %v2797 = vpack.c.bf16 %v2753, %v2749
    %v2798 = vpack.c.bf16 %v2754, %v2750
    %v2799 = vpack.c.bf16 %v2755, %v2751
    %v2800 = vpack.c.bf16 %v2760, %v2756
    %v2801 = vpack.c.bf16 %v2761, %v2757
    %v2802 = vpack.c.bf16 %v2762, %v2758
    %v2803 = vpack.c.bf16 %v2763, %v2759
    %v2804 = vpack.c.bf16 %v2768, %v2764
    %v2805 = vpack.c.bf16 %v2769, %v2765
    %v2806 = vpack.c.bf16 %v2770, %v2766
    %v2807 = vpack.c.bf16 %v2771, %v2767
    %v2808 = vpack.c.bf16 %v2776, %v2772
    %v2809 = vpack.c.bf16 %v2777, %v2773
    %v2810 = vpack.c.bf16 %v2778, %v2774
    %v2811 = vpack.c.bf16 %v2779, %v2775
    %v2812 = vld [vmem:[#allocation8] sm:$0xff]
    %v2813 = vld [vmem:[#allocation8 + $0x8] sm:$0xff]
    %v2814 = vld [vmem:[#allocation8 + $0x10] sm:$0xff]
    %v2815 = vld [vmem:[#allocation8 + $0x18] sm:$0xff]
    %v2816 = vld [vmem:[#allocation8 + $0x20] sm:$0xff]
    %v2817 = vld [vmem:[#allocation8 + $0x28] sm:$0xff]
    %v2818 = vld [vmem:[#allocation8 + $0x30] sm:$0xff]
    %v2819 = vld [vmem:[#allocation8 + $0x38] sm:$0xff]
    %v2820 = vld [vmem:[#allocation8 + $0x40] sm:$0xff]
    %v2821 = vld [vmem:[#allocation8 + $0x48] sm:$0xff]
    %v2822 = vld [vmem:[#allocation8 + $0x50] sm:$0xff]
    %v2823 = vld [vmem:[#allocation8 + $0x58] sm:$0xff]
    %v2824 = vld [vmem:[#allocation8 + $0x60] sm:$0xff]
    %v2825 = vld [vmem:[#allocation8 + $0x68] sm:$0xff]
    %v2826 = vld [vmem:[#allocation8 + $0x70] sm:$0xff]
    %v2827 = vld [vmem:[#allocation8 + $0x78] sm:$0xff]
    %v2828 = vld [vmem:[#allocation8 + $0x80] sm:$0xff]
    %v2829 = vld [vmem:[#allocation8 + $0x88] sm:$0xff]
    %v2830 = vld [vmem:[#allocation8 + $0x90] sm:$0xff]
    %v2831 = vld [vmem:[#allocation8 + $0x98] sm:$0xff]
    %v2832 = vld [vmem:[#allocation8 + $0xa0] sm:$0xff]
    %v2833 = vld [vmem:[#allocation8 + $0xa8] sm:$0xff]
    %v2834 = vld [vmem:[#allocation8 + $0xb0] sm:$0xff]
    %v2835 = vld [vmem:[#allocation8 + $0xb8] sm:$0xff]
    %v2836 = vld [vmem:[#allocation8 + $0xc0] sm:$0xff]
    %v2837 = vld [vmem:[#allocation8 + $0xc8] sm:$0xff]
    %v2838 = vld [vmem:[#allocation8 + $0xd0] sm:$0xff]
    %v2839 = vld [vmem:[#allocation8 + $0xd8] sm:$0xff]
    %v2840 = vld [vmem:[#allocation8 + $0xe0] sm:$0xff]
    %v2841 = vld [vmem:[#allocation8 + $0xe8] sm:$0xff]
    %v2842 = vld [vmem:[#allocation8 + $0xf0] sm:$0xff]
    %v2843 = vld [vmem:[#allocation8 + $0xf8] sm:$0xff]
    %v2844 = vld [vmem:[#allocation8 + $0x100] sm:$0xff]
    %v2845 = vld [vmem:[#allocation8 + $0x108] sm:$0xff]
    %v2846 = vld [vmem:[#allocation8 + $0x110] sm:$0xff]
    %v2847 = vld [vmem:[#allocation8 + $0x118] sm:$0xff]
    %v2848 = vld [vmem:[#allocation8 + $0x120] sm:$0xff]
    %v2849 = vld [vmem:[#allocation8 + $0x128] sm:$0xff]
    %v2850 = vld [vmem:[#allocation8 + $0x130] sm:$0xff]
    %v2851 = vld [vmem:[#allocation8 + $0x138] sm:$0xff]
    %v2852 = vld [vmem:[#allocation8 + $0x140] sm:$0xff]
    %v2853 = vld [vmem:[#allocation8 + $0x148] sm:$0xff]
    %v2854 = vld [vmem:[#allocation8 + $0x150] sm:$0xff]
    %v2855 = vld [vmem:[#allocation8 + $0x158] sm:$0xff]
    %v2856 = vld [vmem:[#allocation8 + $0x160] sm:$0xff]
    %v2857 = vld [vmem:[#allocation8 + $0x168] sm:$0xff]
    %v2858 = vld [vmem:[#allocation8 + $0x170] sm:$0xff]
    %v2859 = vld [vmem:[#allocation8 + $0x178] sm:$0xff]
    %v2860 = vld [vmem:[#allocation8 + $0x180] sm:$0xff]
    %v2861 = vld [vmem:[#allocation8 + $0x188] sm:$0xff]
    %v2862 = vld [vmem:[#allocation8 + $0x190] sm:$0xff]
    %v2863 = vld [vmem:[#allocation8 + $0x198] sm:$0xff]
    %v2864 = vld [vmem:[#allocation8 + $0x1a0] sm:$0xff]
    %v2865 = vld [vmem:[#allocation8 + $0x1a8] sm:$0xff]
    %v2866 = vld [vmem:[#allocation8 + $0x1b0] sm:$0xff]
    %v2867 = vld [vmem:[#allocation8 + $0x1b8] sm:$0xff]
    %v2868 = vld [vmem:[#allocation8 + $0x1c0] sm:$0xff]
    %v2869 = vld [vmem:[#allocation8 + $0x1c8] sm:$0xff]
    %v2870 = vld [vmem:[#allocation8 + $0x1d0] sm:$0xff]
    %v2871 = vld [vmem:[#allocation8 + $0x1d8] sm:$0xff]
    %v2872 = vld [vmem:[#allocation8 + $0x1e0] sm:$0xff]
    %v2873 = vld [vmem:[#allocation8 + $0x1e8] sm:$0xff]
    %v2874 = vld [vmem:[#allocation8 + $0x1f0] sm:$0xff]
    %v2875 = vld [vmem:[#allocation8 + $0x1f8] sm:$0xff]
    %v2876 = vld [vmem:[#allocation8 + $0x200] sm:$0xff]
    %v2877 = vld [vmem:[#allocation8 + $0x208] sm:$0xff]
    %v2878 = vld [vmem:[#allocation8 + $0x210] sm:$0xff]
    %v2879 = vld [vmem:[#allocation8 + $0x218] sm:$0xff]
    %v2880 = vld [vmem:[#allocation8 + $0x220] sm:$0xff]
    %v2881 = vld [vmem:[#allocation8 + $0x228] sm:$0xff]
    %v2882 = vld [vmem:[#allocation8 + $0x230] sm:$0xff]
    %v2883 = vld [vmem:[#allocation8 + $0x238] sm:$0xff]
    %v2884 = vld [vmem:[#allocation8 + $0x240] sm:$0xff]
    %v2885 = vld [vmem:[#allocation8 + $0x248] sm:$0xff]
    %v2886 = vld [vmem:[#allocation8 + $0x250] sm:$0xff]
    %v2887 = vld [vmem:[#allocation8 + $0x258] sm:$0xff]
    %v2888 = vld [vmem:[#allocation8 + $0x260] sm:$0xff]
    %v2889 = vld [vmem:[#allocation8 + $0x268] sm:$0xff]
    %v2890 = vld [vmem:[#allocation8 + $0x270] sm:$0xff]
    %v2891 = vld [vmem:[#allocation8 + $0x278] sm:$0xff]
    %v2892 = vld [vmem:[#allocation8 + $0x280] sm:$0xff]
    %v2893 = vld [vmem:[#allocation8 + $0x288] sm:$0xff]
    %v2894 = vld [vmem:[#allocation8 + $0x290] sm:$0xff]
    %v2895 = vld [vmem:[#allocation8 + $0x298] sm:$0xff]
    %v2896 = vld [vmem:[#allocation8 + $0x2a0] sm:$0xff]
    %v2897 = vld [vmem:[#allocation8 + $0x2a8] sm:$0xff]
    %v2898 = vld [vmem:[#allocation8 + $0x2b0] sm:$0xff]
    %v2899 = vld [vmem:[#allocation8 + $0x2b8] sm:$0xff]
    %v2900 = vld [vmem:[#allocation8 + $0x2c0] sm:$0xff]
    %v2901 = vld [vmem:[#allocation8 + $0x2c8] sm:$0xff]
    %v2902 = vld [vmem:[#allocation8 + $0x2d0] sm:$0xff]
    %v2903 = vld [vmem:[#allocation8 + $0x2d8] sm:$0xff]
    %v2904 = vld [vmem:[#allocation8 + $0x2e0] sm:$0xff]
    %v2905 = vld [vmem:[#allocation8 + $0x2e8] sm:$0xff]
    %v2906 = vld [vmem:[#allocation8 + $0x2f0] sm:$0xff]
    %v2907 = vld [vmem:[#allocation8 + $0x2f8] sm:$0xff]
    %v2908 = vld [vmem:[#allocation8 + $0x300] sm:$0xff]
    %v2909 = vld [vmem:[#allocation8 + $0x308] sm:$0xff]
    %v2910 = vld [vmem:[#allocation8 + $0x310] sm:$0xff]
    %v2911 = vld [vmem:[#allocation8 + $0x318] sm:$0xff]
    %v2912 = vld [vmem:[#allocation8 + $0x320] sm:$0xff]
    %v2913 = vld [vmem:[#allocation8 + $0x328] sm:$0xff]
    %v2914 = vld [vmem:[#allocation8 + $0x330] sm:$0xff]
    %v2915 = vld [vmem:[#allocation8 + $0x338] sm:$0xff]
    %v2916 = vld [vmem:[#allocation8 + $0x340] sm:$0xff]
    %v2917 = vld [vmem:[#allocation8 + $0x348] sm:$0xff]
    %v2918 = vld [vmem:[#allocation8 + $0x350] sm:$0xff]
    %v2919 = vld [vmem:[#allocation8 + $0x358] sm:$0xff]
    %v2920 = vld [vmem:[#allocation8 + $0x360] sm:$0xff]
    %v2921 = vld [vmem:[#allocation8 + $0x368] sm:$0xff]
    %v2922 = vld [vmem:[#allocation8 + $0x370] sm:$0xff]
    %v2923 = vld [vmem:[#allocation8 + $0x378] sm:$0xff]
    %v2924 = vld [vmem:[#allocation8 + $0x380] sm:$0xff]
    %v2925 = vld [vmem:[#allocation8 + $0x388] sm:$0xff]
    %v2926 = vld [vmem:[#allocation8 + $0x390] sm:$0xff]
    %v2927 = vld [vmem:[#allocation8 + $0x398] sm:$0xff]
    %v2928 = vld [vmem:[#allocation8 + $0x3a0] sm:$0xff]
    %v2929 = vld [vmem:[#allocation8 + $0x3a8] sm:$0xff]
    %v2930 = vld [vmem:[#allocation8 + $0x3b0] sm:$0xff]
    %v2931 = vld [vmem:[#allocation8 + $0x3b8] sm:$0xff]
    %v2932 = vld [vmem:[#allocation8 + $0x3c0] sm:$0xff]
    %v2933 = vld [vmem:[#allocation8 + $0x3c8] sm:$0xff]
    %v2934 = vld [vmem:[#allocation8 + $0x3d0] sm:$0xff]
    %v2935 = vld [vmem:[#allocation8 + $0x3d8] sm:$0xff]
    %v2936 = vld [vmem:[#allocation8 + $0x3e0] sm:$0xff]
    %v2937 = vld [vmem:[#allocation8 + $0x3e8] sm:$0xff]
    %v2938 = vld [vmem:[#allocation8 + $0x3f0] sm:$0xff]
    %v2939 = vld [vmem:[#allocation8 + $0x3f8] sm:$0xff]
    %v2940 = vld [vmem:[%s4] sm:$0xf]
    %v2942 = vlaneseq
    %v2943 = vshrl.u32 %v2942, 7
    %v2944 = vsub.s32 0, %v2943
    %v2945 = vrot.slane %v2940, %v2944
    %v2946 = vlaneseq
    %v2947 = vshrl.u32 %v2946, 7
    %v2948 = vsub.s32 1, %v2947
    %v2949 = vrot.slane %v2940, %v2948
    %v2950 = vlaneseq
    %v2951 = vshrl.u32 %v2950, 7
    %v2952 = vsub.s32 2, %v2951
    %v2953 = vrot.slane %v2940, %v2952
    %v2954 = vlaneseq
    %v2955 = vshrl.u32 %v2954, 7
    %v2956 = vsub.s32 3, %v2955
    %v2957 = vrot.slane %v2940, %v2956
    %v3090 = vunpack.c.l.b16 %v2812
    %v3091 = vunpack.c.h.b16 %v2812
    %v3092 = vunpack.c.l.b16 %v2813
    %v3093 = vunpack.c.h.b16 %v2813
    %v3094 = vunpack.c.l.b16 %v2814
    %v3095 = vunpack.c.h.b16 %v2814
    %v3096 = vunpack.c.l.b16 %v2815
    %v3097 = vunpack.c.h.b16 %v2815
    %v3098 = vunpack.c.l.b16 %v2816
    %v3099 = vunpack.c.h.b16 %v2816
    %v3100 = vunpack.c.l.b16 %v2817
    %v3101 = vunpack.c.h.b16 %v2817
    %v3102 = vunpack.c.l.b16 %v2818
    %v3103 = vunpack.c.h.b16 %v2818
    %v3104 = vunpack.c.l.b16 %v2819
    %v3105 = vunpack.c.h.b16 %v2819
    %v3106 = vunpack.c.l.b16 %v2820
    %v3107 = vunpack.c.h.b16 %v2820
    %v3108 = vunpack.c.l.b16 %v2821
    %v3109 = vunpack.c.h.b16 %v2821
    %v3110 = vunpack.c.l.b16 %v2822
    %v3111 = vunpack.c.h.b16 %v2822
    %v3112 = vunpack.c.l.b16 %v2823
    %v3113 = vunpack.c.h.b16 %v2823
    %v3114 = vunpack.c.l.b16 %v2824
    %v3115 = vunpack.c.h.b16 %v2824
    %v3116 = vunpack.c.l.b16 %v2825
    %v3117 = vunpack.c.h.b16 %v2825
    %v3118 = vunpack.c.l.b16 %v2826
    %v3119 = vunpack.c.h.b16 %v2826
    %v3120 = vunpack.c.l.b16 %v2827
    %v3121 = vunpack.c.h.b16 %v2827
    %v3122 = vunpack.c.l.b16 %v2828
    %v3123 = vunpack.c.h.b16 %v2828
    %v3124 = vunpack.c.l.b16 %v2829
    %v3125 = vunpack.c.h.b16 %v2829
    %v3126 = vunpack.c.l.b16 %v2830
    %v3127 = vunpack.c.h.b16 %v2830
    %v3128 = vunpack.c.l.b16 %v2831
    %v3129 = vunpack.c.h.b16 %v2831
    %v3130 = vunpack.c.l.b16 %v2832
    %v3131 = vunpack.c.h.b16 %v2832
    %v3132 = vunpack.c.l.b16 %v2833
    %v3133 = vunpack.c.h.b16 %v2833
    %v3134 = vunpack.c.l.b16 %v2834
    %v3135 = vunpack.c.h.b16 %v2834
    %v3136 = vunpack.c.l.b16 %v2835
    %v3137 = vunpack.c.h.b16 %v2835
    %v3138 = vunpack.c.l.b16 %v2836
    %v3139 = vunpack.c.h.b16 %v2836
    %v3140 = vunpack.c.l.b16 %v2837
    %v3141 = vunpack.c.h.b16 %v2837
    %v3142 = vunpack.c.l.b16 %v2838
    %v3143 = vunpack.c.h.b16 %v2838
    %v3144 = vunpack.c.l.b16 %v2839
    %v3145 = vunpack.c.h.b16 %v2839
    %v3146 = vunpack.c.l.b16 %v2840
    %v3147 = vunpack.c.h.b16 %v2840
    %v3148 = vunpack.c.l.b16 %v2841
    %v3149 = vunpack.c.h.b16 %v2841
    %v3150 = vunpack.c.l.b16 %v2842
    %v3151 = vunpack.c.h.b16 %v2842
    %v3152 = vunpack.c.l.b16 %v2843
    %v3153 = vunpack.c.h.b16 %v2843
    %v3154 = vunpack.c.l.b16 %v2844
    %v3155 = vunpack.c.h.b16 %v2844
    %v3156 = vunpack.c.l.b16 %v2845
    %v3157 = vunpack.c.h.b16 %v2845
    %v3158 = vunpack.c.l.b16 %v2846
    %v3159 = vunpack.c.h.b16 %v2846
    %v3160 = vunpack.c.l.b16 %v2847
    %v3161 = vunpack.c.h.b16 %v2847
    %v3162 = vunpack.c.l.b16 %v2848
    %v3163 = vunpack.c.h.b16 %v2848
    %v3164 = vunpack.c.l.b16 %v2849
    %v3165 = vunpack.c.h.b16 %v2849
    %v3166 = vunpack.c.l.b16 %v2850
    %v3167 = vunpack.c.h.b16 %v2850
    %v3168 = vunpack.c.l.b16 %v2851
    %v3169 = vunpack.c.h.b16 %v2851
    %v3170 = vunpack.c.l.b16 %v2852
    %v3171 = vunpack.c.h.b16 %v2852
    %v3172 = vunpack.c.l.b16 %v2853
    %v3173 = vunpack.c.h.b16 %v2853
    %v3174 = vunpack.c.l.b16 %v2854
    %v3175 = vunpack.c.h.b16 %v2854
    %v3176 = vunpack.c.l.b16 %v2855
    %v3177 = vunpack.c.h.b16 %v2855
    %v3178 = vunpack.c.l.b16 %v2856
    %v3179 = vunpack.c.h.b16 %v2856
    %v3180 = vunpack.c.l.b16 %v2857
    %v3181 = vunpack.c.h.b16 %v2857
    %v3182 = vunpack.c.l.b16 %v2858
    %v3183 = vunpack.c.h.b16 %v2858
    %v3184 = vunpack.c.l.b16 %v2859
    %v3185 = vunpack.c.h.b16 %v2859
    %v3186 = vunpack.c.l.b16 %v2860
    %v3187 = vunpack.c.h.b16 %v2860
    %v3188 = vunpack.c.l.b16 %v2861
    %v3189 = vunpack.c.h.b16 %v2861
    %v3190 = vunpack.c.l.b16 %v2862
    %v3191 = vunpack.c.h.b16 %v2862
    %v3192 = vunpack.c.l.b16 %v2863
    %v3193 = vunpack.c.h.b16 %v2863
    %v3194 = vunpack.c.l.b16 %v2864
    %v3195 = vunpack.c.h.b16 %v2864
    %v3196 = vunpack.c.l.b16 %v2865
    %v3197 = vunpack.c.h.b16 %v2865
    %v3198 = vunpack.c.l.b16 %v2866
    %v3199 = vunpack.c.h.b16 %v2866
    %v3200 = vunpack.c.l.b16 %v2867
    %v3201 = vunpack.c.h.b16 %v2867
    %v3202 = vunpack.c.l.b16 %v2868
    %v3203 = vunpack.c.h.b16 %v2868
    %v3204 = vunpack.c.l.b16 %v2869
    %v3205 = vunpack.c.h.b16 %v2869
    %v3206 = vunpack.c.l.b16 %v2870
    %v3207 = vunpack.c.h.b16 %v2870
    %v3208 = vunpack.c.l.b16 %v2871
    %v3209 = vunpack.c.h.b16 %v2871
    %v3210 = vunpack.c.l.b16 %v2872
    %v3211 = vunpack.c.h.b16 %v2872
    %v3212 = vunpack.c.l.b16 %v2873
    %v3213 = vunpack.c.h.b16 %v2873
    %v3214 = vunpack.c.l.b16 %v2874
    %v3215 = vunpack.c.h.b16 %v2874
    %v3216 = vunpack.c.l.b16 %v2875
    %v3217 = vunpack.c.h.b16 %v2875
    %v3218 = vunpack.c.l.b16 %v2876
    %v3219 = vunpack.c.h.b16 %v2876
    %v3220 = vunpack.c.l.b16 %v2877
    %v3221 = vunpack.c.h.b16 %v2877
    %v3222 = vunpack.c.l.b16 %v2878
    %v3223 = vunpack.c.h.b16 %v2878
    %v3224 = vunpack.c.l.b16 %v2879
    %v3225 = vunpack.c.h.b16 %v2879
    %v3226 = vunpack.c.l.b16 %v2880
    %v3227 = vunpack.c.h.b16 %v2880
    %v3228 = vunpack.c.l.b16 %v2881
    %v3229 = vunpack.c.h.b16 %v2881
    %v3230 = vunpack.c.l.b16 %v2882
    %v3231 = vunpack.c.h.b16 %v2882
    %v3232 = vunpack.c.l.b16 %v2883
    %v3233 = vunpack.c.h.b16 %v2883
    %v3234 = vunpack.c.l.b16 %v2884
    %v3235 = vunpack.c.h.b16 %v2884
    %v3236 = vunpack.c.l.b16 %v2885
    %v3237 = vunpack.c.h.b16 %v2885
    %v3238 = vunpack.c.l.b16 %v2886
    %v3239 = vunpack.c.h.b16 %v2886
    %v3240 = vunpack.c.l.b16 %v2887
    %v3241 = vunpack.c.h.b16 %v2887
    %v3242 = vunpack.c.l.b16 %v2888
    %v3243 = vunpack.c.h.b16 %v2888
    %v3244 = vunpack.c.l.b16 %v2889
    %v3245 = vunpack.c.h.b16 %v2889
    %v3246 = vunpack.c.l.b16 %v2890
    %v3247 = vunpack.c.h.b16 %v2890
    %v3248 = vunpack.c.l.b16 %v2891
    %v3249 = vunpack.c.h.b16 %v2891
    %v3250 = vunpack.c.l.b16 %v2892
    %v3251 = vunpack.c.h.b16 %v2892
    %v3252 = vunpack.c.l.b16 %v2893
    %v3253 = vunpack.c.h.b16 %v2893
    %v3254 = vunpack.c.l.b16 %v2894
    %v3255 = vunpack.c.h.b16 %v2894
    %v3256 = vunpack.c.l.b16 %v2895
    %v3257 = vunpack.c.h.b16 %v2895
    %v3258 = vunpack.c.l.b16 %v2896
    %v3259 = vunpack.c.h.b16 %v2896
    %v3260 = vunpack.c.l.b16 %v2897
    %v3261 = vunpack.c.h.b16 %v2897
    %v3262 = vunpack.c.l.b16 %v2898
    %v3263 = vunpack.c.h.b16 %v2898
    %v3264 = vunpack.c.l.b16 %v2899
    %v3265 = vunpack.c.h.b16 %v2899
    %v3266 = vunpack.c.l.b16 %v2900
    %v3267 = vunpack.c.h.b16 %v2900
    %v3268 = vunpack.c.l.b16 %v2901
    %v3269 = vunpack.c.h.b16 %v2901
    %v3270 = vunpack.c.l.b16 %v2902
    %v3271 = vunpack.c.h.b16 %v2902
    %v3272 = vunpack.c.l.b16 %v2903
    %v3273 = vunpack.c.h.b16 %v2903
    %v3274 = vunpack.c.l.b16 %v2904
    %v3275 = vunpack.c.h.b16 %v2904
    %v3276 = vunpack.c.l.b16 %v2905
    %v3277 = vunpack.c.h.b16 %v2905
    %v3278 = vunpack.c.l.b16 %v2906
    %v3279 = vunpack.c.h.b16 %v2906
    %v3280 = vunpack.c.l.b16 %v2907
    %v3281 = vunpack.c.h.b16 %v2907
    %v3282 = vunpack.c.l.b16 %v2908
    %v3283 = vunpack.c.h.b16 %v2908
    %v3284 = vunpack.c.l.b16 %v2909
    %v3285 = vunpack.c.h.b16 %v2909
    %v3286 = vunpack.c.l.b16 %v2910
    %v3287 = vunpack.c.h.b16 %v2910
    %v3288 = vunpack.c.l.b16 %v2911
    %v3289 = vunpack.c.h.b16 %v2911
    %v3290 = vunpack.c.l.b16 %v2912
    %v3291 = vunpack.c.h.b16 %v2912
    %v3292 = vunpack.c.l.b16 %v2913
    %v3293 = vunpack.c.h.b16 %v2913
    %v3294 = vunpack.c.l.b16 %v2914
    %v3295 = vunpack.c.h.b16 %v2914
    %v3296 = vunpack.c.l.b16 %v2915
    %v3297 = vunpack.c.h.b16 %v2915
    %v3298 = vunpack.c.l.b16 %v2916
    %v3299 = vunpack.c.h.b16 %v2916
    %v3300 = vunpack.c.l.b16 %v2917
    %v3301 = vunpack.c.h.b16 %v2917
    %v3302 = vunpack.c.l.b16 %v2918
    %v3303 = vunpack.c.h.b16 %v2918
    %v3304 = vunpack.c.l.b16 %v2919
    %v3305 = vunpack.c.h.b16 %v2919
    %v3306 = vunpack.c.l.b16 %v2920
    %v3307 = vunpack.c.h.b16 %v2920
    %v3308 = vunpack.c.l.b16 %v2921
    %v3309 = vunpack.c.h.b16 %v2921
    %v3310 = vunpack.c.l.b16 %v2922
    %v3311 = vunpack.c.h.b16 %v2922
    %v3312 = vunpack.c.l.b16 %v2923
    %v3313 = vunpack.c.h.b16 %v2923
    %v3314 = vunpack.c.l.b16 %v2924
    %v3315 = vunpack.c.h.b16 %v2924
    %v3316 = vunpack.c.l.b16 %v2925
    %v3317 = vunpack.c.h.b16 %v2925
    %v3318 = vunpack.c.l.b16 %v2926
    %v3319 = vunpack.c.h.b16 %v2926
    %v3320 = vunpack.c.l.b16 %v2927
    %v3321 = vunpack.c.h.b16 %v2927
    %v3322 = vunpack.c.l.b16 %v2928
    %v3323 = vunpack.c.h.b16 %v2928
    %v3324 = vunpack.c.l.b16 %v2929
    %v3325 = vunpack.c.h.b16 %v2929
    %v3326 = vunpack.c.l.b16 %v2930
    %v3327 = vunpack.c.h.b16 %v2930
    %v3328 = vunpack.c.l.b16 %v2931
    %v3329 = vunpack.c.h.b16 %v2931
    %v3330 = vunpack.c.l.b16 %v2932
    %v3331 = vunpack.c.h.b16 %v2932
    %v3332 = vunpack.c.l.b16 %v2933
    %v3333 = vunpack.c.h.b16 %v2933
    %v3334 = vunpack.c.l.b16 %v2934
    %v3335 = vunpack.c.h.b16 %v2934
    %v3336 = vunpack.c.l.b16 %v2935
    %v3337 = vunpack.c.h.b16 %v2935
    %v3338 = vunpack.c.l.b16 %v2936
    %v3339 = vunpack.c.h.b16 %v2936
    %v3340 = vunpack.c.l.b16 %v2937
    %v3341 = vunpack.c.h.b16 %v2937
    %v3342 = vunpack.c.l.b16 %v2938
    %v3343 = vunpack.c.h.b16 %v2938
    %v3344 = vunpack.c.l.b16 %v2939
    %v3345 = vunpack.c.h.b16 %v2939
    %v3346 = vpack.c.b16 %v3094, %v3090
    %v3347 = vpack.c.b16 %v3095, %v3091
    %v3348 = vpack.c.b16 %v3096, %v3092
    %v3349 = vpack.c.b16 %v3097, %v3093
    %v3350 = vpack.c.b16 %v3102, %v3098
    %v3351 = vpack.c.b16 %v3103, %v3099
    %v3352 = vpack.c.b16 %v3104, %v3100
    %v3353 = vpack.c.b16 %v3105, %v3101
    %v3354 = vpack.c.b16 %v3110, %v3106
    %v3355 = vpack.c.b16 %v3111, %v3107
    %v3356 = vpack.c.b16 %v3112, %v3108
    %v3357 = vpack.c.b16 %v3113, %v3109
    %v3358 = vpack.c.b16 %v3118, %v3114
    %v3359 = vpack.c.b16 %v3119, %v3115
    %v3360 = vpack.c.b16 %v3120, %v3116
    %v3361 = vpack.c.b16 %v3121, %v3117
    %v3362 = vpack.c.b16 %v3126, %v3122
    %v3363 = vpack.c.b16 %v3127, %v3123
    %v3364 = vpack.c.b16 %v3128, %v3124
    %v3365 = vpack.c.b16 %v3129, %v3125
    %v3366 = vpack.c.b16 %v3134, %v3130
    %v3367 = vpack.c.b16 %v3135, %v3131
    %v3368 = vpack.c.b16 %v3136, %v3132
    %v3369 = vpack.c.b16 %v3137, %v3133
    %v3370 = vpack.c.b16 %v3142, %v3138
    %v3371 = vpack.c.b16 %v3143, %v3139
    %v3372 = vpack.c.b16 %v3144, %v3140
    %v3373 = vpack.c.b16 %v3145, %v3141
    %v3374 = vpack.c.b16 %v3150, %v3146
    %v3375 = vpack.c.b16 %v3151, %v3147
    %v3376 = vpack.c.b16 %v3152, %v3148
    %v3377 = vpack.c.b16 %v3153, %v3149
    %v3378 = vpack.c.b16 %v3158, %v3154
    %v3379 = vpack.c.b16 %v3159, %v3155
    %v3380 = vpack.c.b16 %v3160, %v3156
    %v3381 = vpack.c.b16 %v3161, %v3157
    %v3382 = vpack.c.b16 %v3166, %v3162
    %v3383 = vpack.c.b16 %v3167, %v3163
    %v3384 = vpack.c.b16 %v3168, %v3164
    %v3385 = vpack.c.b16 %v3169, %v3165
    %v3386 = vpack.c.b16 %v3174, %v3170
    %v3387 = vpack.c.b16 %v3175, %v3171
    %v3388 = vpack.c.b16 %v3176, %v3172
    %v3389 = vpack.c.b16 %v3177, %v3173
    %v3390 = vpack.c.b16 %v3182, %v3178
    %v3391 = vpack.c.b16 %v3183, %v3179
    %v3392 = vpack.c.b16 %v3184, %v3180
    %v3393 = vpack.c.b16 %v3185, %v3181
    %v3394 = vpack.c.b16 %v3190, %v3186
    %v3395 = vpack.c.b16 %v3191, %v3187
    %v3396 = vpack.c.b16 %v3192, %v3188
    %v3397 = vpack.c.b16 %v3193, %v3189
    %v3398 = vpack.c.b16 %v3198, %v3194
    %v3399 = vpack.c.b16 %v3199, %v3195
    %v3400 = vpack.c.b16 %v3200, %v3196
    %v3401 = vpack.c.b16 %v3201, %v3197
    %v3402 = vpack.c.b16 %v3206, %v3202
    %v3403 = vpack.c.b16 %v3207, %v3203
    %v3404 = vpack.c.b16 %v3208, %v3204
    %v3405 = vpack.c.b16 %v3209, %v3205
    %v3406 = vpack.c.b16 %v3214, %v3210
    %v3407 = vpack.c.b16 %v3215, %v3211
    %v3408 = vpack.c.b16 %v3216, %v3212
    %v3409 = vpack.c.b16 %v3217, %v3213
    %v3410 = vpack.c.b16 %v3222, %v3218
    %v3411 = vpack.c.b16 %v3223, %v3219
    %v3412 = vpack.c.b16 %v3224, %v3220
    %v3413 = vpack.c.b16 %v3225, %v3221
    %v3414 = vpack.c.b16 %v3230, %v3226
    %v3415 = vpack.c.b16 %v3231, %v3227
    %v3416 = vpack.c.b16 %v3232, %v3228
    %v3417 = vpack.c.b16 %v3233, %v3229
    %v3418 = vpack.c.b16 %v3238, %v3234
    %v3419 = vpack.c.b16 %v3239, %v3235
    %v3420 = vpack.c.b16 %v3240, %v3236
    %v3421 = vpack.c.b16 %v3241, %v3237
    %v3422 = vpack.c.b16 %v3246, %v3242
    %v3423 = vpack.c.b16 %v3247, %v3243
    %v3424 = vpack.c.b16 %v3248, %v3244
    %v3425 = vpack.c.b16 %v3249, %v3245
    %v3426 = vpack.c.b16 %v3254, %v3250
    %v3427 = vpack.c.b16 %v3255, %v3251
    %v3428 = vpack.c.b16 %v3256, %v3252
    %v3429 = vpack.c.b16 %v3257, %v3253
    %v3430 = vpack.c.b16 %v3262, %v3258
    %v3431 = vpack.c.b16 %v3263, %v3259
    %v3432 = vpack.c.b16 %v3264, %v3260
    %v3433 = vpack.c.b16 %v3265, %v3261
    %v3434 = vpack.c.b16 %v3270, %v3266
    %v3435 = vpack.c.b16 %v3271, %v3267
    %v3436 = vpack.c.b16 %v3272, %v3268
    %v3437 = vpack.c.b16 %v3273, %v3269
    %v3438 = vpack.c.b16 %v3278, %v3274
    %v3439 = vpack.c.b16 %v3279, %v3275
    %v3440 = vpack.c.b16 %v3280, %v3276
    %v3441 = vpack.c.b16 %v3281, %v3277
    %v3442 = vpack.c.b16 %v3286, %v3282
    %v3443 = vpack.c.b16 %v3287, %v3283
    %v3444 = vpack.c.b16 %v3288, %v3284
    %v3445 = vpack.c.b16 %v3289, %v3285
    %v3446 = vpack.c.b16 %v3294, %v3290
    %v3447 = vpack.c.b16 %v3295, %v3291
    %v3448 = vpack.c.b16 %v3296, %v3292
    %v3449 = vpack.c.b16 %v3297, %v3293
    %v3450 = vpack.c.b16 %v3302, %v3298
    %v3451 = vpack.c.b16 %v3303, %v3299
    %v3452 = vpack.c.b16 %v3304, %v3300
    %v3453 = vpack.c.b16 %v3305, %v3301
    %v3454 = vpack.c.b16 %v3310, %v3306
    %v3455 = vpack.c.b16 %v3311, %v3307
    %v3456 = vpack.c.b16 %v3312, %v3308
    %v3457 = vpack.c.b16 %v3313, %v3309
    %v3458 = vpack.c.b16 %v3318, %v3314
    %v3459 = vpack.c.b16 %v3319, %v3315
    %v3460 = vpack.c.b16 %v3320, %v3316
    %v3461 = vpack.c.b16 %v3321, %v3317
    %v3462 = vpack.c.b16 %v3326, %v3322
    %v3463 = vpack.c.b16 %v3327, %v3323
    %v3464 = vpack.c.b16 %v3328, %v3324
    %v3465 = vpack.c.b16 %v3329, %v3325
    %v3466 = vpack.c.b16 %v3334, %v3330
    %v3467 = vpack.c.b16 %v3335, %v3331
    %v3468 = vpack.c.b16 %v3336, %v3332
    %v3469 = vpack.c.b16 %v3337, %v3333
    %v3470 = vpack.c.b16 %v3342, %v3338
    %v3471 = vpack.c.b16 %v3343, %v3339
    %v3472 = vpack.c.b16 %v3344, %v3340
    %v3473 = vpack.c.b16 %v3345, %v3341
    %3602 = vmatprep.subr.bf16.mxu0 %v3375
    %3603 = vmatpush1.bf16.msra.mxu0 %v3374
    %3604 = vmatprep.subr.bf16.mxu0 %v3371
    %3605 = vmatpush1.bf16.msra.mxu0 %v3370
    %3606 = vmatprep.subr.bf16.mxu0 %v3367
    %3607 = vmatpush1.bf16.msra.mxu0 %v3366
    %3608 = vmatprep.subr.bf16.mxu0 %v3363
    %3609 = vmatpush1.bf16.msra.mxu0 %v3362
    %3610 = vmatprep.subr.bf16.mxu0 %v3359
    %3611 = vmatpush1.bf16.msra.mxu0 %v3358
    %3612 = vmatprep.subr.bf16.mxu0 %v3355
    %3613 = vmatpush1.bf16.msra.mxu0 %v3354
    %3614 = vmatprep.subr.bf16.mxu0 %v3351
    %3615 = vmatpush1.bf16.msra.mxu0 %v3350
    %3616 = vmatprep.subr.bf16.mxu0 %v3347
    %3617 = vmatpush1.bf16.msra.mxu0 %v3346
    %3618 = vmatprep.subr.bf16.mxu0 %v3407
    %3619 = vmatpush2.bf16.msra.mxu0 %v3406
    %3620 = vmatprep.subr.bf16.mxu0 %v3403
    %3621 = vmatpush2.bf16.msra.mxu0 %v3402
    %3622 = vmatprep.subr.bf16.mxu0 %v3399
    %3623 = vmatpush2.bf16.msra.mxu0 %v3398
    %3624 = vmatprep.subr.bf16.mxu0 %v3395
    %3625 = vmatpush2.bf16.msra.mxu0 %v3394
    %3626 = vmatprep.subr.bf16.mxu0 %v3391
    %3627 = vmatpush2.bf16.msra.mxu0 %v3390
    %3628 = vmatprep.subr.bf16.mxu0 %v3387
    %3629 = vmatpush2.bf16.msra.mxu0 %v3386
    %3630 = vmatprep.subr.bf16.mxu0 %v3383
    %3631 = vmatpush2.bf16.msra.mxu0 %v3382
    %3632 = vmatprep.subr.bf16.mxu0 %v3379
    %3633 = vmatpush2.bf16.msra.mxu0 %v3378
    %3634 = vmatprep.mubr.bf16.mxu0 %v2781
    %3635 = vmatmul.mubr.bf16.gmra.mxu0 %v2780
    %v3636 = vpop.f32.mrf.mxu0
    %v3637 = vadd.f32 %v2945, %v3636
    %v3638 = vpop.f32.mrf.mxu0
    %v3639 = vadd.f32 %v2949, %v3638
    %v3640 = vpop.f32.mrf.mxu0
    %v3641 = vadd.f32 %v2945, %v3640
    %v3642 = vpop.f32.mrf.mxu0
    %v3643 = vadd.f32 %v2949, %v3642
    %3644 = vmatprep.mubr.bf16.mxu0 %v2785
    %3645 = vmatmul.mubr.bf16.gmra.mxu0 %v2784
    %v3646 = vpop.f32.mrf.mxu0
    %v3647 = vadd.f32 %v2945, %v3646
    %v3648 = vpop.f32.mrf.mxu0
    %v3649 = vadd.f32 %v2949, %v3648
    %v3650 = vpop.f32.mrf.mxu0
    %v3651 = vadd.f32 %v2945, %v3650
    %v3652 = vpop.f32.mrf.mxu0
    %v3653 = vadd.f32 %v2949, %v3652
    %3654 = vmatprep.mubr.bf16.mxu0 %v2789
    %3655 = vmatmul.mubr.bf16.gmra.mxu0 %v2788
    %v3656 = vpop.f32.mrf.mxu0
    %v3657 = vadd.f32 %v2945, %v3656
    %v3658 = vpop.f32.mrf.mxu0
    %v3659 = vadd.f32 %v2949, %v3658
    %v3660 = vpop.f32.mrf.mxu0
    %v3661 = vadd.f32 %v2945, %v3660
    %v3662 = vpop.f32.mrf.mxu0
    %v3663 = vadd.f32 %v2949, %v3662
    %3664 = vmatprep.mubr.bf16.mxu0 %v2793
    %3665 = vmatmul.mubr.bf16.gmra.mxu0 %v2792
    %v3666 = vpop.f32.mrf.mxu0
    %v3667 = vadd.f32 %v2945, %v3666
    %v3668 = vpop.f32.mrf.mxu0
    %v3669 = vadd.f32 %v2949, %v3668
    %v3670 = vpop.f32.mrf.mxu0
    %v3671 = vadd.f32 %v2945, %v3670
    %v3672 = vpop.f32.mrf.mxu0
    %v3673 = vadd.f32 %v2949, %v3672
    %3674 = vmatprep.mubr.bf16.mxu0 %v2797
    %3675 = vmatmul.mubr.bf16.gmra.mxu0 %v2796
    %v3676 = vpop.f32.mrf.mxu0
    %v3677 = vadd.f32 %v2945, %v3676
    %v3678 = vpop.f32.mrf.mxu0
    %v3679 = vadd.f32 %v2949, %v3678
    %v3680 = vpop.f32.mrf.mxu0
    %v3681 = vadd.f32 %v2945, %v3680
    %v3682 = vpop.f32.mrf.mxu0
    %v3683 = vadd.f32 %v2949, %v3682
    %3684 = vmatprep.mubr.bf16.mxu0 %v2801
    %3685 = vmatmul.mubr.bf16.gmra.mxu0 %v2800
    %v3686 = vpop.f32.mrf.mxu0
    %v3687 = vadd.f32 %v2945, %v3686
    %v3688 = vpop.f32.mrf.mxu0
    %v3689 = vadd.f32 %v2949, %v3688
    %v3690 = vpop.f32.mrf.mxu0
    %v3691 = vadd.f32 %v2945, %v3690
    %v3692 = vpop.f32.mrf.mxu0
    %v3693 = vadd.f32 %v2949, %v3692
    %3694 = vmatprep.mubr.bf16.mxu0 %v2805
    %3695 = vmatmul.mubr.bf16.gmra.mxu0 %v2804
    %v3696 = vpop.f32.mrf.mxu0
    %v3697 = vadd.f32 %v2945, %v3696
    %v3698 = vpop.f32.mrf.mxu0
    %v3699 = vadd.f32 %v2949, %v3698
    %v3700 = vpop.f32.mrf.mxu0
    %v3701 = vadd.f32 %v2945, %v3700
    %v3702 = vpop.f32.mrf.mxu0
    %v3703 = vadd.f32 %v2949, %v3702
    %3704 = vmatprep.mubr.bf16.mxu0 %v2809
    %3705 = vmatmul.mubr.bf16.gmra.mxu0 %v2808
    %v3706 = vpop.f32.mrf.mxu0
    %v3707 = vadd.f32 %v2945, %v3706
    %v3708 = vpop.f32.mrf.mxu0
    %v3709 = vadd.f32 %v2949, %v3708
    %v3710 = vpop.f32.mrf.mxu0
    %v3711 = vadd.f32 %v2945, %v3710
    %v3712 = vpop.f32.mrf.mxu0
    %v3713 = vadd.f32 %v2949, %v3712
    %3714 = vdwg.mxu0
    %3715 = vmatprep.subr.bf16.mxu0 %v3439
    %3716 = vmatpush1.bf16.msra.mxu0 %v3438
    %3717 = vmatprep.subr.bf16.mxu0 %v3435
    %3718 = vmatpush1.bf16.msra.mxu0 %v3434
    %3719 = vmatprep.subr.bf16.mxu0 %v3431
    %3720 = vmatpush1.bf16.msra.mxu0 %v3430
    %3721 = vmatprep.subr.bf16.mxu0 %v3427
    %3722 = vmatpush1.bf16.msra.mxu0 %v3426
    %3723 = vmatprep.subr.bf16.mxu0 %v3423
    %3724 = vmatpush1.bf16.msra.mxu0 %v3422
    %3725 = vmatprep.subr.bf16.mxu0 %v3419
    %3726 = vmatpush1.bf16.msra.mxu0 %v3418
    %3727 = vmatprep.subr.bf16.mxu0 %v3415
    %3728 = vmatpush1.bf16.msra.mxu0 %v3414
    %3729 = vmatprep.subr.bf16.mxu0 %v3411
    %3730 = vmatpush1.bf16.msra.mxu0 %v3410
    %3731 = vmatprep.subr.bf16.mxu0 %v3471
    %3732 = vmatpush2.bf16.msra.mxu0 %v3470
    %3733 = vmatprep.subr.bf16.mxu0 %v3467
    %3734 = vmatpush2.bf16.msra.mxu0 %v3466
    %3735 = vmatprep.subr.bf16.mxu0 %v3463
    %3736 = vmatpush2.bf16.msra.mxu0 %v3462
    %3737 = vmatprep.subr.bf16.mxu0 %v3459
    %3738 = vmatpush2.bf16.msra.mxu0 %v3458
    %3739 = vmatprep.subr.bf16.mxu0 %v3455
    %3740 = vmatpush2.bf16.msra.mxu0 %v3454
    %3741 = vmatprep.subr.bf16.mxu0 %v3451
    %3742 = vmatpush2.bf16.msra.mxu0 %v3450
    %3743 = vmatprep.subr.bf16.mxu0 %v3447
    %3744 = vmatpush2.bf16.msra.mxu0 %v3446
    %3745 = vmatprep.subr.bf16.mxu0 %v3443
    %3746 = vmatpush2.bf16.msra.mxu0 %v3442
    %3747 = vmatprep.mubr.bf16.mxu0 %v2783
    %3748 = vmatmul.mubr.bf16.gmra.mxu0 %v2782
    %v3749 = vpop.f32.mrf.mxu0
    %v3750 = vadd.f32 %v3637, %v3749
    %v3751 = vpop.f32.mrf.mxu0
    %v3752 = vadd.f32 %v3639, %v3751
    %v3753 = vpop.f32.mrf.mxu0
    %v3754 = vadd.f32 %v3641, %v3753
    %v3755 = vpop.f32.mrf.mxu0
    %v3756 = vadd.f32 %v3643, %v3755
    %3757 = vmatprep.mubr.bf16.mxu0 %v2787
    %3758 = vmatmul.mubr.bf16.gmra.mxu0 %v2786
    %v3759 = vpop.f32.mrf.mxu0
    %v3760 = vadd.f32 %v3647, %v3759
    %v3761 = vpop.f32.mrf.mxu0
    %v3762 = vadd.f32 %v3649, %v3761
    %v3763 = vpop.f32.mrf.mxu0
    %v3764 = vadd.f32 %v3651, %v3763
    %v3765 = vpop.f32.mrf.mxu0
    %v3766 = vadd.f32 %v3653, %v3765
    %3767 = vmatprep.mubr.bf16.mxu0 %v2791
    %3768 = vmatmul.mubr.bf16.gmra.mxu0 %v2790
    %v3769 = vpop.f32.mrf.mxu0
    %v3770 = vadd.f32 %v3657, %v3769
    %v3771 = vpop.f32.mrf.mxu0
    %v3772 = vadd.f32 %v3659, %v3771
    %v3773 = vpop.f32.mrf.mxu0
    %v3774 = vadd.f32 %v3661, %v3773
    %v3775 = vpop.f32.mrf.mxu0
    %v3776 = vadd.f32 %v3663, %v3775
    %3777 = vmatprep.mubr.bf16.mxu0 %v2795
    %3778 = vmatmul.mubr.bf16.gmra.mxu0 %v2794
    %v3779 = vpop.f32.mrf.mxu0
    %v3780 = vadd.f32 %v3667, %v3779
    %v3781 = vpop.f32.mrf.mxu0
    %v3782 = vadd.f32 %v3669, %v3781
    %v3783 = vpop.f32.mrf.mxu0
    %v3784 = vadd.f32 %v3671, %v3783
    %v3785 = vpop.f32.mrf.mxu0
    %v3786 = vadd.f32 %v3673, %v3785
    %3787 = vmatprep.mubr.bf16.mxu0 %v2799
    %3788 = vmatmul.mubr.bf16.gmra.mxu0 %v2798
    %v3789 = vpop.f32.mrf.mxu0
    %v3790 = vadd.f32 %v3677, %v3789
    %v3791 = vpop.f32.mrf.mxu0
    %v3792 = vadd.f32 %v3679, %v3791
    %v3793 = vpop.f32.mrf.mxu0
    %v3794 = vadd.f32 %v3681, %v3793
    %v3795 = vpop.f32.mrf.mxu0
    %v3796 = vadd.f32 %v3683, %v3795
    %3797 = vmatprep.mubr.bf16.mxu0 %v2803
    %3798 = vmatmul.mubr.bf16.gmra.mxu0 %v2802
    %v3799 = vpop.f32.mrf.mxu0
    %v3800 = vadd.f32 %v3687, %v3799
    %v3801 = vpop.f32.mrf.mxu0
    %v3802 = vadd.f32 %v3689, %v3801
    %v3803 = vpop.f32.mrf.mxu0
    %v3804 = vadd.f32 %v3691, %v3803
    %v3805 = vpop.f32.mrf.mxu0
    %v3806 = vadd.f32 %v3693, %v3805
    %3807 = vmatprep.mubr.bf16.mxu0 %v2807
    %3808 = vmatmul.mubr.bf16.gmra.mxu0 %v2806
    %v3809 = vpop.f32.mrf.mxu0
    %v3810 = vadd.f32 %v3697, %v3809
    %v3811 = vpop.f32.mrf.mxu0
    %v3812 = vadd.f32 %v3699, %v3811
    %v3813 = vpop.f32.mrf.mxu0
    %v3814 = vadd.f32 %v3701, %v3813
    %v3815 = vpop.f32.mrf.mxu0
    %v3816 = vadd.f32 %v3703, %v3815
    %3817 = vmatprep.mubr.bf16.mxu0 %v2811
    %3818 = vmatmul.mubr.bf16.gmra.mxu0 %v2810
    %v3819 = vpop.f32.mrf.mxu0
    %v3820 = vadd.f32 %v3707, %v3819
    %v3821 = vpop.f32.mrf.mxu0
    %v3822 = vadd.f32 %v3709, %v3821
    %v3823 = vpop.f32.mrf.mxu0
    %v3824 = vadd.f32 %v3711, %v3823
    %v3825 = vpop.f32.mrf.mxu0
    %v3826 = vadd.f32 %v3713, %v3825
    %3827 = vdwg.mxu0
    %3828 = vmatprep.subr.bf16.mxu0 %v3377
    %3829 = vmatpush1.bf16.msra.mxu0 %v3376
    %3830 = vmatprep.subr.bf16.mxu0 %v3373
    %3831 = vmatpush1.bf16.msra.mxu0 %v3372
    %3832 = vmatprep.subr.bf16.mxu0 %v3369
    %3833 = vmatpush1.bf16.msra.mxu0 %v3368
    %3834 = vmatprep.subr.bf16.mxu0 %v3365
    %3835 = vmatpush1.bf16.msra.mxu0 %v3364
    %3836 = vmatprep.subr.bf16.mxu0 %v3361
    %3837 = vmatpush1.bf16.msra.mxu0 %v3360
    %3838 = vmatprep.subr.bf16.mxu0 %v3357
    %3839 = vmatpush1.bf16.msra.mxu0 %v3356
    %3840 = vmatprep.subr.bf16.mxu0 %v3353
    %3841 = vmatpush1.bf16.msra.mxu0 %v3352
    %3842 = vmatprep.subr.bf16.mxu0 %v3349
    %3843 = vmatpush1.bf16.msra.mxu0 %v3348
    %3844 = vmatprep.subr.bf16.mxu0 %v3409
    %3845 = vmatpush2.bf16.msra.mxu0 %v3408
    %3846 = vmatprep.subr.bf16.mxu0 %v3405
    %3847 = vmatpush2.bf16.msra.mxu0 %v3404
    %3848 = vmatprep.subr.bf16.mxu0 %v3401
    %3849 = vmatpush2.bf16.msra.mxu0 %v3400
    %3850 = vmatprep.subr.bf16.mxu0 %v3397
    %3851 = vmatpush2.bf16.msra.mxu0 %v3396
    %3852 = vmatprep.subr.bf16.mxu0 %v3393
    %3853 = vmatpush2.bf16.msra.mxu0 %v3392
    %3854 = vmatprep.subr.bf16.mxu0 %v3389
    %3855 = vmatpush2.bf16.msra.mxu0 %v3388
    %3856 = vmatprep.subr.bf16.mxu0 %v3385
    %3857 = vmatpush2.bf16.msra.mxu0 %v3384
    %3858 = vmatprep.subr.bf16.mxu0 %v3381
    %3859 = vmatpush2.bf16.msra.mxu0 %v3380
    %3860 = vmatprep.mubr.bf16.mxu0 %v2781
    %3861 = vmatmul.mubr.bf16.gmra.mxu0 %v2780
    %v3862 = vpop.f32.mrf.mxu0
    %v3863 = vadd.f32 %v2953, %v3862
    %v3864 = vpop.f32.mrf.mxu0
    %v3865 = vadd.f32 %v2957, %v3864
    %v3866 = vpop.f32.mrf.mxu0
    %v3867 = vadd.f32 %v2953, %v3866
    %v3868 = vpop.f32.mrf.mxu0
    %v3869 = vadd.f32 %v2957, %v3868
    %3870 = vmatprep.mubr.bf16.mxu0 %v2785
    %3871 = vmatmul.mubr.bf16.gmra.mxu0 %v2784
    %v3872 = vpop.f32.mrf.mxu0
    %v3873 = vadd.f32 %v2953, %v3872
    %v3874 = vpop.f32.mrf.mxu0
    %v3875 = vadd.f32 %v2957, %v3874
    %v3876 = vpop.f32.mrf.mxu0
    %v3877 = vadd.f32 %v2953, %v3876
    %v3878 = vpop.f32.mrf.mxu0
    %v3879 = vadd.f32 %v2957, %v3878
    %3880 = vmatprep.mubr.bf16.mxu0 %v2789
    %3881 = vmatmul.mubr.bf16.gmra.mxu0 %v2788
    %v3882 = vpop.f32.mrf.mxu0
    %v3883 = vadd.f32 %v2953, %v3882
    %v3884 = vpop.f32.mrf.mxu0
    %v3885 = vadd.f32 %v2957, %v3884
    %v3886 = vpop.f32.mrf.mxu0
    %v3887 = vadd.f32 %v2953, %v3886
    %v3888 = vpop.f32.mrf.mxu0
    %v3889 = vadd.f32 %v2957, %v3888
    %3890 = vmatprep.mubr.bf16.mxu0 %v2793
    %3891 = vmatmul.mubr.bf16.gmra.mxu0 %v2792
    %v3892 = vpop.f32.mrf.mxu0
    %v3893 = vadd.f32 %v2953, %v3892
    %v3894 = vpop.f32.mrf.mxu0
    %v3895 = vadd.f32 %v2957, %v3894
    %v3896 = vpop.f32.mrf.mxu0
    %v3897 = vadd.f32 %v2953, %v3896
    %v3898 = vpop.f32.mrf.mxu0
    %v3899 = vadd.f32 %v2957, %v3898
    %3900 = vmatprep.mubr.bf16.mxu0 %v2797
    %3901 = vmatmul.mubr.bf16.gmra.mxu0 %v2796
    %v3902 = vpop.f32.mrf.mxu0
    %v3903 = vadd.f32 %v2953, %v3902
    %v3904 = vpop.f32.mrf.mxu0
    %v3905 = vadd.f32 %v2957, %v3904
    %v3906 = vpop.f32.mrf.mxu0
    %v3907 = vadd.f32 %v2953, %v3906
    %v3908 = vpop.f32.mrf.mxu0
    %v3909 = vadd.f32 %v2957, %v3908
    %3910 = vmatprep.mubr.bf16.mxu0 %v2801
    %3911 = vmatmul.mubr.bf16.gmra.mxu0 %v2800
    %v3912 = vpop.f32.mrf.mxu0
    %v3913 = vadd.f32 %v2953, %v3912
    %v3914 = vpop.f32.mrf.mxu0
    %v3915 = vadd.f32 %v2957, %v3914
    %v3916 = vpop.f32.mrf.mxu0
    %v3917 = vadd.f32 %v2953, %v3916
    %v3918 = vpop.f32.mrf.mxu0
    %v3919 = vadd.f32 %v2957, %v3918
    %3920 = vmatprep.mubr.bf16.mxu0 %v2805
    %3921 = vmatmul.mubr.bf16.gmra.mxu0 %v2804
    %v3922 = vpop.f32.mrf.mxu0
    %v3923 = vadd.f32 %v2953, %v3922
    %v3924 = vpop.f32.mrf.mxu0
    %v3925 = vadd.f32 %v2957, %v3924
    %v3926 = vpop.f32.mrf.mxu0
    %v3927 = vadd.f32 %v2953, %v3926
    %v3928 = vpop.f32.mrf.mxu0
    %v3929 = vadd.f32 %v2957, %v3928
    %3930 = vmatprep.mubr.bf16.mxu0 %v2809
    %3931 = vmatmul.mubr.bf16.gmra.mxu0 %v2808
    %v3932 = vpop.f32.mrf.mxu0
    %v3933 = vadd.f32 %v2953, %v3932
    %v3934 = vpop.f32.mrf.mxu0
    %v3935 = vadd.f32 %v2957, %v3934
    %v3936 = vpop.f32.mrf.mxu0
    %v3937 = vadd.f32 %v2953, %v3936
    %v3938 = vpop.f32.mrf.mxu0
    %v3939 = vadd.f32 %v2957, %v3938
    %3940 = vdwg.mxu0
    %3941 = vmatprep.subr.bf16.mxu0 %v3441
    %3942 = vmatpush1.bf16.msra.mxu0 %v3440
    %3943 = vmatprep.subr.bf16.mxu0 %v3437
    %3944 = vmatpush1.bf16.msra.mxu0 %v3436
    %3945 = vmatprep.subr.bf16.mxu0 %v3433
    %3946 = vmatpush1.bf16.msra.mxu0 %v3432
    %3947 = vmatprep.subr.bf16.mxu0 %v3429
    %3948 = vmatpush1.bf16.msra.mxu0 %v3428
    %3949 = vmatprep.subr.bf16.mxu0 %v3425
    %3950 = vmatpush1.bf16.msra.mxu0 %v3424
    %3951 = vmatprep.subr.bf16.mxu0 %v3421
    %3952 = vmatpush1.bf16.msra.mxu0 %v3420
    %3953 = vmatprep.subr.bf16.mxu0 %v3417
    %3954 = vmatpush1.bf16.msra.mxu0 %v3416
    %3955 = vmatprep.subr.bf16.mxu0 %v3413
    %3956 = vmatpush1.bf16.msra.mxu0 %v3412
    %3957 = vmatprep.subr.bf16.mxu0 %v3473
    %3958 = vmatpush2.bf16.msra.mxu0 %v3472
    %3959 = vmatprep.subr.bf16.mxu0 %v3469
    %3960 = vmatpush2.bf16.msra.mxu0 %v3468
    %3961 = vmatprep.subr.bf16.mxu0 %v3465
    %3962 = vmatpush2.bf16.msra.mxu0 %v3464
    %3963 = vmatprep.subr.bf16.mxu0 %v3461
    %3964 = vmatpush2.bf16.msra.mxu0 %v3460
    %3965 = vmatprep.subr.bf16.mxu0 %v3457
    %3966 = vmatpush2.bf16.msra.mxu0 %v3456
    %3967 = vmatprep.subr.bf16.mxu0 %v3453
    %3968 = vmatpush2.bf16.msra.mxu0 %v3452
    %3969 = vmatprep.subr.bf16.mxu0 %v3449
    %3970 = vmatpush2.bf16.msra.mxu0 %v3448
    %3971 = vmatprep.subr.bf16.mxu0 %v3445
    %3972 = vmatpush2.bf16.msra.mxu0 %v3444
    %3973 = vmatprep.mubr.bf16.mxu0 %v2783
    %3974 = vmatmul.mubr.bf16.gmra.mxu0 %v2782
    %v3975 = vpop.f32.mrf.mxu0
    %v3976 = vadd.f32 %v3863, %v3975
    %v3977 = vpop.f32.mrf.mxu0
    %v3978 = vadd.f32 %v3865, %v3977
    %v3979 = vpop.f32.mrf.mxu0
    %v3980 = vadd.f32 %v3867, %v3979
    %v3981 = vpop.f32.mrf.mxu0
    %v3982 = vadd.f32 %v3869, %v3981
    %3983 = vmatprep.mubr.bf16.mxu0 %v2787
    %3984 = vmatmul.mubr.bf16.gmra.mxu0 %v2786
    %v3985 = vpop.f32.mrf.mxu0
    %v3986 = vadd.f32 %v3873, %v3985
    %v3987 = vpop.f32.mrf.mxu0
    %v3988 = vadd.f32 %v3875, %v3987
    %v3989 = vpop.f32.mrf.mxu0
    %v3990 = vadd.f32 %v3877, %v3989
    %v3991 = vpop.f32.mrf.mxu0
    %v3992 = vadd.f32 %v3879, %v3991
    %3993 = vmatprep.mubr.bf16.mxu0 %v2791
    %3994 = vmatmul.mubr.bf16.gmra.mxu0 %v2790
    %v3995 = vpop.f32.mrf.mxu0
    %v3996 = vadd.f32 %v3883, %v3995
    %v3997 = vpop.f32.mrf.mxu0
    %v3998 = vadd.f32 %v3885, %v3997
    %v3999 = vpop.f32.mrf.mxu0
    %v4000 = vadd.f32 %v3887, %v3999
    %v4001 = vpop.f32.mrf.mxu0
    %v4002 = vadd.f32 %v3889, %v4001
    %4003 = vmatprep.mubr.bf16.mxu0 %v2795
    %4004 = vmatmul.mubr.bf16.gmra.mxu0 %v2794
    %v4005 = vpop.f32.mrf.mxu0
    %v4006 = vadd.f32 %v3893, %v4005
    %v4007 = vpop.f32.mrf.mxu0
    %v4008 = vadd.f32 %v3895, %v4007
    %v4009 = vpop.f32.mrf.mxu0
    %v4010 = vadd.f32 %v3897, %v4009
    %v4011 = vpop.f32.mrf.mxu0
    %v4012 = vadd.f32 %v3899, %v4011
    %4013 = vmatprep.mubr.bf16.mxu0 %v2799
    %4014 = vmatmul.mubr.bf16.gmra.mxu0 %v2798
    %v4015 = vpop.f32.mrf.mxu0
    %v4016 = vadd.f32 %v3903, %v4015
    %v4017 = vpop.f32.mrf.mxu0
    %v4018 = vadd.f32 %v3905, %v4017
    %v4019 = vpop.f32.mrf.mxu0
    %v4020 = vadd.f32 %v3907, %v4019
    %v4021 = vpop.f32.mrf.mxu0
    %v4022 = vadd.f32 %v3909, %v4021
    %4023 = vmatprep.mubr.bf16.mxu0 %v2803
    %4024 = vmatmul.mubr.bf16.gmra.mxu0 %v2802
    %v4025 = vpop.f32.mrf.mxu0
    %v4026 = vadd.f32 %v3913, %v4025
    %v4027 = vpop.f32.mrf.mxu0
    %v4028 = vadd.f32 %v3915, %v4027
    %v4029 = vpop.f32.mrf.mxu0
    %v4030 = vadd.f32 %v3917, %v4029
    %v4031 = vpop.f32.mrf.mxu0
    %v4032 = vadd.f32 %v3919, %v4031
    %4033 = vmatprep.mubr.bf16.mxu0 %v2807
    %4034 = vmatmul.mubr.bf16.gmra.mxu0 %v2806
    %v4035 = vpop.f32.mrf.mxu0
    %v4036 = vadd.f32 %v3923, %v4035
    %v4037 = vpop.f32.mrf.mxu0
    %v4038 = vadd.f32 %v3925, %v4037
    %v4039 = vpop.f32.mrf.mxu0
    %v4040 = vadd.f32 %v3927, %v4039
    %v4041 = vpop.f32.mrf.mxu0
    %v4042 = vadd.f32 %v3929, %v4041
    %4043 = vmatprep.mubr.bf16.mxu0 %v2811
    %4044 = vmatmul.mubr.bf16.gmra.mxu0 %v2810
    %v4045 = vpop.f32.mrf.mxu0
    %v4046 = vadd.f32 %v3933, %v4045
    %v4047 = vpop.f32.mrf.mxu0
    %v4048 = vadd.f32 %v3935, %v4047
    %v4049 = vpop.f32.mrf.mxu0
    %v4050 = vadd.f32 %v3937, %v4049
    %v4051 = vpop.f32.mrf.mxu0
    %v4052 = vadd.f32 %v3939, %v4051
    %4053 = vdwg.mxu0
    %v4054 = vmax.f32 %v3750, 0.0
    %v4055 = vmax.f32 %v3752, 0.0
    %v4056 = vmax.f32 %v3976, 0.0
    %v4057 = vmax.f32 %v3978, 0.0
    %v4058 = vmax.f32 %v3754, 0.0
    %v4059 = vmax.f32 %v3756, 0.0
    %v4060 = vmax.f32 %v3980, 0.0
    %v4061 = vmax.f32 %v3982, 0.0
    %v4062 = vmax.f32 %v3760, 0.0
    %v4063 = vmax.f32 %v3762, 0.0
    %v4064 = vmax.f32 %v3986, 0.0
    %v4065 = vmax.f32 %v3988, 0.0
    %v4066 = vmax.f32 %v3764, 0.0
    %v4067 = vmax.f32 %v3766, 0.0
    %v4068 = vmax.f32 %v3990, 0.0
    %v4069 = vmax.f32 %v3992, 0.0
    %v4070 = vmax.f32 %v3770, 0.0
    %v4071 = vmax.f32 %v3772, 0.0
    %v4072 = vmax.f32 %v3996, 0.0
    %v4073 = vmax.f32 %v3998, 0.0
    %v4074 = vmax.f32 %v3774, 0.0
    %v4075 = vmax.f32 %v3776, 0.0
    %v4076 = vmax.f32 %v4000, 0.0
    %v4077 = vmax.f32 %v4002, 0.0
    %v4078 = vmax.f32 %v3780, 0.0
    %v4079 = vmax.f32 %v3782, 0.0
    %v4080 = vmax.f32 %v4006, 0.0
    %v4081 = vmax.f32 %v4008, 0.0
    %v4082 = vmax.f32 %v3784, 0.0
    %v4083 = vmax.f32 %v3786, 0.0
    %v4084 = vmax.f32 %v4010, 0.0
    %v4085 = vmax.f32 %v4012, 0.0
    %v4086 = vmax.f32 %v3790, 0.0
    %v4087 = vmax.f32 %v3792, 0.0
    %v4088 = vmax.f32 %v4016, 0.0
    %v4089 = vmax.f32 %v4018, 0.0
    %v4090 = vmax.f32 %v3794, 0.0
    %v4091 = vmax.f32 %v3796, 0.0
    %v4092 = vmax.f32 %v4020, 0.0
    %v4093 = vmax.f32 %v4022, 0.0
    %v4094 = vmax.f32 %v3800, 0.0
    %v4095 = vmax.f32 %v3802, 0.0
    %v4096 = vmax.f32 %v4026, 0.0
    %v4097 = vmax.f32 %v4028, 0.0
    %v4098 = vmax.f32 %v3804, 0.0
    %v4099 = vmax.f32 %v3806, 0.0
    %v4100 = vmax.f32 %v4030, 0.0
    %v4101 = vmax.f32 %v4032, 0.0
    %v4102 = vmax.f32 %v3810, 0.0
    %v4103 = vmax.f32 %v3812, 0.0
    %v4104 = vmax.f32 %v4036, 0.0
    %v4105 = vmax.f32 %v4038, 0.0
    %v4106 = vmax.f32 %v3814, 0.0
    %v4107 = vmax.f32 %v3816, 0.0
    %v4108 = vmax.f32 %v4040, 0.0
    %v4109 = vmax.f32 %v4042, 0.0
    %v4110 = vmax.f32 %v3820, 0.0
    %v4111 = vmax.f32 %v3822, 0.0
    %v4112 = vmax.f32 %v4046, 0.0
    %v4113 = vmax.f32 %v4048, 0.0
    %v4114 = vmax.f32 %v3824, 0.0
    %v4115 = vmax.f32 %v3826, 0.0
    %v4116 = vmax.f32 %v4050, 0.0
    %v4117 = vmax.f32 %v4052, 0.0
    %v4118 = vpack.c.bf16 %v4058, %v4054
    %v4119 = vpack.c.bf16 %v4059, %v4055
    %v4120 = vpack.c.bf16 %v4060, %v4056
    %v4121 = vpack.c.bf16 %v4061, %v4057
    %v4122 = vpack.c.bf16 %v4066, %v4062
    %v4123 = vpack.c.bf16 %v4067, %v4063
    %v4124 = vpack.c.bf16 %v4068, %v4064
    %v4125 = vpack.c.bf16 %v4069, %v4065
    %v4126 = vpack.c.bf16 %v4074, %v4070
    %v4127 = vpack.c.bf16 %v4075, %v4071
    %v4128 = vpack.c.bf16 %v4076, %v4072
    %v4129 = vpack.c.bf16 %v4077, %v4073
    %v4130 = vpack.c.bf16 %v4082, %v4078
    %v4131 = vpack.c.bf16 %v4083, %v4079
    %v4132 = vpack.c.bf16 %v4084, %v4080
    %v4133 = vpack.c.bf16 %v4085, %v4081
    %v4134 = vpack.c.bf16 %v4090, %v4086
    %v4135 = vpack.c.bf16 %v4091, %v4087
    %v4136 = vpack.c.bf16 %v4092, %v4088
    %v4137 = vpack.c.bf16 %v4093, %v4089
    %v4138 = vpack.c.bf16 %v4098, %v4094
    %v4139 = vpack.c.bf16 %v4099, %v4095
    %v4140 = vpack.c.bf16 %v4100, %v4096
    %v4141 = vpack.c.bf16 %v4101, %v4097
    %v4142 = vpack.c.bf16 %v4106, %v4102
    %v4143 = vpack.c.bf16 %v4107, %v4103
    %v4144 = vpack.c.bf16 %v4108, %v4104
    %v4145 = vpack.c.bf16 %v4109, %v4105
    %v4146 = vpack.c.bf16 %v4114, %v4110
    %v4147 = vpack.c.bf16 %v4115, %v4111
    %v4148 = vpack.c.bf16 %v4116, %v4112
    %v4149 = vpack.c.bf16 %v4117, %v4113
    %v4150 = vld [vmem:[#allocation10] sm:$0xf]
    %v4151 = vld [vmem:[#allocation10 + $0x4] sm:$0xf]
    %v4152 = vld [vmem:[#allocation10 + $0x8] sm:$0xf]
    %v4153 = vld [vmem:[#allocation10 + $0xc] sm:$0xf]
    %v4154 = vld [vmem:[#allocation10 + $0x10] sm:$0xf]
    %v4155 = vld [vmem:[#allocation10 + $0x14] sm:$0xf]
    %v4156 = vld [vmem:[#allocation10 + $0x18] sm:$0xf]
    %v4157 = vld [vmem:[#allocation10 + $0x1c] sm:$0xf]
    %v4158 = vld [vmem:[#allocation10 + $0x20] sm:$0xf]
    %v4159 = vld [vmem:[#allocation10 + $0x24] sm:$0xf]
    %v4160 = vld [vmem:[#allocation10 + $0x28] sm:$0xf]
    %v4161 = vld [vmem:[#allocation10 + $0x2c] sm:$0xf]
    %v4162 = vld [vmem:[#allocation10 + $0x30] sm:$0xf]
    %v4163 = vld [vmem:[#allocation10 + $0x34] sm:$0xf]
    %v4164 = vld [vmem:[#allocation10 + $0x38] sm:$0xf]
    %v4165 = vld [vmem:[#allocation10 + $0x3c] sm:$0xf]
    %v4166 = vld [vmem:[#allocation10 + $0x40] sm:$0xf]
    %v4167 = vld [vmem:[#allocation10 + $0x44] sm:$0xf]
    %v4168 = vld [vmem:[#allocation10 + $0x48] sm:$0xf]
    %v4169 = vld [vmem:[#allocation10 + $0x4c] sm:$0xf]
    %v4170 = vld [vmem:[#allocation10 + $0x50] sm:$0xf]
    %v4171 = vld [vmem:[#allocation10 + $0x54] sm:$0xf]
    %v4172 = vld [vmem:[#allocation10 + $0x58] sm:$0xf]
    %v4173 = vld [vmem:[#allocation10 + $0x5c] sm:$0xf]
    %v4174 = vld [vmem:[#allocation10 + $0x60] sm:$0xf]
    %v4175 = vld [vmem:[#allocation10 + $0x64] sm:$0xf]
    %v4176 = vld [vmem:[#allocation10 + $0x68] sm:$0xf]
    %v4177 = vld [vmem:[#allocation10 + $0x6c] sm:$0xf]
    %v4178 = vld [vmem:[#allocation10 + $0x70] sm:$0xf]
    %v4179 = vld [vmem:[#allocation10 + $0x74] sm:$0xf]
    %v4180 = vld [vmem:[#allocation10 + $0x78] sm:$0xf]
    %v4181 = vld [vmem:[#allocation10 + $0x7c] sm:$0xf]
    %v4182 = vld [vmem:[#allocation10 + $0x80] sm:$0xf]
    %v4183 = vld [vmem:[#allocation10 + $0x84] sm:$0xf]
    %v4184 = vld [vmem:[#allocation10 + $0x88] sm:$0xf]
    %v4185 = vld [vmem:[#allocation10 + $0x8c] sm:$0xf]
    %v4186 = vld [vmem:[#allocation10 + $0x90] sm:$0xf]
    %v4187 = vld [vmem:[#allocation10 + $0x94] sm:$0xf]
    %v4188 = vld [vmem:[#allocation10 + $0x98] sm:$0xf]
    %v4189 = vld [vmem:[#allocation10 + $0x9c] sm:$0xf]
    %v4190 = vld [vmem:[#allocation10 + $0xa0] sm:$0xf]
    %v4191 = vld [vmem:[#allocation10 + $0xa4] sm:$0xf]
    %v4192 = vld [vmem:[#allocation10 + $0xa8] sm:$0xf]
    %v4193 = vld [vmem:[#allocation10 + $0xac] sm:$0xf]
    %v4194 = vld [vmem:[#allocation10 + $0xb0] sm:$0xf]
    %v4195 = vld [vmem:[#allocation10 + $0xb4] sm:$0xf]
    %v4196 = vld [vmem:[#allocation10 + $0xb8] sm:$0xf]
    %v4197 = vld [vmem:[#allocation10 + $0xbc] sm:$0xf]
    %v4198 = vld [vmem:[#allocation10 + $0xc0] sm:$0xf]
    %v4199 = vld [vmem:[#allocation10 + $0xc4] sm:$0xf]
    %v4200 = vld [vmem:[#allocation10 + $0xc8] sm:$0xf]
    %v4201 = vld [vmem:[#allocation10 + $0xcc] sm:$0xf]
    %v4202 = vld [vmem:[#allocation10 + $0xd0] sm:$0xf]
    %v4203 = vld [vmem:[#allocation10 + $0xd4] sm:$0xf]
    %v4204 = vld [vmem:[#allocation10 + $0xd8] sm:$0xf]
    %v4205 = vld [vmem:[#allocation10 + $0xdc] sm:$0xf]
    %v4206 = vld [vmem:[#allocation10 + $0xe0] sm:$0xf]
    %v4207 = vld [vmem:[#allocation10 + $0xe4] sm:$0xf]
    %v4208 = vld [vmem:[#allocation10 + $0xe8] sm:$0xf]
    %v4209 = vld [vmem:[#allocation10 + $0xec] sm:$0xf]
    %v4210 = vld [vmem:[#allocation10 + $0xf0] sm:$0xf]
    %v4211 = vld [vmem:[#allocation10 + $0xf4] sm:$0xf]
    %v4212 = vld [vmem:[#allocation10 + $0xf8] sm:$0xf]
    %v4213 = vld [vmem:[#allocation10 + $0xfc] sm:$0xf]
    %v4214 = vld [vmem:[%s6] sm:$0x1]
    %v4216 = vlaneseq
    %v4217 = vshrl.u32 %v4216, 7
    %v4218 = vsub.s32 0, %v4217
    %v4219 = vrot.slane %v4214, %v4218
    %v4285 = vunpack.c.l.b16 %v4150
    %v4286 = vunpack.c.l.b16 %v4151
    %v4287 = vunpack.c.l.b16 %v4152
    %v4288 = vunpack.c.l.b16 %v4153
    %v4289 = vunpack.c.l.b16 %v4154
    %v4290 = vunpack.c.l.b16 %v4155
    %v4291 = vunpack.c.l.b16 %v4156
    %v4292 = vunpack.c.l.b16 %v4157
    %v4293 = vunpack.c.l.b16 %v4158
    %v4294 = vunpack.c.l.b16 %v4159
    %v4295 = vunpack.c.l.b16 %v4160
    %v4296 = vunpack.c.l.b16 %v4161
    %v4297 = vunpack.c.l.b16 %v4162
    %v4298 = vunpack.c.l.b16 %v4163
    %v4299 = vunpack.c.l.b16 %v4164
    %v4300 = vunpack.c.l.b16 %v4165
    %v4301 = vunpack.c.l.b16 %v4166
    %v4302 = vunpack.c.l.b16 %v4167
    %v4303 = vunpack.c.l.b16 %v4168
    %v4304 = vunpack.c.l.b16 %v4169
    %v4305 = vunpack.c.l.b16 %v4170
    %v4306 = vunpack.c.l.b16 %v4171
    %v4307 = vunpack.c.l.b16 %v4172
    %v4308 = vunpack.c.l.b16 %v4173
    %v4309 = vunpack.c.l.b16 %v4174
    %v4310 = vunpack.c.l.b16 %v4175
    %v4311 = vunpack.c.l.b16 %v4176
    %v4312 = vunpack.c.l.b16 %v4177
    %v4313 = vunpack.c.l.b16 %v4178
    %v4314 = vunpack.c.l.b16 %v4179
    %v4315 = vunpack.c.l.b16 %v4180
    %v4316 = vunpack.c.l.b16 %v4181
    %v4317 = vunpack.c.l.b16 %v4182
    %v4318 = vunpack.c.l.b16 %v4183
    %v4319 = vunpack.c.l.b16 %v4184
    %v4320 = vunpack.c.l.b16 %v4185
    %v4321 = vunpack.c.l.b16 %v4186
    %v4322 = vunpack.c.l.b16 %v4187
    %v4323 = vunpack.c.l.b16 %v4188
    %v4324 = vunpack.c.l.b16 %v4189
    %v4325 = vunpack.c.l.b16 %v4190
    %v4326 = vunpack.c.l.b16 %v4191
    %v4327 = vunpack.c.l.b16 %v4192
    %v4328 = vunpack.c.l.b16 %v4193
    %v4329 = vunpack.c.l.b16 %v4194
    %v4330 = vunpack.c.l.b16 %v4195
    %v4331 = vunpack.c.l.b16 %v4196
    %v4332 = vunpack.c.l.b16 %v4197
    %v4333 = vunpack.c.l.b16 %v4198
    %v4334 = vunpack.c.l.b16 %v4199
    %v4335 = vunpack.c.l.b16 %v4200
    %v4336 = vunpack.c.l.b16 %v4201
    %v4337 = vunpack.c.l.b16 %v4202
    %v4338 = vunpack.c.l.b16 %v4203
    %v4339 = vunpack.c.l.b16 %v4204
    %v4340 = vunpack.c.l.b16 %v4205
    %v4341 = vunpack.c.l.b16 %v4206
    %v4342 = vunpack.c.l.b16 %v4207
    %v4343 = vunpack.c.l.b16 %v4208
    %v4344 = vunpack.c.l.b16 %v4209
    %v4345 = vunpack.c.l.b16 %v4210
    %v4346 = vunpack.c.l.b16 %v4211
    %v4347 = vunpack.c.l.b16 %v4212
    %v4348 = vunpack.c.l.b16 %v4213
    %v4349 = vpack.c.b16 %v4286, %v4285
    %v4350 = vpack.c.b16 %v4288, %v4287
    %v4351 = vpack.c.b16 %v4290, %v4289
    %v4352 = vpack.c.b16 %v4292, %v4291
    %v4353 = vpack.c.b16 %v4294, %v4293
    %v4354 = vpack.c.b16 %v4296, %v4295
    %v4355 = vpack.c.b16 %v4298, %v4297
    %v4356 = vpack.c.b16 %v4300, %v4299
    %v4357 = vpack.c.b16 %v4302, %v4301
    %v4358 = vpack.c.b16 %v4304, %v4303
    %v4359 = vpack.c.b16 %v4306, %v4305
    %v4360 = vpack.c.b16 %v4308, %v4307
    %v4361 = vpack.c.b16 %v4310, %v4309
    %v4362 = vpack.c.b16 %v4312, %v4311
    %v4363 = vpack.c.b16 %v4314, %v4313
    %v4364 = vpack.c.b16 %v4316, %v4315
    %v4365 = vpack.c.b16 %v4318, %v4317
    %v4366 = vpack.c.b16 %v4320, %v4319
    %v4367 = vpack.c.b16 %v4322, %v4321
    %v4368 = vpack.c.b16 %v4324, %v4323
    %v4369 = vpack.c.b16 %v4326, %v4325
    %v4370 = vpack.c.b16 %v4328, %v4327
    %v4371 = vpack.c.b16 %v4330, %v4329
    %v4372 = vpack.c.b16 %v4332, %v4331
    %v4373 = vpack.c.b16 %v4334, %v4333
    %v4374 = vpack.c.b16 %v4336, %v4335
    %v4375 = vpack.c.b16 %v4338, %v4337
    %v4376 = vpack.c.b16 %v4340, %v4339
    %v4377 = vpack.c.b16 %v4342, %v4341
    %v4378 = vpack.c.b16 %v4344, %v4343
    %v4379 = vpack.c.b16 %v4346, %v4345
    %v4380 = vpack.c.b16 %v4348, %v4347
    %4413 = vmatprep.subr.bf16.mxu0 0
    %4414 = vmatpush1.bf16.msra.mxu0 %v4356
    %4415 = vmatprep.subr.bf16.mxu0 0
    %4416 = vmatpush1.bf16.msra.mxu0 %v4355
    %4417 = vmatprep.subr.bf16.mxu0 0
    %4418 = vmatpush1.bf16.msra.mxu0 %v4354
    %4419 = vmatprep.subr.bf16.mxu0 0
    %4420 = vmatpush1.bf16.msra.mxu0 %v4353
    %4421 = vmatprep.subr.bf16.mxu0 0
    %4422 = vmatpush1.bf16.msra.mxu0 %v4352
    %4423 = vmatprep.subr.bf16.mxu0 0
    %4424 = vmatpush1.bf16.msra.mxu0 %v4351
    %4425 = vmatprep.subr.bf16.mxu0 0
    %4426 = vmatpush1.bf16.msra.mxu0 %v4350
    %4427 = vmatprep.subr.bf16.mxu0 0
    %4428 = vmatpush1.bf16.msra.mxu0 %v4349
    %4429 = vmatprep.subr.bf16.mxu0 0
    %4430 = vmatpush2.bf16.msra.mxu0 %v4364
    %4431 = vmatprep.subr.bf16.mxu0 0
    %4432 = vmatpush2.bf16.msra.mxu0 %v4363
    %4433 = vmatprep.subr.bf16.mxu0 0
    %4434 = vmatpush2.bf16.msra.mxu0 %v4362
    %4435 = vmatprep.subr.bf16.mxu0 0
    %4436 = vmatpush2.bf16.msra.mxu0 %v4361
    %4437 = vmatprep.subr.bf16.mxu0 0
    %4438 = vmatpush2.bf16.msra.mxu0 %v4360
    %4439 = vmatprep.subr.bf16.mxu0 0
    %4440 = vmatpush2.bf16.msra.mxu0 %v4359
    %4441 = vmatprep.subr.bf16.mxu0 0
    %4442 = vmatpush2.bf16.msra.mxu0 %v4358
    %4443 = vmatprep.subr.bf16.mxu0 0
    %4444 = vmatpush2.bf16.msra.mxu0 %v4357
    %4445 = vmatprep.mubr.bf16.mxu0 %v4119
    %4446 = vmatmul.mubr.bf16.gmra.mxu0 %v4118
    %v4447 = vpop.f32.mrf.mxu0
    %v4448 = vadd.f32 %v4219, %v4447
    %v4449 = vpop.f32.mrf.mxu0
    %v4450 = vpop.f32.mrf.mxu0
    %v4451 = vadd.f32 %v4219, %v4450
    %v4452 = vpop.f32.mrf.mxu0
    %4453 = vmatprep.mubr.bf16.mxu0 %v4123
    %4454 = vmatmul.mubr.bf16.gmra.mxu0 %v4122
    %v4455 = vpop.f32.mrf.mxu0
    %v4456 = vadd.f32 %v4219, %v4455
    %v4457 = vpop.f32.mrf.mxu0
    %v4458 = vpop.f32.mrf.mxu0
    %v4459 = vadd.f32 %v4219, %v4458
    %v4460 = vpop.f32.mrf.mxu0
    %4461 = vmatprep.mubr.bf16.mxu0 %v4127
    %4462 = vmatmul.mubr.bf16.gmra.mxu0 %v4126
    %v4463 = vpop.f32.mrf.mxu0
    %v4464 = vadd.f32 %v4219, %v4463
    %v4465 = vpop.f32.mrf.mxu0
    %v4466 = vpop.f32.mrf.mxu0
    %v4467 = vadd.f32 %v4219, %v4466
    %v4468 = vpop.f32.mrf.mxu0
    %4469 = vmatprep.mubr.bf16.mxu0 %v4131
    %4470 = vmatmul.mubr.bf16.gmra.mxu0 %v4130
    %v4471 = vpop.f32.mrf.mxu0
    %v4472 = vadd.f32 %v4219, %v4471
    %v4473 = vpop.f32.mrf.mxu0
    %v4474 = vpop.f32.mrf.mxu0
    %v4475 = vadd.f32 %v4219, %v4474
    %v4476 = vpop.f32.mrf.mxu0
    %4477 = vmatprep.mubr.bf16.mxu0 %v4135
    %4478 = vmatmul.mubr.bf16.gmra.mxu0 %v4134
    %v4479 = vpop.f32.mrf.mxu0
    %v4480 = vadd.f32 %v4219, %v4479
    %v4481 = vpop.f32.mrf.mxu0
    %v4482 = vpop.f32.mrf.mxu0
    %v4483 = vadd.f32 %v4219, %v4482
    %v4484 = vpop.f32.mrf.mxu0
    %4485 = vmatprep.mubr.bf16.mxu0 %v4139
    %4486 = vmatmul.mubr.bf16.gmra.mxu0 %v4138
    %v4487 = vpop.f32.mrf.mxu0
    %v4488 = vadd.f32 %v4219, %v4487
    %v4489 = vpop.f32.mrf.mxu0
    %v4490 = vpop.f32.mrf.mxu0
    %v4491 = vadd.f32 %v4219, %v4490
    %v4492 = vpop.f32.mrf.mxu0
    %4493 = vmatprep.mubr.bf16.mxu0 %v4143
    %4494 = vmatmul.mubr.bf16.gmra.mxu0 %v4142
    %v4495 = vpop.f32.mrf.mxu0
    %v4496 = vadd.f32 %v4219, %v4495
    %v4497 = vpop.f32.mrf.mxu0
    %v4498 = vpop.f32.mrf.mxu0
    %v4499 = vadd.f32 %v4219, %v4498
    %v4500 = vpop.f32.mrf.mxu0
    %4501 = vmatprep.mubr.bf16.mxu0 %v4147
    %4502 = vmatmul.mubr.bf16.gmra.mxu0 %v4146
    %v4503 = vpop.f32.mrf.mxu0
    %v4504 = vadd.f32 %v4219, %v4503
    %v4505 = vpop.f32.mrf.mxu0
    %v4506 = vpop.f32.mrf.mxu0
    %v4507 = vadd.f32 %v4219, %v4506
    %v4508 = vpop.f32.mrf.mxu0
    %4509 = vdwg.mxu0
    %4510 = vmatprep.subr.bf16.mxu0 0
    %4511 = vmatpush1.bf16.msra.mxu0 %v4372
    %4512 = vmatprep.subr.bf16.mxu0 0
    %4513 = vmatpush1.bf16.msra.mxu0 %v4371
    %4514 = vmatprep.subr.bf16.mxu0 0
    %4515 = vmatpush1.bf16.msra.mxu0 %v4370
    %4516 = vmatprep.subr.bf16.mxu0 0
    %4517 = vmatpush1.bf16.msra.mxu0 %v4369
    %4518 = vmatprep.subr.bf16.mxu0 0
    %4519 = vmatpush1.bf16.msra.mxu0 %v4368
    %4520 = vmatprep.subr.bf16.mxu0 0
    %4521 = vmatpush1.bf16.msra.mxu0 %v4367
    %4522 = vmatprep.subr.bf16.mxu0 0
    %4523 = vmatpush1.bf16.msra.mxu0 %v4366
    %4524 = vmatprep.subr.bf16.mxu0 0
    %4525 = vmatpush1.bf16.msra.mxu0 %v4365
    %4526 = vmatprep.subr.bf16.mxu0 0
    %4527 = vmatpush2.bf16.msra.mxu0 %v4380
    %4528 = vmatprep.subr.bf16.mxu0 0
    %4529 = vmatpush2.bf16.msra.mxu0 %v4379
    %4530 = vmatprep.subr.bf16.mxu0 0
    %4531 = vmatpush2.bf16.msra.mxu0 %v4378
    %4532 = vmatprep.subr.bf16.mxu0 0
    %4533 = vmatpush2.bf16.msra.mxu0 %v4377
    %4534 = vmatprep.subr.bf16.mxu0 0
    %4535 = vmatpush2.bf16.msra.mxu0 %v4376
    %4536 = vmatprep.subr.bf16.mxu0 0
    %4537 = vmatpush2.bf16.msra.mxu0 %v4375
    %4538 = vmatprep.subr.bf16.mxu0 0
    %4539 = vmatpush2.bf16.msra.mxu0 %v4374
    %4540 = vmatprep.subr.bf16.mxu0 0
    %4541 = vmatpush2.bf16.msra.mxu0 %v4373
    %4542 = vmatprep.mubr.bf16.mxu0 %v4121
    %4543 = vmatmul.mubr.bf16.gmra.mxu0 %v4120
    %v4544 = vpop.f32.mrf.mxu0
    %v4545 = vadd.f32 %v4448, %v4544
    %v4546 = vpop.f32.mrf.mxu0
    %v4547 = vpop.f32.mrf.mxu0
    %v4548 = vadd.f32 %v4451, %v4547
    %v4549 = vpop.f32.mrf.mxu0
    %4550 = vmatprep.mubr.bf16.mxu0 %v4125
    %4551 = vmatmul.mubr.bf16.gmra.mxu0 %v4124
    %v4552 = vpop.f32.mrf.mxu0
    %v4553 = vadd.f32 %v4456, %v4552
    %v4554 = vpop.f32.mrf.mxu0
    %v4555 = vpop.f32.mrf.mxu0
    %v4556 = vadd.f32 %v4459, %v4555
    %v4557 = vpop.f32.mrf.mxu0
    %4558 = vmatprep.mubr.bf16.mxu0 %v4129
    %4559 = vmatmul.mubr.bf16.gmra.mxu0 %v4128
    %v4560 = vpop.f32.mrf.mxu0
    %v4561 = vadd.f32 %v4464, %v4560
    %v4562 = vpop.f32.mrf.mxu0
    %v4563 = vpop.f32.mrf.mxu0
    %v4564 = vadd.f32 %v4467, %v4563
    %v4565 = vpop.f32.mrf.mxu0
    %4566 = vmatprep.mubr.bf16.mxu0 %v4133
    %4567 = vmatmul.mubr.bf16.gmra.mxu0 %v4132
    %v4568 = vpop.f32.mrf.mxu0
    %v4569 = vadd.f32 %v4472, %v4568
    %v4570 = vpop.f32.mrf.mxu0
    %v4571 = vpop.f32.mrf.mxu0
    %v4572 = vadd.f32 %v4475, %v4571
    %v4573 = vpop.f32.mrf.mxu0
    %4574 = vmatprep.mubr.bf16.mxu0 %v4137
    %4575 = vmatmul.mubr.bf16.gmra.mxu0 %v4136
    %v4576 = vpop.f32.mrf.mxu0
    %v4577 = vadd.f32 %v4480, %v4576
    %v4578 = vpop.f32.mrf.mxu0
    %v4579 = vpop.f32.mrf.mxu0
    %v4580 = vadd.f32 %v4483, %v4579
    %v4581 = vpop.f32.mrf.mxu0
    %4582 = vmatprep.mubr.bf16.mxu0 %v4141
    %4583 = vmatmul.mubr.bf16.gmra.mxu0 %v4140
    %v4584 = vpop.f32.mrf.mxu0
    %v4585 = vadd.f32 %v4488, %v4584
    %v4586 = vpop.f32.mrf.mxu0
    %v4587 = vpop.f32.mrf.mxu0
    %v4588 = vadd.f32 %v4491, %v4587
    %v4589 = vpop.f32.mrf.mxu0
    %4590 = vmatprep.mubr.bf16.mxu0 %v4145
    %4591 = vmatmul.mubr.bf16.gmra.mxu0 %v4144
    %v4592 = vpop.f32.mrf.mxu0
    %v4593 = vadd.f32 %v4496, %v4592
    %v4594 = vpop.f32.mrf.mxu0
    %v4595 = vpop.f32.mrf.mxu0
    %v4596 = vadd.f32 %v4499, %v4595
    %v4597 = vpop.f32.mrf.mxu0
    %4598 = vmatprep.mubr.bf16.mxu0 %v4149
    %4599 = vmatmul.mubr.bf16.gmra.mxu0 %v4148
    %v4600 = vpop.f32.mrf.mxu0
    %v4601 = vadd.f32 %v4504, %v4600
    %v4602 = vpop.f32.mrf.mxu0
    %v4603 = vpop.f32.mrf.mxu0
    %v4604 = vadd.f32 %v4507, %v4603
    %v4605 = vpop.f32.mrf.mxu0
    %4606 = vdwg.mxu0
    %4607 = vst [vmem:[#allocation11] sm:$0xff] %v4545
    %4608 = vst [vmem:[#allocation11 + $0x8] sm:$0xff] %v4548
    %4609 = vst [vmem:[#allocation11 + $0x10] sm:$0xff] %v4553
    %4610 = vst [vmem:[#allocation11 + $0x18] sm:$0xff] %v4556
    %4611 = vst [vmem:[#allocation11 + $0x20] sm:$0xff] %v4561
    %4612 = vst [vmem:[#allocation11 + $0x28] sm:$0xff] %v4564
    %4613 = vst [vmem:[#allocation11 + $0x30] sm:$0xff] %v4569
    %4614 = vst [vmem:[#allocation11 + $0x38] sm:$0xff] %v4572
    %4615 = vst [vmem:[#allocation11 + $0x40] sm:$0xff] %v4577
    %4616 = vst [vmem:[#allocation11 + $0x48] sm:$0xff] %v4580
    %4617 = vst [vmem:[#allocation11 + $0x50] sm:$0xff] %v4585
    %4618 = vst [vmem:[#allocation11 + $0x58] sm:$0xff] %v4588
    %4619 = vst [vmem:[#allocation11 + $0x60] sm:$0xff] %v4593
    %4620 = vst [vmem:[#allocation11 + $0x68] sm:$0xff] %v4596
    %4621 = vst [vmem:[#allocation11 + $0x70] sm:$0xff] %v4601
    %4622 = vst [vmem:[#allocation11 + $0x78] sm:$0xff] %v4604
    // Predicated region
    $region50: #{tpu_custom_call.1} parent=1 // pred_check
      _
    $region51: #{tpu_custom_call.1} parent=1 // pred_check_branch
      %4624 = sbr.rel (0) target = $region53
    $region52: #{tpu_custom_call.1} parent=1 // pred_region
      %s4626 = ssub.s32 2048, 2048
      %4627 = vsyncadd [#allocation4], %s4626
      %s4628 = sshll.u32 [#allocation11], 4
      %s4629 = int_to_ptr.vmem [resolvable:$true] %s4628
      %4634 = dma.vmem_to_hbm [thread:$0]  %s4629, 2048, %s7, [#allocation4], 128, 128, 8
    $region53: #{tpu_custom_call.1} parent=1 // pred_fallthru
      _
    // Predicated region
    $region54: #{tpu_custom_call.1} parent=1 // pred_check
      _
    $region55: #{tpu_custom_call.1} parent=1 // pred_check_branch
      %4636 = sbr.rel (0) target = $region57
    $region56: #{tpu_custom_call.1} parent=1 // pred_region
      %4637 = dma.done [#allocation4], 2048
    $region57: #{tpu_custom_call.1} parent=1 // pred_fallthru
      _
    %4638 = vsyncpa [#allocation3], 1
    %4639 = vsyncpa [#allocation6], 1
    %4640 = vsyncpa [#allocation9], 1
    %4641 = vsyncpa [#allocation4], 1

</llo_original>
